<compile_context>
chip_gen: v6e
topology: v6e:2x2x1
jax: 0.10.0
libtpu: 0.0.40
codegen_flags: <defaults>
</compile_context>

<pallas_src>
import functools
import math

import jax
import jax.numpy as jnp
from jax.experimental import pallas as pl
from jax.experimental.pallas import tpu as pltpu


# ----------------------------------------------------------------------------
# Shared LSTM cell (PyTorch gate order i, f, g, o).  MXU in bf16, rest f32.
# ----------------------------------------------------------------------------
def _lstm_cell(gate_pre_f32, h_prev, c_prev, whh_bf16, H):
    gates = gate_pre_f32 + jnp.dot(h_prev.astype(jnp.bfloat16), whh_bf16,
                                   preferred_element_type=jnp.float32)
    i_g = jax.nn.sigmoid(gates[:, 0 * H:1 * H])
    f_g = jax.nn.sigmoid(gates[:, 1 * H:2 * H])
    g_g = jnp.tanh(gates[:, 2 * H:3 * H])
    o_g = jax.nn.sigmoid(gates[:, 3 * H:4 * H])
    c_new = f_g * c_prev + i_g * g_g
    h_new = o_g * jnp.tanh(c_new)
    return h_new, c_new


# ----------------------------------------------------------------------------
# Kernel 1: one bidirectional LSTM layer, full sequence, single invocation.
#   x_ref   : (T*B, Din)   time-major, row block t = timestep t
#   wih_ref : (Din, 8H)    [fwd i,f,g,o | bwd i,f,g,o] columns, bf16
#   whh_*   : (H, 4H)      bf16
#   b_ref   : (1, 8H)      f32 (b_ih + b_hh, both directions)
#   out_ref : (T*B, 2H)    [:, :H] = fwd hidden, [:, H:] = bwd hidden
# ----------------------------------------------------------------------------
def _bilstm_layer_kernel(x_ref, wih_ref, whh_f_ref, whh_b_ref, b_ref, out_ref,
                         *, T, B, H):
    G = 4 * H
    x = x_ref[...].astype(jnp.bfloat16)                       # (T*B, Din)
    # Hoisted input projection for BOTH directions: one MXU matmul.
    gx = jnp.dot(x, wih_ref[...],
                 preferred_element_type=jnp.float32) + b_ref[...]   # (T*B, 8H)
    whh_f = whh_f_ref[...]
    whh_b = whh_b_ref[...]

    zeros = jnp.zeros((B, H), jnp.float32)
    h_f, c_f = zeros, zeros
    h_b, c_b = zeros, zeros

    # Fully static (unrolled) time loop; T is small and compile-time known.
    for t in range(T):
        # forward direction consumes timestep t
        h_f, c_f = _lstm_cell(gx[t * B:(t + 1) * B, :G], h_f, c_f, whh_f, H)
        out_ref[t * B:(t + 1) * B, 0:H] = h_f.astype(out_ref.dtype)
        # backward direction consumes timestep T-1-t (no HBM flip needed)
        tb = T - 1 - t
        h_b, c_b = _lstm_cell(gx[tb * B:(tb + 1) * B, G:], h_b, c_b, whh_b, H)
        out_ref[tb * B:(tb + 1) * B, H:2 * H] = h_b.astype(out_ref.dtype)


# ----------------------------------------------------------------------------
# Kernel 2: LAST bi-LSTM layer + classifier head, fused.
# z = output[:, -1] = [fwd hidden after T steps | bwd hidden after 1 step
# (it has only seen x[T-1] at that output position)], then
# ReLU -> BatchNorm1d(eval) -> Linear -> LogSoftmax.
# ----------------------------------------------------------------------------
def _bilstm_head_kernel(x_ref, wih_ref, whh_f_ref, whh_b_ref, b_ref,
                        gamma_ref, beta_ref, mean_ref, var_ref,
                        wlin_ref, blin_ref, out_ref, *, T, B, H):
    G = 4 * H
    x = x_ref[...].astype(jnp.bfloat16)
    gx = jnp.dot(x, wih_ref[...],
                 preferred_element_type=jnp.float32) + b_ref[...]
    whh_f = whh_f_ref[...]
    whh_b = whh_b_ref[...]

    zeros = jnp.zeros((B, H), jnp.float32)
    h_f, c_f = zeros, zeros
    for t in range(T):
        h_f, c_f = _lstm_cell(gx[t * B:(t + 1) * B, :G], h_f, c_f, whh_f, H)
    # Backward half of output[:, -1] depends only on x[T-1]: one cell step.
    h_b, _ = _lstm_cell(gx[(T - 1) * B:T * B, G:], zeros, zeros, whh_b, H)

    z = jnp.concatenate([h_f, h_b], axis=-1)                   # (B, 2H)
    z = jnp.maximum(z, 0.0)                                    # ReLU
    zn = ((z - mean_ref[...]) * jax.lax.rsqrt(var_ref[...] + 1e-5)
          * gamma_ref[...] + beta_ref[...])                    # BatchNorm1d eval
    logits = (jnp.dot(zn.astype(jnp.bfloat16), wlin_ref[...],
                      preferred_element_type=jnp.float32)
              + blin_ref[...])                                 # Linear
    m = jnp.max(logits, axis=-1, keepdims=True)
    lse = jnp.log(jnp.sum(jnp.exp(logits - m), axis=-1, keepdims=True)) + m
    out_ref[...] = logits - lse                                # LogSoftmax


# ----------------------------------------------------------------------------
# pallas_call wrappers (no grid: single invocation, everything in VMEM)
# ----------------------------------------------------------------------------
_VMEM = pl.BlockSpec(memory_space=pltpu.MemorySpace.VMEM)


def bilstm_layer(x2d, layer, *, T, B):
    H = layer["whh_f"].shape[0]
    return pl.pallas_call(
        functools.partial(_bilstm_layer_kernel, T=T, B=B, H=H),
        out_shape=jax.ShapeDtypeStruct((T * B, 2 * H), jnp.bfloat16),
        in_specs=[_VMEM] * 5,
        out_specs=_VMEM,
    )(x2d, layer["wih"], layer["whh_f"], layer["whh_b"], layer["b"])


def bilstm_last_layer_head(x2d, layer, head, *, T, B):
    H = layer["whh_f"].shape[0]
    O = head["w"].shape[1]
    return pl.pallas_call(
        functools.partial(_bilstm_head_kernel, T=T, B=B, H=H),
        out_shape=jax.ShapeDtypeStruct((B, O), jnp.float32),
        in_specs=[_VMEM] * 11,
        out_specs=_VMEM,
    )(x2d, layer["wih"], layer["whh_f"], layer["whh_b"], layer["b"],
      head["gamma"], head["beta"], head["mean"], head["var"],
      head["w"], head["b"])


# ----------------------------------------------------------------------------
# Full model forward: (B, T, input_size) batch_first -> (B, output_size)
# ----------------------------------------------------------------------------
def sequence_classifier_forward(x_btd, params):
    B, T, _ = x_btd.shape
    # time-major, flattened to (T*B, Din); row block t == timestep t
    x = jnp.transpose(x_btd, (1, 0, 2)).reshape(T * B, -1).astype(jnp.bfloat16)
    layers = params["lstm"]
    for layer in layers[:-1]:
        x = bilstm_layer(x, layer, T=T, B=B)
        # (inter-layer dropout skipped: eval-mode forward)
    return bilstm_last_layer_head(x, layers[-1], params["head"], T=T, B=B)


# ----------------------------------------------------------------------------
# Deterministic parameter init (PyTorch-style uniform(-1/sqrt(H), 1/sqrt(H)))
# packed into the fused layouts the kernels expect.
# ----------------------------------------------------------------------------
def init_params(key, input_size, hidden, output, n_layers):
    params = {"lstm": [], "head": {}}
    k = 1.0 / math.sqrt(hidden)
    for l in range(n_layers):
        din = input_size if l == 0 else 2 * hidden

        def mk(k1, k2, k3, k4):
            wih = jax.random.uniform(k1, (4 * hidden, din), jnp.float32, -k, k)
            whh = jax.random.uniform(k2, (4 * hidden, hidden), jnp.float32, -k, k)
            bih = jax.random.uniform(k3, (4 * hidden,), jnp.float32, -k, k)
            bhh = jax.random.uniform(k4, (4 * hidden,), jnp.float32, -k, k)
            return wih.T, whh.T, bih + bhh

        key, kf1, kf2, kf3, kf4, kb1, kb2, kb3, kb4 = jax.random.split(key, 9)
        wih_f, whh_f, b_f = mk(kf1, kf2, kf3, kf4)
        wih_b, whh_b, b_b = mk(kb1, kb2, kb3, kb4)
        params["lstm"].append({
            "wih": jnp.concatenate([wih_f, wih_b], axis=1).astype(jnp.bfloat16),
            "whh_f": whh_f.astype(jnp.bfloat16),
            "whh_b": whh_b.astype(jnp.bfloat16),
            "b": jnp.concatenate([b_f, b_b])[None, :],          # (1, 8H) f32
        })

    feat = 2 * hidden
    kl = 1.0 / math.sqrt(feat)
    key, k1, k2 = jax.random.split(key, 3)
    params["head"] = {
        "gamma": jnp.ones((1, feat), jnp.float32),    # BatchNorm1d weight
        "beta": jnp.zeros((1, feat), jnp.float32),    # BatchNorm1d bias
        "mean": jnp.zeros((1, feat), jnp.float32),    # running_mean
        "var": jnp.ones((1, feat), jnp.float32),      # running_var
        "w": jax.random.uniform(k1, (output, feat), jnp.float32,
                                -kl, kl).T.astype(jnp.bfloat16),  # (2H, O)
        "b": jax.random.uniform(k2, (1, output), jnp.float32, -kl, kl),
    }
    return params


if __name__ == "__main__":
    B, T = 2, 8
    input_size, hidden_size, output_size, n_layers = 16, 32, 10, 4

    key = jax.random.PRNGKey(0)
    key, pkey, xkey = jax.random.split(key, 3)
    params = init_params(pkey, input_size, hidden_size, output_size, n_layers)
    x = jax.random.normal(xkey, (B, T, input_size), jnp.float32)

    fwd = jax.jit(sequence_classifier_forward)
    y = jax.block_until_ready(fwd(x, params))

    assert y.shape == (B, output_size)
    # log-softmax rows should sum (in prob space) to 1
    assert bool(jnp.all(jnp.abs(jnp.sum(jnp.exp(y), axis=-1) - 1.0) < 1e-4))
    print("KERNEL_OK")
</pallas_src>

<mosaic_0001>
module attributes {stable_mosaic.version = 11 : i64} {
  func.func @_bilstm_layer_kernel(%arg0: memref<16x64xbf16, #tpu.memory_space<vmem>>, %arg1: memref<64x256xbf16, #tpu.memory_space<vmem>>, %arg2: memref<32x128xbf16, #tpu.memory_space<vmem>>, %arg3: memref<32x128xbf16, #tpu.memory_space<vmem>>, %arg4: memref<1x256xf32, #tpu.memory_space<vmem>>, %arg5: memref<16x64xbf16, #tpu.memory_space<vmem>>) attributes {dimension_semantics = [], scalar_prefetch = 0 : i64, scratch_operands = 0 : i64, tpu.core_type = #tpu.core_type<tc>} {
    %c0 = arith.constant 0 : index
    %c0_0 = arith.constant 0 : index
    %0 = vector.load %arg0[%c0, %c0_0] : memref<16x64xbf16, #tpu.memory_space<vmem>>, vector<16x64xbf16>
    %c0_1 = arith.constant 0 : index
    %c0_2 = arith.constant 0 : index
    %1 = vector.load %arg1[%c0_1, %c0_2] : memref<64x256xbf16, #tpu.memory_space<vmem>>, vector<64x256xbf16>
    %cst = arith.constant dense<0.000000e+00> : vector<16x256xf32>
    %2 = tpu.matmul %0, %1, %cst {dimension_numbers = #tpu.dot_dimension_numbers<[1], [0], [0], [1], [0, 0, 1, 1], [], []>} : vector<16x64xbf16>, vector<64x256xbf16>, vector<16x256xf32> -> vector<16x256xf32>
    %c0_3 = arith.constant 0 : index
    %c0_4 = arith.constant 0 : index
    %3 = vector.load %arg4[%c0_3, %c0_4] : memref<1x256xf32, #tpu.memory_space<vmem>>, vector<1x256xf32>
    %4 = vector.broadcast %3 : vector<1x256xf32> to vector<16x256xf32>
    %5 = arith.addf %2, %4 : vector<16x256xf32>
    %c0_5 = arith.constant 0 : index
    %c0_6 = arith.constant 0 : index
    %6 = vector.load %arg2[%c0_5, %c0_6] : memref<32x128xbf16, #tpu.memory_space<vmem>>, vector<32x128xbf16>
    %c0_7 = arith.constant 0 : index
    %c0_8 = arith.constant 0 : index
    %7 = vector.load %arg3[%c0_7, %c0_8] : memref<32x128xbf16, #tpu.memory_space<vmem>>, vector<32x128xbf16>
    %cst_9 = arith.constant 0.000000e+00 : f32
    %8 = vector.broadcast %cst_9 : f32 to vector<2x32xf32>
    %9 = vector.extract_strided_slice %5 {offsets = [0, 0], sizes = [2, 128], strides = [1, 1]} : vector<16x256xf32> to vector<2x128xf32>
    %10 = arith.truncf %8 : vector<2x32xf32> to vector<2x32xbf16>
    %cst_10 = arith.constant dense<0.000000e+00> : vector<2x128xf32>
    %11 = tpu.matmul %10, %6, %cst_10 {dimension_numbers = #tpu.dot_dimension_numbers<[1], [0], [0], [1], [0, 0, 1, 1], [], []>} : vector<2x32xbf16>, vector<32x128xbf16>, vector<2x128xf32> -> vector<2x128xf32>
    %12 = arith.addf %9, %11 : vector<2x128xf32>
    %13 = vector.extract_strided_slice %12 {offsets = [0, 0], sizes = [2, 32], strides = [1, 1]} : vector<2x128xf32> to vector<2x32xf32>
    %14 = arith.negf %13 : vector<2x32xf32>
    %15 = math.exp %14 : vector<2x32xf32>
    %cst_11 = arith.constant 1.000000e+00 : f32
    %16 = vector.broadcast %cst_11 : f32 to vector<2x32xf32>
    %17 = arith.addf %16, %15 : vector<2x32xf32>
    %18 = arith.divf %16, %17 : vector<2x32xf32>
    %19 = vector.extract_strided_slice %12 {offsets = [0, 32], sizes = [2, 32], strides = [1, 1]} : vector<2x128xf32> to vector<2x32xf32>
    %20 = arith.negf %19 : vector<2x32xf32>
    %21 = math.exp %20 : vector<2x32xf32>
    %cst_12 = arith.constant 1.000000e+00 : f32
    %22 = vector.broadcast %cst_12 : f32 to vector<2x32xf32>
    %23 = arith.addf %22, %21 : vector<2x32xf32>
    %24 = arith.divf %22, %23 : vector<2x32xf32>
    %25 = vector.extract_strided_slice %12 {offsets = [0, 64], sizes = [2, 32], strides = [1, 1]} : vector<2x128xf32> to vector<2x32xf32>
    %26 = math.tanh %25 : vector<2x32xf32>
    %27 = vector.extract_strided_slice %12 {offsets = [0, 96], sizes = [2, 32], strides = [1, 1]} : vector<2x128xf32> to vector<2x32xf32>
    %28 = arith.negf %27 : vector<2x32xf32>
    %29 = math.exp %28 : vector<2x32xf32>
    %cst_13 = arith.constant 1.000000e+00 : f32
    %30 = vector.broadcast %cst_13 : f32 to vector<2x32xf32>
    %31 = arith.addf %30, %29 : vector<2x32xf32>
    %32 = arith.divf %30, %31 : vector<2x32xf32>
    %33 = arith.mulf %24, %8 : vector<2x32xf32>
    %34 = arith.mulf %18, %26 : vector<2x32xf32>
    %35 = arith.addf %33, %34 : vector<2x32xf32>
    %36 = math.tanh %35 : vector<2x32xf32>
    %37 = arith.mulf %32, %36 : vector<2x32xf32>
    %38 = arith.truncf %37 : vector<2x32xf32> to vector<2x32xbf16>
    %c0_14 = arith.constant 0 : index
    %c0_15 = arith.constant 0 : index
    %39 = vector.load %arg5[%c0_14, %c0_15] : memref<16x64xbf16, #tpu.memory_space<vmem>>, vector<2x32xbf16>
    tpu.vector_store %arg5[%c0_14, %c0_15], %38 {strides = array<i32>} : memref<16x64xbf16, #tpu.memory_space<vmem>>, vector<2x32xbf16>,
    %40 = vector.extract_strided_slice %5 {offsets = [14, 128], sizes = [2, 128], strides = [1, 1]} : vector<16x256xf32> to vector<2x128xf32>
    %41 = arith.truncf %8 : vector<2x32xf32> to vector<2x32xbf16>
    %cst_16 = arith.constant dense<0.000000e+00> : vector<2x128xf32>
    %42 = tpu.matmul %41, %7, %cst_16 {dimension_numbers = #tpu.dot_dimension_numbers<[1], [0], [0], [1], [0, 0, 1, 1], [], []>} : vector<2x32xbf16>, vector<32x128xbf16>, vector<2x128xf32> -> vector<2x128xf32>
    %43 = arith.addf %40, %42 : vector<2x128xf32>
    %44 = vector.extract_strided_slice %43 {offsets = [0, 0], sizes = [2, 32], strides = [1, 1]} : vector<2x128xf32> to vector<2x32xf32>
    %45 = arith.negf %44 : vector<2x32xf32>
    %46 = math.exp %45 : vector<2x32xf32>
    %cst_17 = arith.constant 1.000000e+00 : f32
    %47 = vector.broadcast %cst_17 : f32 to vector<2x32xf32>
    %48 = arith.addf %47, %46 : vector<2x32xf32>
    %49 = arith.divf %47, %48 : vector<2x32xf32>
    %50 = vector.extract_strided_slice %43 {offsets = [0, 32], sizes = [2, 32], strides = [1, 1]} : vector<2x128xf32> to vector<2x32xf32>
    %51 = arith.negf %50 : vector<2x32xf32>
    %52 = math.exp %51 : vector<2x32xf32>
    %cst_18 = arith.constant 1.000000e+00 : f32
    %53 = vector.broadcast %cst_18 : f32 to vector<2x32xf32>
    %54 = arith.addf %53, %52 : vector<2x32xf32>
    %55 = arith.divf %53, %54 : vector<2x32xf32>
    %56 = vector.extract_strided_slice %43 {offsets = [0, 64], sizes = [2, 32], strides = [1, 1]} : vector<2x128xf32> to vector<2x32xf32>
    %57 = math.tanh %56 : vector<2x32xf32>
    %58 = vector.extract_strided_slice %43 {offsets = [0, 96], sizes = [2, 32], strides = [1, 1]} : vector<2x128xf32> to vector<2x32xf32>
    %59 = arith.negf %58 : vector<2x32xf32>
    %60 = math.exp %59 : vector<2x32xf32>
    %cst_19 = arith.constant 1.000000e+00 : f32
    %61 = vector.broadcast %cst_19 : f32 to vector<2x32xf32>
    %62 = arith.addf %61, %60 : vector<2x32xf32>
    %63 = arith.divf %61, %62 : vector<2x32xf32>
    %64 = arith.mulf %55, %8 : vector<2x32xf32>
    %65 = arith.mulf %49, %57 : vector<2x32xf32>
    %66 = arith.addf %64, %65 : vector<2x32xf32>
    %67 = math.tanh %66 : vector<2x32xf32>
    %68 = arith.mulf %63, %67 : vector<2x32xf32>
    %69 = arith.truncf %68 : vector<2x32xf32> to vector<2x32xbf16>
    %c14 = arith.constant 14 : index
    %c32 = arith.constant 32 : index
    %70 = vector.load %arg5[%c14, %c32] : memref<16x64xbf16, #tpu.memory_space<vmem>>, vector<2x32xbf16>
    tpu.vector_store %arg5[%c14, %c32], %69 {strides = array<i32>} : memref<16x64xbf16, #tpu.memory_space<vmem>>, vector<2x32xbf16>,
    %71 = vector.extract_strided_slice %5 {offsets = [2, 0], sizes = [2, 128], strides = [1, 1]} : vector<16x256xf32> to vector<2x128xf32>
    %72 = arith.truncf %37 : vector<2x32xf32> to vector<2x32xbf16>
    %cst_20 = arith.constant dense<0.000000e+00> : vector<2x128xf32>
    %73 = tpu.matmul %72, %6, %cst_20 {dimension_numbers = #tpu.dot_dimension_numbers<[1], [0], [0], [1], [0, 0, 1, 1], [], []>} : vector<2x32xbf16>, vector<32x128xbf16>, vector<2x128xf32> -> vector<2x128xf32>
    %74 = arith.addf %71, %73 : vector<2x128xf32>
    %75 = vector.extract_strided_slice %74 {offsets = [0, 0], sizes = [2, 32], strides = [1, 1]} : vector<2x128xf32> to vector<2x32xf32>
    %76 = arith.negf %75 : vector<2x32xf32>
    %77 = math.exp %76 : vector<2x32xf32>
    %cst_21 = arith.constant 1.000000e+00 : f32
    %78 = vector.broadcast %cst_21 : f32 to vector<2x32xf32>
    %79 = arith.addf %78, %77 : vector<2x32xf32>
    %80 = arith.divf %78, %79 : vector<2x32xf32>
    %81 = vector.extract_strided_slice %74 {offsets = [0, 32], sizes = [2, 32], strides = [1, 1]} : vector<2x128xf32> to vector<2x32xf32>
    %82 = arith.negf %81 : vector<2x32xf32>
    %83 = math.exp %82 : vector<2x32xf32>
    %cst_22 = arith.constant 1.000000e+00 : f32
    %84 = vector.broadcast %cst_22 : f32 to vector<2x32xf32>
    %85 = arith.addf %84, %83 : vector<2x32xf32>
    %86 = arith.divf %84, %85 : vector<2x32xf32>
    %87 = vector.extract_strided_slice %74 {offsets = [0, 64], sizes = [2, 32], strides = [1, 1]} : vector<2x128xf32> to vector<2x32xf32>
    %88 = math.tanh %87 : vector<2x32xf32>
    %89 = vector.extract_strided_slice %74 {offsets = [0, 96], sizes = [2, 32], strides = [1, 1]} : vector<2x128xf32> to vector<2x32xf32>
    %90 = arith.negf %89 : vector<2x32xf32>
    %91 = math.exp %90 : vector<2x32xf32>
    %cst_23 = arith.constant 1.000000e+00 : f32
    %92 = vector.broadcast %cst_23 : f32 to vector<2x32xf32>
    %93 = arith.addf %92, %91 : vector<2x32xf32>
    %94 = arith.divf %92, %93 : vector<2x32xf32>
    %95 = arith.mulf %86, %35 : vector<2x32xf32>
    %96 = arith.mulf %80, %88 : vector<2x32xf32>
    %97 = arith.addf %95, %96 : vector<2x32xf32>
    %98 = math.tanh %97 : vector<2x32xf32>
    %99 = arith.mulf %94, %98 : vector<2x32xf32>
    %100 = arith.truncf %99 : vector<2x32xf32> to vector<2x32xbf16>
    %c2 = arith.constant 2 : index
    %c0_24 = arith.constant 0 : index
    %101 = vector.load %arg5[%c2, %c0_24] : memref<16x64xbf16, #tpu.memory_space<vmem>>, vector<2x32xbf16>
    tpu.vector_store %arg5[%c2, %c0_24], %100 {strides = array<i32>} : memref<16x64xbf16, #tpu.memory_space<vmem>>, vector<2x32xbf16>,
    %102 = vector.extract_strided_slice %5 {offsets = [12, 128], sizes = [2, 128], strides = [1, 1]} : vector<16x256xf32> to vector<2x128xf32>
    %103 = arith.truncf %68 : vector<2x32xf32> to vector<2x32xbf16>
    %cst_25 = arith.constant dense<0.000000e+00> : vector<2x128xf32>
    %104 = tpu.matmul %103, %7, %cst_25 {dimension_numbers = #tpu.dot_dimension_numbers<[1], [0], [0], [1], [0, 0, 1, 1], [], []>} : vector<2x32xbf16>, vector<32x128xbf16>, vector<2x128xf32> -> vector<2x128xf32>
    %105 = arith.addf %102, %104 : vector<2x128xf32>
    %106 = vector.extract_strided_slice %105 {offsets = [0, 0], sizes = [2, 32], strides = [1, 1]} : vector<2x128xf32> to vector<2x32xf32>
    %107 = arith.negf %106 : vector<2x32xf32>
    %108 = math.exp %107 : vector<2x32xf32>
    %cst_26 = arith.constant 1.000000e+00 : f32
    %109 = vector.broadcast %cst_26 : f32 to vector<2x32xf32>
    %110 = arith.addf %109, %108 : vector<2x32xf32>
    %111 = arith.divf %109, %110 : vector<2x32xf32>
    %112 = vector.extract_strided_slice %105 {offsets = [0, 32], sizes = [2, 32], strides = [1, 1]} : vector<2x128xf32> to vector<2x32xf32>
    %113 = arith.negf %112 : vector<2x32xf32>
    %114 = math.exp %113 : vector<2x32xf32>
    %cst_27 = arith.constant 1.000000e+00 : f32
    %115 = vector.broadcast %cst_27 : f32 to vector<2x32xf32>
    %116 = arith.addf %115, %114 : vector<2x32xf32>
    %117 = arith.divf %115, %116 : vector<2x32xf32>
    %118 = vector.extract_strided_slice %105 {offsets = [0, 64], sizes = [2, 32], strides = [1, 1]} : vector<2x128xf32> to vector<2x32xf32>
    %119 = math.tanh %118 : vector<2x32xf32>
    %120 = vector.extract_strided_slice %105 {offsets = [0, 96], sizes = [2, 32], strides = [1, 1]} : vector<2x128xf32> to vector<2x32xf32>
    %121 = arith.negf %120 : vector<2x32xf32>
    %122 = math.exp %121 : vector<2x32xf32>
    %cst_28 = arith.constant 1.000000e+00 : f32
    %123 = vector.broadcast %cst_28 : f32 to vector<2x32xf32>
    %124 = arith.addf %123, %122 : vector<2x32xf32>
    %125 = arith.divf %123, %124 : vector<2x32xf32>
    %126 = arith.mulf %117, %66 : vector<2x32xf32>
    %127 = arith.mulf %111, %119 : vector<2x32xf32>
    %128 = arith.addf %126, %127 : vector<2x32xf32>
    %129 = math.tanh %128 : vector<2x32xf32>
    %130 = arith.mulf %125, %129 : vector<2x32xf32>
    %131 = arith.truncf %130 : vector<2x32xf32> to vector<2x32xbf16>
    %c12 = arith.constant 12 : index
    %c32_29 = arith.constant 32 : index
    %132 = vector.load %arg5[%c12, %c32_29] : memref<16x64xbf16, #tpu.memory_space<vmem>>, vector<2x32xbf16>
    tpu.vector_store %arg5[%c12, %c32_29], %131 {strides = array<i32>} : memref<16x64xbf16, #tpu.memory_space<vmem>>, vector<2x32xbf16>,
    %133 = vector.extract_strided_slice %5 {offsets = [4, 0], sizes = [2, 128], strides = [1, 1]} : vector<16x256xf32> to vector<2x128xf32>
    %134 = arith.truncf %99 : vector<2x32xf32> to vector<2x32xbf16>
    %cst_30 = arith.constant dense<0.000000e+00> : vector<2x128xf32>
    %135 = tpu.matmul %134, %6, %cst_30 {dimension_numbers = #tpu.dot_dimension_numbers<[1], [0], [0], [1], [0, 0, 1, 1], [], []>} : vector<2x32xbf16>, vector<32x128xbf16>, vector<2x128xf32> -> vector<2x128xf32>
    %136 = arith.addf %133, %135 : vector<2x128xf32>
    %137 = vector.extract_strided_slice %136 {offsets = [0, 0], sizes = [2, 32], strides = [1, 1]} : vector<2x128xf32> to vector<2x32xf32>
    %138 = arith.negf %137 : vector<2x32xf32>
    %139 = math.exp %138 : vector<2x32xf32>
    %cst_31 = arith.constant 1.000000e+00 : f32
    %140 = vector.broadcast %cst_31 : f32 to vector<2x32xf32>
    %141 = arith.addf %140, %139 : vector<2x32xf32>
    %142 = arith.divf %140, %141 : vector<2x32xf32>
    %143 = vector.extract_strided_slice %136 {offsets = [0, 32], sizes = [2, 32], strides = [1, 1]} : vector<2x128xf32> to vector<2x32xf32>
    %144 = arith.negf %143 : vector<2x32xf32>
    %145 = math.exp %144 : vector<2x32xf32>
    %cst_32 = arith.constant 1.000000e+00 : f32
    %146 = vector.broadcast %cst_32 : f32 to vector<2x32xf32>
    %147 = arith.addf %146, %145 : vector<2x32xf32>
    %148 = arith.divf %146, %147 : vector<2x32xf32>
    %149 = vector.extract_strided_slice %136 {offsets = [0, 64], sizes = [2, 32], strides = [1, 1]} : vector<2x128xf32> to vector<2x32xf32>
    %150 = math.tanh %149 : vector<2x32xf32>
    %151 = vector.extract_strided_slice %136 {offsets = [0, 96], sizes = [2, 32], strides = [1, 1]} : vector<2x128xf32> to vector<2x32xf32>
    %152 = arith.negf %151 : vector<2x32xf32>
    %153 = math.exp %152 : vector<2x32xf32>
    %cst_33 = arith.constant 1.000000e+00 : f32
    %154 = vector.broadcast %cst_33 : f32 to vector<2x32xf32>
    %155 = arith.addf %154, %153 : vector<2x32xf32>
    %156 = arith.divf %154, %155 : vector<2x32xf32>
    %157 = arith.mulf %148, %97 : vector<2x32xf32>
    %158 = arith.mulf %142, %150 : vector<2x32xf32>
    %159 = arith.addf %157, %158 : vector<2x32xf32>
    %160 = math.tanh %159 : vector<2x32xf32>
    %161 = arith.mulf %156, %160 : vector<2x32xf32>
    %162 = arith.truncf %161 : vector<2x32xf32> to vector<2x32xbf16>
    %c4 = arith.constant 4 : index
    %c0_34 = arith.constant 0 : index
    %163 = vector.load %arg5[%c4, %c0_34] : memref<16x64xbf16, #tpu.memory_space<vmem>>, vector<2x32xbf16>
    tpu.vector_store %arg5[%c4, %c0_34], %162 {strides = array<i32>} : memref<16x64xbf16, #tpu.memory_space<vmem>>, vector<2x32xbf16>,
    %164 = vector.extract_strided_slice %5 {offsets = [10, 128], sizes = [2, 128], strides = [1, 1]} : vector<16x256xf32> to vector<2x128xf32>
    %165 = arith.truncf %130 : vector<2x32xf32> to vector<2x32xbf16>
    %cst_35 = arith.constant dense<0.000000e+00> : vector<2x128xf32>
    %166 = tpu.matmul %165, %7, %cst_35 {dimension_numbers = #tpu.dot_dimension_numbers<[1], [0], [0], [1], [0, 0, 1, 1], [], []>} : vector<2x32xbf16>, vector<32x128xbf16>, vector<2x128xf32> -> vector<2x128xf32>
    %167 = arith.addf %164, %166 : vector<2x128xf32>
    %168 = vector.extract_strided_slice %167 {offsets = [0, 0], sizes = [2, 32], strides = [1, 1]} : vector<2x128xf32> to vector<2x32xf32>
    %169 = arith.negf %168 : vector<2x32xf32>
    %170 = math.exp %169 : vector<2x32xf32>
    %cst_36 = arith.constant 1.000000e+00 : f32
    %171 = vector.broadcast %cst_36 : f32 to vector<2x32xf32>
    %172 = arith.addf %171, %170 : vector<2x32xf32>
    %173 = arith.divf %171, %172 : vector<2x32xf32>
    %174 = vector.extract_strided_slice %167 {offsets = [0, 32], sizes = [2, 32], strides = [1, 1]} : vector<2x128xf32> to vector<2x32xf32>
    %175 = arith.negf %174 : vector<2x32xf32>
    %176 = math.exp %175 : vector<2x32xf32>
    %cst_37 = arith.constant 1.000000e+00 : f32
    %177 = vector.broadcast %cst_37 : f32 to vector<2x32xf32>
    %178 = arith.addf %177, %176 : vector<2x32xf32>
    %179 = arith.divf %177, %178 : vector<2x32xf32>
    %180 = vector.extract_strided_slice %167 {offsets = [0, 64], sizes = [2, 32], strides = [1, 1]} : vector<2x128xf32> to vector<2x32xf32>
    %181 = math.tanh %180 : vector<2x32xf32>
    %182 = vector.extract_strided_slice %167 {offsets = [0, 96], sizes = [2, 32], strides = [1, 1]} : vector<2x128xf32> to vector<2x32xf32>
    %183 = arith.negf %182 : vector<2x32xf32>
    %184 = math.exp %183 : vector<2x32xf32>
    %cst_38 = arith.constant 1.000000e+00 : f32
    %185 = vector.broadcast %cst_38 : f32 to vector<2x32xf32>
    %186 = arith.addf %185, %184 : vector<2x32xf32>
    %187 = arith.divf %185, %186 : vector<2x32xf32>
    %188 = arith.mulf %179, %128 : vector<2x32xf32>
    %189 = arith.mulf %173, %181 : vector<2x32xf32>
    %190 = arith.addf %188, %189 : vector<2x32xf32>
    %191 = math.tanh %190 : vector<2x32xf32>
    %192 = arith.mulf %187, %191 : vector<2x32xf32>
    %193 = arith.truncf %192 : vector<2x32xf32> to vector<2x32xbf16>
    %c10 = arith.constant 10 : index
    %c32_39 = arith.constant 32 : index
    %194 = vector.load %arg5[%c10, %c32_39] : memref<16x64xbf16, #tpu.memory_space<vmem>>, vector<2x32xbf16>
    tpu.vector_store %arg5[%c10, %c32_39], %193 {strides = array<i32>} : memref<16x64xbf16, #tpu.memory_space<vmem>>, vector<2x32xbf16>,
    %195 = vector.extract_strided_slice %5 {offsets = [6, 0], sizes = [2, 128], strides = [1, 1]} : vector<16x256xf32> to vector<2x128xf32>
    %196 = arith.truncf %161 : vector<2x32xf32> to vector<2x32xbf16>
    %cst_40 = arith.constant dense<0.000000e+00> : vector<2x128xf32>
    %197 = tpu.matmul %196, %6, %cst_40 {dimension_numbers = #tpu.dot_dimension_numbers<[1], [0], [0], [1], [0, 0, 1, 1], [], []>} : vector<2x32xbf16>, vector<32x128xbf16>, vector<2x128xf32> -> vector<2x128xf32>
    %198 = arith.addf %195, %197 : vector<2x128xf32>
    %199 = vector.extract_strided_slice %198 {offsets = [0, 0], sizes = [2, 32], strides = [1, 1]} : vector<2x128xf32> to vector<2x32xf32>
    %200 = arith.negf %199 : vector<2x32xf32>
    %201 = math.exp %200 : vector<2x32xf32>
    %cst_41 = arith.constant 1.000000e+00 : f32
    %202 = vector.broadcast %cst_41 : f32 to vector<2x32xf32>
    %203 = arith.addf %202, %201 : vector<2x32xf32>
    %204 = arith.divf %202, %203 : vector<2x32xf32>
    %205 = vector.extract_strided_slice %198 {offsets = [0, 32], sizes = [2, 32], strides = [1, 1]} : vector<2x128xf32> to vector<2x32xf32>
    %206 = arith.negf %205 : vector<2x32xf32>
    %207 = math.exp %206 : vector<2x32xf32>
    %cst_42 = arith.constant 1.000000e+00 : f32
    %208 = vector.broadcast %cst_42 : f32 to vector<2x32xf32>
    %209 = arith.addf %208, %207 : vector<2x32xf32>
    %210 = arith.divf %208, %209 : vector<2x32xf32>
    %211 = vector.extract_strided_slice %198 {offsets = [0, 64], sizes = [2, 32], strides = [1, 1]} : vector<2x128xf32> to vector<2x32xf32>
    %212 = math.tanh %211 : vector<2x32xf32>
    %213 = vector.extract_strided_slice %198 {offsets = [0, 96], sizes = [2, 32], strides = [1, 1]} : vector<2x128xf32> to vector<2x32xf32>
    %214 = arith.negf %213 : vector<2x32xf32>
    %215 = math.exp %214 : vector<2x32xf32>
    %cst_43 = arith.constant 1.000000e+00 : f32
    %216 = vector.broadcast %cst_43 : f32 to vector<2x32xf32>
    %217 = arith.addf %216, %215 : vector<2x32xf32>
    %218 = arith.divf %216, %217 : vector<2x32xf32>
    %219 = arith.mulf %210, %159 : vector<2x32xf32>
    %220 = arith.mulf %204, %212 : vector<2x32xf32>
    %221 = arith.addf %219, %220 : vector<2x32xf32>
    %222 = math.tanh %221 : vector<2x32xf32>
    %223 = arith.mulf %218, %222 : vector<2x32xf32>
    %224 = arith.truncf %223 : vector<2x32xf32> to vector<2x32xbf16>
    %c6 = arith.constant 6 : index
    %c0_44 = arith.constant 0 : index
    %225 = vector.load %arg5[%c6, %c0_44] : memref<16x64xbf16, #tpu.memory_space<vmem>>, vector<2x32xbf16>
    tpu.vector_store %arg5[%c6, %c0_44], %224 {strides = array<i32>} : memref<16x64xbf16, #tpu.memory_space<vmem>>, vector<2x32xbf16>,
    %226 = vector.extract_strided_slice %5 {offsets = [8, 128], sizes = [2, 128], strides = [1, 1]} : vector<16x256xf32> to vector<2x128xf32>
    %227 = arith.truncf %192 : vector<2x32xf32> to vector<2x32xbf16>
    %cst_45 = arith.constant dense<0.000000e+00> : vector<2x128xf32>
    %228 = tpu.matmul %227, %7, %cst_45 {dimension_numbers = #tpu.dot_dimension_numbers<[1], [0], [0], [1], [0, 0, 1, 1], [], []>} : vector<2x32xbf16>, vector<32x128xbf16>, vector<2x128xf32> -> vector<2x128xf32>
    %229 = arith.addf %226, %228 : vector<2x128xf32>
    %230 = vector.extract_strided_slice %229 {offsets = [0, 0], sizes = [2, 32], strides = [1, 1]} : vector<2x128xf32> to vector<2x32xf32>
    %231 = arith.negf %230 : vector<2x32xf32>
    %232 = math.exp %231 : vector<2x32xf32>
    %cst_46 = arith.constant 1.000000e+00 : f32
    %233 = vector.broadcast %cst_46 : f32 to vector<2x32xf32>
    %234 = arith.addf %233, %232 : vector<2x32xf32>
    %235 = arith.divf %233, %234 : vector<2x32xf32>
    %236 = vector.extract_strided_slice %229 {offsets = [0, 32], sizes = [2, 32], strides = [1, 1]} : vector<2x128xf32> to vector<2x32xf32>
    %237 = arith.negf %236 : vector<2x32xf32>
    %238 = math.exp %237 : vector<2x32xf32>
    %cst_47 = arith.constant 1.000000e+00 : f32
    %239 = vector.broadcast %cst_47 : f32 to vector<2x32xf32>
    %240 = arith.addf %239, %238 : vector<2x32xf32>
    %241 = arith.divf %239, %240 : vector<2x32xf32>
    %242 = vector.extract_strided_slice %229 {offsets = [0, 64], sizes = [2, 32], strides = [1, 1]} : vector<2x128xf32> to vector<2x32xf32>
    %243 = math.tanh %242 : vector<2x32xf32>
    %244 = vector.extract_strided_slice %229 {offsets = [0, 96], sizes = [2, 32], strides = [1, 1]} : vector<2x128xf32> to vector<2x32xf32>
    %245 = arith.negf %244 : vector<2x32xf32>
    %246 = math.exp %245 : vector<2x32xf32>
    %cst_48 = arith.constant 1.000000e+00 : f32
    %247 = vector.broadcast %cst_48 : f32 to vector<2x32xf32>
    %248 = arith.addf %247, %246 : vector<2x32xf32>
    %249 = arith.divf %247, %248 : vector<2x32xf32>
    %250 = arith.mulf %241, %190 : vector<2x32xf32>
    %251 = arith.mulf %235, %243 : vector<2x32xf32>
    %252 = arith.addf %250, %251 : vector<2x32xf32>
    %253 = math.tanh %252 : vector<2x32xf32>
    %254 = arith.mulf %249, %253 : vector<2x32xf32>
    %255 = arith.truncf %254 : vector<2x32xf32> to vector<2x32xbf16>
    %c8 = arith.constant 8 : index
    %c32_49 = arith.constant 32 : index
    %256 = vector.load %arg5[%c8, %c32_49] : memref<16x64xbf16, #tpu.memory_space<vmem>>, vector<2x32xbf16>
    tpu.vector_store %arg5[%c8, %c32_49], %255 {strides = array<i32>} : memref<16x64xbf16, #tpu.memory_space<vmem>>, vector<2x32xbf16>,
    %257 = vector.extract_strided_slice %5 {offsets = [8, 0], sizes = [2, 128], strides = [1, 1]} : vector<16x256xf32> to vector<2x128xf32>
    %258 = arith.truncf %223 : vector<2x32xf32> to vector<2x32xbf16>
    %cst_50 = arith.constant dense<0.000000e+00> : vector<2x128xf32>
    %259 = tpu.matmul %258, %6, %cst_50 {dimension_numbers = #tpu.dot_dimension_numbers<[1], [0], [0], [1], [0, 0, 1, 1], [], []>} : vector<2x32xbf16>, vector<32x128xbf16>, vector<2x128xf32> -> vector<2x128xf32>
    %260 = arith.addf %257, %259 : vector<2x128xf32>
    %261 = vector.extract_strided_slice %260 {offsets = [0, 0], sizes = [2, 32], strides = [1, 1]} : vector<2x128xf32> to vector<2x32xf32>
    %262 = arith.negf %261 : vector<2x32xf32>
    %263 = math.exp %262 : vector<2x32xf32>
    %cst_51 = arith.constant 1.000000e+00 : f32
    %264 = vector.broadcast %cst_51 : f32 to vector<2x32xf32>
    %265 = arith.addf %264, %263 : vector<2x32xf32>
    %266 = arith.divf %264, %265 : vector<2x32xf32>
    %267 = vector.extract_strided_slice %260 {offsets = [0, 32], sizes = [2, 32], strides = [1, 1]} : vector<2x128xf32> to vector<2x32xf32>
    %268 = arith.negf %267 : vector<2x32xf32>
    %269 = math.exp %268 : vector<2x32xf32>
    %cst_52 = arith.constant 1.000000e+00 : f32
    %270 = vector.broadcast %cst_52 : f32 to vector<2x32xf32>
    %271 = arith.addf %270, %269 : vector<2x32xf32>
    %272 = arith.divf %270, %271 : vector<2x32xf32>
    %273 = vector.extract_strided_slice %260 {offsets = [0, 64], sizes = [2, 32], strides = [1, 1]} : vector<2x128xf32> to vector<2x32xf32>
    %274 = math.tanh %273 : vector<2x32xf32>
    %275 = vector.extract_strided_slice %260 {offsets = [0, 96], sizes = [2, 32], strides = [1, 1]} : vector<2x128xf32> to vector<2x32xf32>
    %276 = arith.negf %275 : vector<2x32xf32>
    %277 = math.exp %276 : vector<2x32xf32>
    %cst_53 = arith.constant 1.000000e+00 : f32
    %278 = vector.broadcast %cst_53 : f32 to vector<2x32xf32>
    %279 = arith.addf %278, %277 : vector<2x32xf32>
    %280 = arith.divf %278, %279 : vector<2x32xf32>
    %281 = arith.mulf %272, %221 : vector<2x32xf32>
    %282 = arith.mulf %266, %274 : vector<2x32xf32>
    %283 = arith.addf %281, %282 : vector<2x32xf32>
    %284 = math.tanh %283 : vector<2x32xf32>
    %285 = arith.mulf %280, %284 : vector<2x32xf32>
    %286 = arith.truncf %285 : vector<2x32xf32> to vector<2x32xbf16>
    %c8_54 = arith.constant 8 : index
    %c0_55 = arith.constant 0 : index
    %287 = vector.load %arg5[%c8_54, %c0_55] : memref<16x64xbf16, #tpu.memory_space<vmem>>, vector<2x32xbf16>
    tpu.vector_store %arg5[%c8_54, %c0_55], %286 {strides = array<i32>} : memref<16x64xbf16, #tpu.memory_space<vmem>>, vector<2x32xbf16>,
    %288 = vector.extract_strided_slice %5 {offsets = [6, 128], sizes = [2, 128], strides = [1, 1]} : vector<16x256xf32> to vector<2x128xf32>
    %289 = arith.truncf %254 : vector<2x32xf32> to vector<2x32xbf16>
    %cst_56 = arith.constant dense<0.000000e+00> : vector<2x128xf32>
    %290 = tpu.matmul %289, %7, %cst_56 {dimension_numbers = #tpu.dot_dimension_numbers<[1], [0], [0], [1], [0, 0, 1, 1], [], []>} : vector<2x32xbf16>, vector<32x128xbf16>, vector<2x128xf32> -> vector<2x128xf32>
    %291 = arith.addf %288, %290 : vector<2x128xf32>
    %292 = vector.extract_strided_slice %291 {offsets = [0, 0], sizes = [2, 32], strides = [1, 1]} : vector<2x128xf32> to vector<2x32xf32>
    %293 = arith.negf %292 : vector<2x32xf32>
    %294 = math.exp %293 : vector<2x32xf32>
    %cst_57 = arith.constant 1.000000e+00 : f32
    %295 = vector.broadcast %cst_57 : f32 to vector<2x32xf32>
    %296 = arith.addf %295, %294 : vector<2x32xf32>
    %297 = arith.divf %295, %296 : vector<2x32xf32>
    %298 = vector.extract_strided_slice %291 {offsets = [0, 32], sizes = [2, 32], strides = [1, 1]} : vector<2x128xf32> to vector<2x32xf32>
    %299 = arith.negf %298 : vector<2x32xf32>
    %300 = math.exp %299 : vector<2x32xf32>
    %cst_58 = arith.constant 1.000000e+00 : f32
    %301 = vector.broadcast %cst_58 : f32 to vector<2x32xf32>
    %302 = arith.addf %301, %300 : vector<2x32xf32>
    %303 = arith.divf %301, %302 : vector<2x32xf32>
    %304 = vector.extract_strided_slice %291 {offsets = [0, 64], sizes = [2, 32], strides = [1, 1]} : vector<2x128xf32> to vector<2x32xf32>
    %305 = math.tanh %304 : vector<2x32xf32>
    %306 = vector.extract_strided_slice %291 {offsets = [0, 96], sizes = [2, 32], strides = [1, 1]} : vector<2x128xf32> to vector<2x32xf32>
    %307 = arith.negf %306 : vector<2x32xf32>
    %308 = math.exp %307 : vector<2x32xf32>
    %cst_59 = arith.constant 1.000000e+00 : f32
    %309 = vector.broadcast %cst_59 : f32 to vector<2x32xf32>
    %310 = arith.addf %309, %308 : vector<2x32xf32>
    %311 = arith.divf %309, %310 : vector<2x32xf32>
    %312 = arith.mulf %303, %252 : vector<2x32xf32>
    %313 = arith.mulf %297, %305 : vector<2x32xf32>
    %314 = arith.addf %312, %313 : vector<2x32xf32>
    %315 = math.tanh %314 : vector<2x32xf32>
    %316 = arith.mulf %311, %315 : vector<2x32xf32>
    %317 = arith.truncf %316 : vector<2x32xf32> to vector<2x32xbf16>
    %c6_60 = arith.constant 6 : index
    %c32_61 = arith.constant 32 : index
    %318 = vector.load %arg5[%c6_60, %c32_61] : memref<16x64xbf16, #tpu.memory_space<vmem>>, vector<2x32xbf16>
    tpu.vector_store %arg5[%c6_60, %c32_61], %317 {strides = array<i32>} : memref<16x64xbf16, #tpu.memory_space<vmem>>, vector<2x32xbf16>,
    %319 = vector.extract_strided_slice %5 {offsets = [10, 0], sizes = [2, 128], strides = [1, 1]} : vector<16x256xf32> to vector<2x128xf32>
    %320 = arith.truncf %285 : vector<2x32xf32> to vector<2x32xbf16>
    %cst_62 = arith.constant dense<0.000000e+00> : vector<2x128xf32>
    %321 = tpu.matmul %320, %6, %cst_62 {dimension_numbers = #tpu.dot_dimension_numbers<[1], [0], [0], [1], [0, 0, 1, 1], [], []>} : vector<2x32xbf16>, vector<32x128xbf16>, vector<2x128xf32> -> vector<2x128xf32>
    %322 = arith.addf %319, %321 : vector<2x128xf32>
    %323 = vector.extract_strided_slice %322 {offsets = [0, 0], sizes = [2, 32], strides = [1, 1]} : vector<2x128xf32> to vector<2x32xf32>
    %324 = arith.negf %323 : vector<2x32xf32>
    %325 = math.exp %324 : vector<2x32xf32>
    %cst_63 = arith.constant 1.000000e+00 : f32
    %326 = vector.broadcast %cst_63 : f32 to vector<2x32xf32>
    %327 = arith.addf %326, %325 : vector<2x32xf32>
    %328 = arith.divf %326, %327 : vector<2x32xf32>
    %329 = vector.extract_strided_slice %322 {offsets = [0, 32], sizes = [2, 32], strides = [1, 1]} : vector<2x128xf32> to vector<2x32xf32>
    %330 = arith.negf %329 : vector<2x32xf32>
    %331 = math.exp %330 : vector<2x32xf32>
    %cst_64 = arith.constant 1.000000e+00 : f32
    %332 = vector.broadcast %cst_64 : f32 to vector<2x32xf32>
    %333 = arith.addf %332, %331 : vector<2x32xf32>
    %334 = arith.divf %332, %333 : vector<2x32xf32>
    %335 = vector.extract_strided_slice %322 {offsets = [0, 64], sizes = [2, 32], strides = [1, 1]} : vector<2x128xf32> to vector<2x32xf32>
    %336 = math.tanh %335 : vector<2x32xf32>
    %337 = vector.extract_strided_slice %322 {offsets = [0, 96], sizes = [2, 32], strides = [1, 1]} : vector<2x128xf32> to vector<2x32xf32>
    %338 = arith.negf %337 : vector<2x32xf32>
    %339 = math.exp %338 : vector<2x32xf32>
    %cst_65 = arith.constant 1.000000e+00 : f32
    %340 = vector.broadcast %cst_65 : f32 to vector<2x32xf32>
    %341 = arith.addf %340, %339 : vector<2x32xf32>
    %342 = arith.divf %340, %341 : vector<2x32xf32>
    %343 = arith.mulf %334, %283 : vector<2x32xf32>
    %344 = arith.mulf %328, %336 : vector<2x32xf32>
    %345 = arith.addf %343, %344 : vector<2x32xf32>
    %346 = math.tanh %345 : vector<2x32xf32>
    %347 = arith.mulf %342, %346 : vector<2x32xf32>
    %348 = arith.truncf %347 : vector<2x32xf32> to vector<2x32xbf16>
    %c10_66 = arith.constant 10 : index
    %c0_67 = arith.constant 0 : index
    %349 = vector.load %arg5[%c10_66, %c0_67] : memref<16x64xbf16, #tpu.memory_space<vmem>>, vector<2x32xbf16>
    tpu.vector_store %arg5[%c10_66, %c0_67], %348 {strides = array<i32>} : memref<16x64xbf16, #tpu.memory_space<vmem>>, vector<2x32xbf16>,
    %350 = vector.extract_strided_slice %5 {offsets = [4, 128], sizes = [2, 128], strides = [1, 1]} : vector<16x256xf32> to vector<2x128xf32>
    %351 = arith.truncf %316 : vector<2x32xf32> to vector<2x32xbf16>
    %cst_68 = arith.constant dense<0.000000e+00> : vector<2x128xf32>
    %352 = tpu.matmul %351, %7, %cst_68 {dimension_numbers = #tpu.dot_dimension_numbers<[1], [0], [0], [1], [0, 0, 1, 1], [], []>} : vector<2x32xbf16>, vector<32x128xbf16>, vector<2x128xf32> -> vector<2x128xf32>
    %353 = arith.addf %350, %352 : vector<2x128xf32>
    %354 = vector.extract_strided_slice %353 {offsets = [0, 0], sizes = [2, 32], strides = [1, 1]} : vector<2x128xf32> to vector<2x32xf32>
    %355 = arith.negf %354 : vector<2x32xf32>
    %356 = math.exp %355 : vector<2x32xf32>
    %cst_69 = arith.constant 1.000000e+00 : f32
    %357 = vector.broadcast %cst_69 : f32 to vector<2x32xf32>
    %358 = arith.addf %357, %356 : vector<2x32xf32>
    %359 = arith.divf %357, %358 : vector<2x32xf32>
    %360 = vector.extract_strided_slice %353 {offsets = [0, 32], sizes = [2, 32], strides = [1, 1]} : vector<2x128xf32> to vector<2x32xf32>
    %361 = arith.negf %360 : vector<2x32xf32>
    %362 = math.exp %361 : vector<2x32xf32>
    %cst_70 = arith.constant 1.000000e+00 : f32
    %363 = vector.broadcast %cst_70 : f32 to vector<2x32xf32>
    %364 = arith.addf %363, %362 : vector<2x32xf32>
    %365 = arith.divf %363, %364 : vector<2x32xf32>
    %366 = vector.extract_strided_slice %353 {offsets = [0, 64], sizes = [2, 32], strides = [1, 1]} : vector<2x128xf32> to vector<2x32xf32>
    %367 = math.tanh %366 : vector<2x32xf32>
    %368 = vector.extract_strided_slice %353 {offsets = [0, 96], sizes = [2, 32], strides = [1, 1]} : vector<2x128xf32> to vector<2x32xf32>
    %369 = arith.negf %368 : vector<2x32xf32>
    %370 = math.exp %369 : vector<2x32xf32>
    %cst_71 = arith.constant 1.000000e+00 : f32
    %371 = vector.broadcast %cst_71 : f32 to vector<2x32xf32>
    %372 = arith.addf %371, %370 : vector<2x32xf32>
    %373 = arith.divf %371, %372 : vector<2x32xf32>
    %374 = arith.mulf %365, %314 : vector<2x32xf32>
    %375 = arith.mulf %359, %367 : vector<2x32xf32>
    %376 = arith.addf %374, %375 : vector<2x32xf32>
    %377 = math.tanh %376 : vector<2x32xf32>
    %378 = arith.mulf %373, %377 : vector<2x32xf32>
    %379 = arith.truncf %378 : vector<2x32xf32> to vector<2x32xbf16>
    %c4_72 = arith.constant 4 : index
    %c32_73 = arith.constant 32 : index
    %380 = vector.load %arg5[%c4_72, %c32_73] : memref<16x64xbf16, #tpu.memory_space<vmem>>, vector<2x32xbf16>
    tpu.vector_store %arg5[%c4_72, %c32_73], %379 {strides = array<i32>} : memref<16x64xbf16, #tpu.memory_space<vmem>>, vector<2x32xbf16>,
    %381 = vector.extract_strided_slice %5 {offsets = [12, 0], sizes = [2, 128], strides = [1, 1]} : vector<16x256xf32> to vector<2x128xf32>
    %382 = arith.truncf %347 : vector<2x32xf32> to vector<2x32xbf16>
    %cst_74 = arith.constant dense<0.000000e+00> : vector<2x128xf32>
    %383 = tpu.matmul %382, %6, %cst_74 {dimension_numbers = #tpu.dot_dimension_numbers<[1], [0], [0], [1], [0, 0, 1, 1], [], []>} : vector<2x32xbf16>, vector<32x128xbf16>, vector<2x128xf32> -> vector<2x128xf32>
    %384 = arith.addf %381, %383 : vector<2x128xf32>
    %385 = vector.extract_strided_slice %384 {offsets = [0, 0], sizes = [2, 32], strides = [1, 1]} : vector<2x128xf32> to vector<2x32xf32>
    %386 = arith.negf %385 : vector<2x32xf32>
    %387 = math.exp %386 : vector<2x32xf32>
    %cst_75 = arith.constant 1.000000e+00 : f32
    %388 = vector.broadcast %cst_75 : f32 to vector<2x32xf32>
    %389 = arith.addf %388, %387 : vector<2x32xf32>
    %390 = arith.divf %388, %389 : vector<2x32xf32>
    %391 = vector.extract_strided_slice %384 {offsets = [0, 32], sizes = [2, 32], strides = [1, 1]} : vector<2x128xf32> to vector<2x32xf32>
    %392 = arith.negf %391 : vector<2x32xf32>
    %393 = math.exp %392 : vector<2x32xf32>
    %cst_76 = arith.constant 1.000000e+00 : f32
    %394 = vector.broadcast %cst_76 : f32 to vector<2x32xf32>
    %395 = arith.addf %394, %393 : vector<2x32xf32>
    %396 = arith.divf %394, %395 : vector<2x32xf32>
    %397 = vector.extract_strided_slice %384 {offsets = [0, 64], sizes = [2, 32], strides = [1, 1]} : vector<2x128xf32> to vector<2x32xf32>
    %398 = math.tanh %397 : vector<2x32xf32>
    %399 = vector.extract_strided_slice %384 {offsets = [0, 96], sizes = [2, 32], strides = [1, 1]} : vector<2x128xf32> to vector<2x32xf32>
    %400 = arith.negf %399 : vector<2x32xf32>
    %401 = math.exp %400 : vector<2x32xf32>
    %cst_77 = arith.constant 1.000000e+00 : f32
    %402 = vector.broadcast %cst_77 : f32 to vector<2x32xf32>
    %403 = arith.addf %402, %401 : vector<2x32xf32>
    %404 = arith.divf %402, %403 : vector<2x32xf32>
    %405 = arith.mulf %396, %345 : vector<2x32xf32>
    %406 = arith.mulf %390, %398 : vector<2x32xf32>
    %407 = arith.addf %405, %406 : vector<2x32xf32>
    %408 = math.tanh %407 : vector<2x32xf32>
    %409 = arith.mulf %404, %408 : vector<2x32xf32>
    %410 = arith.truncf %409 : vector<2x32xf32> to vector<2x32xbf16>
    %c12_78 = arith.constant 12 : index
    %c0_79 = arith.constant 0 : index
    %411 = vector.load %arg5[%c12_78, %c0_79] : memref<16x64xbf16, #tpu.memory_space<vmem>>, vector<2x32xbf16>
    tpu.vector_store %arg5[%c12_78, %c0_79], %410 {strides = array<i32>} : memref<16x64xbf16, #tpu.memory_space<vmem>>, vector<2x32xbf16>,
    %412 = vector.extract_strided_slice %5 {offsets = [2, 128], sizes = [2, 128], strides = [1, 1]} : vector<16x256xf32> to vector<2x128xf32>
    %413 = arith.truncf %378 : vector<2x32xf32> to vector<2x32xbf16>
    %cst_80 = arith.constant dense<0.000000e+00> : vector<2x128xf32>
    %414 = tpu.matmul %413, %7, %cst_80 {dimension_numbers = #tpu.dot_dimension_numbers<[1], [0], [0], [1], [0, 0, 1, 1], [], []>} : vector<2x32xbf16>, vector<32x128xbf16>, vector<2x128xf32> -> vector<2x128xf32>
    %415 = arith.addf %412, %414 : vector<2x128xf32>
    %416 = vector.extract_strided_slice %415 {offsets = [0, 0], sizes = [2, 32], strides = [1, 1]} : vector<2x128xf32> to vector<2x32xf32>
    %417 = arith.negf %416 : vector<2x32xf32>
    %418 = math.exp %417 : vector<2x32xf32>
    %cst_81 = arith.constant 1.000000e+00 : f32
    %419 = vector.broadcast %cst_81 : f32 to vector<2x32xf32>
    %420 = arith.addf %419, %418 : vector<2x32xf32>
    %421 = arith.divf %419, %420 : vector<2x32xf32>
    %422 = vector.extract_strided_slice %415 {offsets = [0, 32], sizes = [2, 32], strides = [1, 1]} : vector<2x128xf32> to vector<2x32xf32>
    %423 = arith.negf %422 : vector<2x32xf32>
    %424 = math.exp %423 : vector<2x32xf32>
    %cst_82 = arith.constant 1.000000e+00 : f32
    %425 = vector.broadcast %cst_82 : f32 to vector<2x32xf32>
    %426 = arith.addf %425, %424 : vector<2x32xf32>
    %427 = arith.divf %425, %426 : vector<2x32xf32>
    %428 = vector.extract_strided_slice %415 {offsets = [0, 64], sizes = [2, 32], strides = [1, 1]} : vector<2x128xf32> to vector<2x32xf32>
    %429 = math.tanh %428 : vector<2x32xf32>
    %430 = vector.extract_strided_slice %415 {offsets = [0, 96], sizes = [2, 32], strides = [1, 1]} : vector<2x128xf32> to vector<2x32xf32>
    %431 = arith.negf %430 : vector<2x32xf32>
    %432 = math.exp %431 : vector<2x32xf32>
    %cst_83 = arith.constant 1.000000e+00 : f32
    %433 = vector.broadcast %cst_83 : f32 to vector<2x32xf32>
    %434 = arith.addf %433, %432 : vector<2x32xf32>
    %435 = arith.divf %433, %434 : vector<2x32xf32>
    %436 = arith.mulf %427, %376 : vector<2x32xf32>
    %437 = arith.mulf %421, %429 : vector<2x32xf32>
    %438 = arith.addf %436, %437 : vector<2x32xf32>
    %439 = math.tanh %438 : vector<2x32xf32>
    %440 = arith.mulf %435, %439 : vector<2x32xf32>
    %441 = arith.truncf %440 : vector<2x32xf32> to vector<2x32xbf16>
    %c2_84 = arith.constant 2 : index
    %c32_85 = arith.constant 32 : index
    %442 = vector.load %arg5[%c2_84, %c32_85] : memref<16x64xbf16, #tpu.memory_space<vmem>>, vector<2x32xbf16>
    tpu.vector_store %arg5[%c2_84, %c32_85], %441 {strides = array<i32>} : memref<16x64xbf16, #tpu.memory_space<vmem>>, vector<2x32xbf16>,
    %443 = vector.extract_strided_slice %5 {offsets = [14, 0], sizes = [2, 128], strides = [1, 1]} : vector<16x256xf32> to vector<2x128xf32>
    %444 = arith.truncf %409 : vector<2x32xf32> to vector<2x32xbf16>
    %cst_86 = arith.constant dense<0.000000e+00> : vector<2x128xf32>
    %445 = tpu.matmul %444, %6, %cst_86 {dimension_numbers = #tpu.dot_dimension_numbers<[1], [0], [0], [1], [0, 0, 1, 1], [], []>} : vector<2x32xbf16>, vector<32x128xbf16>, vector<2x128xf32> -> vector<2x128xf32>
    %446 = arith.addf %443, %445 : vector<2x128xf32>
    %447 = vector.extract_strided_slice %446 {offsets = [0, 0], sizes = [2, 32], strides = [1, 1]} : vector<2x128xf32> to vector<2x32xf32>
    %448 = arith.negf %447 : vector<2x32xf32>
    %449 = math.exp %448 : vector<2x32xf32>
    %cst_87 = arith.constant 1.000000e+00 : f32
    %450 = vector.broadcast %cst_87 : f32 to vector<2x32xf32>
    %451 = arith.addf %450, %449 : vector<2x32xf32>
    %452 = arith.divf %450, %451 : vector<2x32xf32>
    %453 = vector.extract_strided_slice %446 {offsets = [0, 32], sizes = [2, 32], strides = [1, 1]} : vector<2x128xf32> to vector<2x32xf32>
    %454 = arith.negf %453 : vector<2x32xf32>
    %455 = math.exp %454 : vector<2x32xf32>
    %cst_88 = arith.constant 1.000000e+00 : f32
    %456 = vector.broadcast %cst_88 : f32 to vector<2x32xf32>
    %457 = arith.addf %456, %455 : vector<2x32xf32>
    %458 = arith.divf %456, %457 : vector<2x32xf32>
    %459 = vector.extract_strided_slice %446 {offsets = [0, 64], sizes = [2, 32], strides = [1, 1]} : vector<2x128xf32> to vector<2x32xf32>
    %460 = math.tanh %459 : vector<2x32xf32>
    %461 = vector.extract_strided_slice %446 {offsets = [0, 96], sizes = [2, 32], strides = [1, 1]} : vector<2x128xf32> to vector<2x32xf32>
    %462 = arith.negf %461 : vector<2x32xf32>
    %463 = math.exp %462 : vector<2x32xf32>
    %cst_89 = arith.constant 1.000000e+00 : f32
    %464 = vector.broadcast %cst_89 : f32 to vector<2x32xf32>
    %465 = arith.addf %464, %463 : vector<2x32xf32>
    %466 = arith.divf %464, %465 : vector<2x32xf32>
    %467 = arith.mulf %458, %407 : vector<2x32xf32>
    %468 = arith.mulf %452, %460 : vector<2x32xf32>
    %469 = arith.addf %467, %468 : vector<2x32xf32>
    %470 = math.tanh %469 : vector<2x32xf32>
    %471 = arith.mulf %466, %470 : vector<2x32xf32>
    %472 = arith.truncf %471 : vector<2x32xf32> to vector<2x32xbf16>
    %c14_90 = arith.constant 14 : index
    %c0_91 = arith.constant 0 : index
    %473 = vector.load %arg5[%c14_90, %c0_91] : memref<16x64xbf16, #tpu.memory_space<vmem>>, vector<2x32xbf16>
    tpu.vector_store %arg5[%c14_90, %c0_91], %472 {strides = array<i32>} : memref<16x64xbf16, #tpu.memory_space<vmem>>, vector<2x32xbf16>,
    %474 = vector.extract_strided_slice %5 {offsets = [0, 128], sizes = [2, 128], strides = [1, 1]} : vector<16x256xf32> to vector<2x128xf32>
    %475 = arith.truncf %440 : vector<2x32xf32> to vector<2x32xbf16>
    %cst_92 = arith.constant dense<0.000000e+00> : vector<2x128xf32>
    %476 = tpu.matmul %475, %7, %cst_92 {dimension_numbers = #tpu.dot_dimension_numbers<[1], [0], [0], [1], [0, 0, 1, 1], [], []>} : vector<2x32xbf16>, vector<32x128xbf16>, vector<2x128xf32> -> vector<2x128xf32>
    %477 = arith.addf %474, %476 : vector<2x128xf32>
    %478 = vector.extract_strided_slice %477 {offsets = [0, 0], sizes = [2, 32], strides = [1, 1]} : vector<2x128xf32> to vector<2x32xf32>
    %479 = arith.negf %478 : vector<2x32xf32>
    %480 = math.exp %479 : vector<2x32xf32>
    %cst_93 = arith.constant 1.000000e+00 : f32
    %481 = vector.broadcast %cst_93 : f32 to vector<2x32xf32>
    %482 = arith.addf %481, %480 : vector<2x32xf32>
    %483 = arith.divf %481, %482 : vector<2x32xf32>
    %484 = vector.extract_strided_slice %477 {offsets = [0, 32], sizes = [2, 32], strides = [1, 1]} : vector<2x128xf32> to vector<2x32xf32>
    %485 = arith.negf %484 : vector<2x32xf32>
    %486 = math.exp %485 : vector<2x32xf32>
    %cst_94 = arith.constant 1.000000e+00 : f32
    %487 = vector.broadcast %cst_94 : f32 to vector<2x32xf32>
    %488 = arith.addf %487, %486 : vector<2x32xf32>
    %489 = arith.divf %487, %488 : vector<2x32xf32>
    %490 = vector.extract_strided_slice %477 {offsets = [0, 64], sizes = [2, 32], strides = [1, 1]} : vector<2x128xf32> to vector<2x32xf32>
    %491 = math.tanh %490 : vector<2x32xf32>
    %492 = vector.extract_strided_slice %477 {offsets = [0, 96], sizes = [2, 32], strides = [1, 1]} : vector<2x128xf32> to vector<2x32xf32>
    %493 = arith.negf %492 : vector<2x32xf32>
    %494 = math.exp %493 : vector<2x32xf32>
    %cst_95 = arith.constant 1.000000e+00 : f32
    %495 = vector.broadcast %cst_95 : f32 to vector<2x32xf32>
    %496 = arith.addf %495, %494 : vector<2x32xf32>
    %497 = arith.divf %495, %496 : vector<2x32xf32>
    %498 = arith.mulf %489, %438 : vector<2x32xf32>
    %499 = arith.mulf %483, %491 : vector<2x32xf32>
    %500 = arith.addf %498, %499 : vector<2x32xf32>
    %501 = math.tanh %500 : vector<2x32xf32>
    %502 = arith.mulf %497, %501 : vector<2x32xf32>
    %503 = arith.truncf %502 : vector<2x32xf32> to vector<2x32xbf16>
    %c0_96 = arith.constant 0 : index
    %c32_97 = arith.constant 32 : index
    %504 = vector.load %arg5[%c0_96, %c32_97] : memref<16x64xbf16, #tpu.memory_space<vmem>>, vector<2x32xbf16>
    tpu.vector_store %arg5[%c0_96, %c32_97], %503 {strides = array<i32>} : memref<16x64xbf16, #tpu.memory_space<vmem>>, vector<2x32xbf16>,
    return
  }
}

module attributes {stable_mosaic.version = 11 : i64} {
  func.func @_bilstm_layer_kernel(%arg0: memref<16x16xbf16, #tpu.memory_space<vmem>>, %arg1: memref<16x256xbf16, #tpu.memory_space<vmem>>, %arg2: memref<32x128xbf16, #tpu.memory_space<vmem>>, %arg3: memref<32x128xbf16, #tpu.memory_space<vmem>>, %arg4: memref<1x256xf32, #tpu.memory_space<vmem>>, %arg5: memref<16x64xbf16, #tpu.memory_space<vmem>>) attributes {dimension_semantics = [], scalar_prefetch = 0 : i64, scratch_operands = 0 : i64, tpu.core_type = #tpu.core_type<tc>} {
    %c0 = arith.constant 0 : index
    %c0_0 = arith.constant 0 : index
    %0 = vector.load %arg0[%c0, %c0_0] : memref<16x16xbf16, #tpu.memory_space<vmem>>, vector<16x16xbf16>
    %c0_1 = arith.constant 0 : index
    %c0_2 = arith.constant 0 : index
    %1 = vector.load %arg1[%c0_1, %c0_2] : memref<16x256xbf16, #tpu.memory_space<vmem>>, vector<16x256xbf16>
    %cst = arith.constant dense<0.000000e+00> : vector<16x256xf32>
    %2 = tpu.matmul %0, %1, %cst {dimension_numbers = #tpu.dot_dimension_numbers<[1], [0], [0], [1], [0, 0, 1, 1], [], []>} : vector<16x16xbf16>, vector<16x256xbf16>, vector<16x256xf32> -> vector<16x256xf32>
    %c0_3 = arith.constant 0 : index
    %c0_4 = arith.constant 0 : index
    %3 = vector.load %arg4[%c0_3, %c0_4] : memref<1x256xf32, #tpu.memory_space<vmem>>, vector<1x256xf32>
    %4 = vector.broadcast %3 : vector<1x256xf32> to vector<16x256xf32>
    %5 = arith.addf %2, %4 : vector<16x256xf32>
    %c0_5 = arith.constant 0 : index
    %c0_6 = arith.constant 0 : index
    %6 = vector.load %arg2[%c0_5, %c0_6] : memref<32x128xbf16, #tpu.memory_space<vmem>>, vector<32x128xbf16>
    %c0_7 = arith.constant 0 : index
    %c0_8 = arith.constant 0 : index
    %7 = vector.load %arg3[%c0_7, %c0_8] : memref<32x128xbf16, #tpu.memory_space<vmem>>, vector<32x128xbf16>
    %cst_9 = arith.constant 0.000000e+00 : f32
    %8 = vector.broadcast %cst_9 : f32 to vector<2x32xf32>
    %9 = vector.extract_strided_slice %5 {offsets = [0, 0], sizes = [2, 128], strides = [1, 1]} : vector<16x256xf32> to vector<2x128xf32>
    %10 = arith.truncf %8 : vector<2x32xf32> to vector<2x32xbf16>
    %cst_10 = arith.constant dense<0.000000e+00> : vector<2x128xf32>
    %11 = tpu.matmul %10, %6, %cst_10 {dimension_numbers = #tpu.dot_dimension_numbers<[1], [0], [0], [1], [0, 0, 1, 1], [], []>} : vector<2x32xbf16>, vector<32x128xbf16>, vector<2x128xf32> -> vector<2x128xf32>
    %12 = arith.addf %9, %11 : vector<2x128xf32>
    %13 = vector.extract_strided_slice %12 {offsets = [0, 0], sizes = [2, 32], strides = [1, 1]} : vector<2x128xf32> to vector<2x32xf32>
    %14 = arith.negf %13 : vector<2x32xf32>
    %15 = math.exp %14 : vector<2x32xf32>
    %cst_11 = arith.constant 1.000000e+00 : f32
    %16 = vector.broadcast %cst_11 : f32 to vector<2x32xf32>
    %17 = arith.addf %16, %15 : vector<2x32xf32>
    %18 = arith.divf %16, %17 : vector<2x32xf32>
    %19 = vector.extract_strided_slice %12 {offsets = [0, 32], sizes = [2, 32], strides = [1, 1]} : vector<2x128xf32> to vector<2x32xf32>
    %20 = arith.negf %19 : vector<2x32xf32>
    %21 = math.exp %20 : vector<2x32xf32>
    %cst_12 = arith.constant 1.000000e+00 : f32
    %22 = vector.broadcast %cst_12 : f32 to vector<2x32xf32>
    %23 = arith.addf %22, %21 : vector<2x32xf32>
    %24 = arith.divf %22, %23 : vector<2x32xf32>
    %25 = vector.extract_strided_slice %12 {offsets = [0, 64], sizes = [2, 32], strides = [1, 1]} : vector<2x128xf32> to vector<2x32xf32>
    %26 = math.tanh %25 : vector<2x32xf32>
    %27 = vector.extract_strided_slice %12 {offsets = [0, 96], sizes = [2, 32], strides = [1, 1]} : vector<2x128xf32> to vector<2x32xf32>
    %28 = arith.negf %27 : vector<2x32xf32>
    %29 = math.exp %28 : vector<2x32xf32>
    %cst_13 = arith.constant 1.000000e+00 : f32
    %30 = vector.broadcast %cst_13 : f32 to vector<2x32xf32>
    %31 = arith.addf %30, %29 : vector<2x32xf32>
    %32 = arith.divf %30, %31 : vector<2x32xf32>
    %33 = arith.mulf %24, %8 : vector<2x32xf32>
    %34 = arith.mulf %18, %26 : vector<2x32xf32>
    %35 = arith.addf %33, %34 : vector<2x32xf32>
    %36 = math.tanh %35 : vector<2x32xf32>
    %37 = arith.mulf %32, %36 : vector<2x32xf32>
    %38 = arith.truncf %37 : vector<2x32xf32> to vector<2x32xbf16>
    %c0_14 = arith.constant 0 : index
    %c0_15 = arith.constant 0 : index
    %39 = vector.load %arg5[%c0_14, %c0_15] : memref<16x64xbf16, #tpu.memory_space<vmem>>, vector<2x32xbf16>
    tpu.vector_store %arg5[%c0_14, %c0_15], %38 {strides = array<i32>} : memref<16x64xbf16, #tpu.memory_space<vmem>>, vector<2x32xbf16>,
    %40 = vector.extract_strided_slice %5 {offsets = [14, 128], sizes = [2, 128], strides = [1, 1]} : vector<16x256xf32> to vector<2x128xf32>
    %41 = arith.truncf %8 : vector<2x32xf32> to vector<2x32xbf16>
    %cst_16 = arith.constant dense<0.000000e+00> : vector<2x128xf32>
    %42 = tpu.matmul %41, %7, %cst_16 {dimension_numbers = #tpu.dot_dimension_numbers<[1], [0], [0], [1], [0, 0, 1, 1], [], []>} : vector<2x32xbf16>, vector<32x128xbf16>, vector<2x128xf32> -> vector<2x128xf32>
    %43 = arith.addf %40, %42 : vector<2x128xf32>
    %44 = vector.extract_strided_slice %43 {offsets = [0, 0], sizes = [2, 32], strides = [1, 1]} : vector<2x128xf32> to vector<2x32xf32>
    %45 = arith.negf %44 : vector<2x32xf32>
    %46 = math.exp %45 : vector<2x32xf32>
    %cst_17 = arith.constant 1.000000e+00 : f32
    %47 = vector.broadcast %cst_17 : f32 to vector<2x32xf32>
    %48 = arith.addf %47, %46 : vector<2x32xf32>
    %49 = arith.divf %47, %48 : vector<2x32xf32>
    %50 = vector.extract_strided_slice %43 {offsets = [0, 32], sizes = [2, 32], strides = [1, 1]} : vector<2x128xf32> to vector<2x32xf32>
    %51 = arith.negf %50 : vector<2x32xf32>
    %52 = math.exp %51 : vector<2x32xf32>
    %cst_18 = arith.constant 1.000000e+00 : f32
    %53 = vector.broadcast %cst_18 : f32 to vector<2x32xf32>
    %54 = arith.addf %53, %52 : vector<2x32xf32>
    %55 = arith.divf %53, %54 : vector<2x32xf32>
    %56 = vector.extract_strided_slice %43 {offsets = [0, 64], sizes = [2, 32], strides = [1, 1]} : vector<2x128xf32> to vector<2x32xf32>
    %57 = math.tanh %56 : vector<2x32xf32>
    %58 = vector.extract_strided_slice %43 {offsets = [0, 96], sizes = [2, 32], strides = [1, 1]} : vector<2x128xf32> to vector<2x32xf32>
    %59 = arith.negf %58 : vector<2x32xf32>
    %60 = math.exp %59 : vector<2x32xf32>
    %cst_19 = arith.constant 1.000000e+00 : f32
    %61 = vector.broadcast %cst_19 : f32 to vector<2x32xf32>
    %62 = arith.addf %61, %60 : vector<2x32xf32>
    %63 = arith.divf %61, %62 : vector<2x32xf32>
    %64 = arith.mulf %55, %8 : vector<2x32xf32>
    %65 = arith.mulf %49, %57 : vector<2x32xf32>
    %66 = arith.addf %64, %65 : vector<2x32xf32>
    %67 = math.tanh %66 : vector<2x32xf32>
    %68 = arith.mulf %63, %67 : vector<2x32xf32>
    %69 = arith.truncf %68 : vector<2x32xf32> to vector<2x32xbf16>
    %c14 = arith.constant 14 : index
    %c32 = arith.constant 32 : index
    %70 = vector.load %arg5[%c14, %c32] : memref<16x64xbf16, #tpu.memory_space<vmem>>, vector<2x32xbf16>
    tpu.vector_store %arg5[%c14, %c32], %69 {strides = array<i32>} : memref<16x64xbf16, #tpu.memory_space<vmem>>, vector<2x32xbf16>,
    %71 = vector.extract_strided_slice %5 {offsets = [2, 0], sizes = [2, 128], strides = [1, 1]} : vector<16x256xf32> to vector<2x128xf32>
    %72 = arith.truncf %37 : vector<2x32xf32> to vector<2x32xbf16>
    %cst_20 = arith.constant dense<0.000000e+00> : vector<2x128xf32>
    %73 = tpu.matmul %72, %6, %cst_20 {dimension_numbers = #tpu.dot_dimension_numbers<[1], [0], [0], [1], [0, 0, 1, 1], [], []>} : vector<2x32xbf16>, vector<32x128xbf16>, vector<2x128xf32> -> vector<2x128xf32>
    %74 = arith.addf %71, %73 : vector<2x128xf32>
    %75 = vector.extract_strided_slice %74 {offsets = [0, 0], sizes = [2, 32], strides = [1, 1]} : vector<2x128xf32> to vector<2x32xf32>
    %76 = arith.negf %75 : vector<2x32xf32>
    %77 = math.exp %76 : vector<2x32xf32>
    %cst_21 = arith.constant 1.000000e+00 : f32
    %78 = vector.broadcast %cst_21 : f32 to vector<2x32xf32>
    %79 = arith.addf %78, %77 : vector<2x32xf32>
    %80 = arith.divf %78, %79 : vector<2x32xf32>
    %81 = vector.extract_strided_slice %74 {offsets = [0, 32], sizes = [2, 32], strides = [1, 1]} : vector<2x128xf32> to vector<2x32xf32>
    %82 = arith.negf %81 : vector<2x32xf32>
    %83 = math.exp %82 : vector<2x32xf32>
    %cst_22 = arith.constant 1.000000e+00 : f32
    %84 = vector.broadcast %cst_22 : f32 to vector<2x32xf32>
    %85 = arith.addf %84, %83 : vector<2x32xf32>
    %86 = arith.divf %84, %85 : vector<2x32xf32>
    %87 = vector.extract_strided_slice %74 {offsets = [0, 64], sizes = [2, 32], strides = [1, 1]} : vector<2x128xf32> to vector<2x32xf32>
    %88 = math.tanh %87 : vector<2x32xf32>
    %89 = vector.extract_strided_slice %74 {offsets = [0, 96], sizes = [2, 32], strides = [1, 1]} : vector<2x128xf32> to vector<2x32xf32>
    %90 = arith.negf %89 : vector<2x32xf32>
    %91 = math.exp %90 : vector<2x32xf32>
    %cst_23 = arith.constant 1.000000e+00 : f32
    %92 = vector.broadcast %cst_23 : f32 to vector<2x32xf32>
    %93 = arith.addf %92, %91 : vector<2x32xf32>
    %94 = arith.divf %92, %93 : vector<2x32xf32>
    %95 = arith.mulf %86, %35 : vector<2x32xf32>
    %96 = arith.mulf %80, %88 : vector<2x32xf32>
    %97 = arith.addf %95, %96 : vector<2x32xf32>
    %98 = math.tanh %97 : vector<2x32xf32>
    %99 = arith.mulf %94, %98 : vector<2x32xf32>
    %100 = arith.truncf %99 : vector<2x32xf32> to vector<2x32xbf16>
    %c2 = arith.constant 2 : index
    %c0_24 = arith.constant 0 : index
    %101 = vector.load %arg5[%c2, %c0_24] : memref<16x64xbf16, #tpu.memory_space<vmem>>, vector<2x32xbf16>
    tpu.vector_store %arg5[%c2, %c0_24], %100 {strides = array<i32>} : memref<16x64xbf16, #tpu.memory_space<vmem>>, vector<2x32xbf16>,
    %102 = vector.extract_strided_slice %5 {offsets = [12, 128], sizes = [2, 128], strides = [1, 1]} : vector<16x256xf32> to vector<2x128xf32>
    %103 = arith.truncf %68 : vector<2x32xf32> to vector<2x32xbf16>
    %cst_25 = arith.constant dense<0.000000e+00> : vector<2x128xf32>
    %104 = tpu.matmul %103, %7, %cst_25 {dimension_numbers = #tpu.dot_dimension_numbers<[1], [0], [0], [1], [0, 0, 1, 1], [], []>} : vector<2x32xbf16>, vector<32x128xbf16>, vector<2x128xf32> -> vector<2x128xf32>
    %105 = arith.addf %102, %104 : vector<2x128xf32>
    %106 = vector.extract_strided_slice %105 {offsets = [0, 0], sizes = [2, 32], strides = [1, 1]} : vector<2x128xf32> to vector<2x32xf32>
    %107 = arith.negf %106 : vector<2x32xf32>
    %108 = math.exp %107 : vector<2x32xf32>
    %cst_26 = arith.constant 1.000000e+00 : f32
    %109 = vector.broadcast %cst_26 : f32 to vector<2x32xf32>
    %110 = arith.addf %109, %108 : vector<2x32xf32>
    %111 = arith.divf %109, %110 : vector<2x32xf32>
    %112 = vector.extract_strided_slice %105 {offsets = [0, 32], sizes = [2, 32], strides = [1, 1]} : vector<2x128xf32> to vector<2x32xf32>
    %113 = arith.negf %112 : vector<2x32xf32>
    %114 = math.exp %113 : vector<2x32xf32>
    %cst_27 = arith.constant 1.000000e+00 : f32
    %115 = vector.broadcast %cst_27 : f32 to vector<2x32xf32>
    %116 = arith.addf %115, %114 : vector<2x32xf32>
    %117 = arith.divf %115, %116 : vector<2x32xf32>
    %118 = vector.extract_strided_slice %105 {offsets = [0, 64], sizes = [2, 32], strides = [1, 1]} : vector<2x128xf32> to vector<2x32xf32>
    %119 = math.tanh %118 : vector<2x32xf32>
    %120 = vector.extract_strided_slice %105 {offsets = [0, 96], sizes = [2, 32], strides = [1, 1]} : vector<2x128xf32> to vector<2x32xf32>
    %121 = arith.negf %120 : vector<2x32xf32>
    %122 = math.exp %121 : vector<2x32xf32>
    %cst_28 = arith.constant 1.000000e+00 : f32
    %123 = vector.broadcast %cst_28 : f32 to vector<2x32xf32>
    %124 = arith.addf %123, %122 : vector<2x32xf32>
    %125 = arith.divf %123, %124 : vector<2x32xf32>
    %126 = arith.mulf %117, %66 : vector<2x32xf32>
    %127 = arith.mulf %111, %119 : vector<2x32xf32>
    %128 = arith.addf %126, %127 : vector<2x32xf32>
    %129 = math.tanh %128 : vector<2x32xf32>
    %130 = arith.mulf %125, %129 : vector<2x32xf32>
    %131 = arith.truncf %130 : vector<2x32xf32> to vector<2x32xbf16>
    %c12 = arith.constant 12 : index
    %c32_29 = arith.constant 32 : index
    %132 = vector.load %arg5[%c12, %c32_29] : memref<16x64xbf16, #tpu.memory_space<vmem>>, vector<2x32xbf16>
    tpu.vector_store %arg5[%c12, %c32_29], %131 {strides = array<i32>} : memref<16x64xbf16, #tpu.memory_space<vmem>>, vector<2x32xbf16>,
    %133 = vector.extract_strided_slice %5 {offsets = [4, 0], sizes = [2, 128], strides = [1, 1]} : vector<16x256xf32> to vector<2x128xf32>
    %134 = arith.truncf %99 : vector<2x32xf32> to vector<2x32xbf16>
    %cst_30 = arith.constant dense<0.000000e+00> : vector<2x128xf32>
    %135 = tpu.matmul %134, %6, %cst_30 {dimension_numbers = #tpu.dot_dimension_numbers<[1], [0], [0], [1], [0, 0, 1, 1], [], []>} : vector<2x32xbf16>, vector<32x128xbf16>, vector<2x128xf32> -> vector<2x128xf32>
    %136 = arith.addf %133, %135 : vector<2x128xf32>
    %137 = vector.extract_strided_slice %136 {offsets = [0, 0], sizes = [2, 32], strides = [1, 1]} : vector<2x128xf32> to vector<2x32xf32>
    %138 = arith.negf %137 : vector<2x32xf32>
    %139 = math.exp %138 : vector<2x32xf32>
    %cst_31 = arith.constant 1.000000e+00 : f32
    %140 = vector.broadcast %cst_31 : f32 to vector<2x32xf32>
    %141 = arith.addf %140, %139 : vector<2x32xf32>
    %142 = arith.divf %140, %141 : vector<2x32xf32>
    %143 = vector.extract_strided_slice %136 {offsets = [0, 32], sizes = [2, 32], strides = [1, 1]} : vector<2x128xf32> to vector<2x32xf32>
    %144 = arith.negf %143 : vector<2x32xf32>
    %145 = math.exp %144 : vector<2x32xf32>
    %cst_32 = arith.constant 1.000000e+00 : f32
    %146 = vector.broadcast %cst_32 : f32 to vector<2x32xf32>
    %147 = arith.addf %146, %145 : vector<2x32xf32>
    %148 = arith.divf %146, %147 : vector<2x32xf32>
    %149 = vector.extract_strided_slice %136 {offsets = [0, 64], sizes = [2, 32], strides = [1, 1]} : vector<2x128xf32> to vector<2x32xf32>
    %150 = math.tanh %149 : vector<2x32xf32>
    %151 = vector.extract_strided_slice %136 {offsets = [0, 96], sizes = [2, 32], strides = [1, 1]} : vector<2x128xf32> to vector<2x32xf32>
    %152 = arith.negf %151 : vector<2x32xf32>
    %153 = math.exp %152 : vector<2x32xf32>
    %cst_33 = arith.constant 1.000000e+00 : f32
    %154 = vector.broadcast %cst_33 : f32 to vector<2x32xf32>
    %155 = arith.addf %154, %153 : vector<2x32xf32>
    %156 = arith.divf %154, %155 : vector<2x32xf32>
    %157 = arith.mulf %148, %97 : vector<2x32xf32>
    %158 = arith.mulf %142, %150 : vector<2x32xf32>
    %159 = arith.addf %157, %158 : vector<2x32xf32>
    %160 = math.tanh %159 : vector<2x32xf32>
    %161 = arith.mulf %156, %160 : vector<2x32xf32>
    %162 = arith.truncf %161 : vector<2x32xf32> to vector<2x32xbf16>
    %c4 = arith.constant 4 : index
    %c0_34 = arith.constant 0 : index
    %163 = vector.load %arg5[%c4, %c0_34] : memref<16x64xbf16, #tpu.memory_space<vmem>>, vector<2x32xbf16>
    tpu.vector_store %arg5[%c4, %c0_34], %162 {strides = array<i32>} : memref<16x64xbf16, #tpu.memory_space<vmem>>, vector<2x32xbf16>,
    %164 = vector.extract_strided_slice %5 {offsets = [10, 128], sizes = [2, 128], strides = [1, 1]} : vector<16x256xf32> to vector<2x128xf32>
    %165 = arith.truncf %130 : vector<2x32xf32> to vector<2x32xbf16>
    %cst_35 = arith.constant dense<0.000000e+00> : vector<2x128xf32>
    %166 = tpu.matmul %165, %7, %cst_35 {dimension_numbers = #tpu.dot_dimension_numbers<[1], [0], [0], [1], [0, 0, 1, 1], [], []>} : vector<2x32xbf16>, vector<32x128xbf16>, vector<2x128xf32> -> vector<2x128xf32>
    %167 = arith.addf %164, %166 : vector<2x128xf32>
    %168 = vector.extract_strided_slice %167 {offsets = [0, 0], sizes = [2, 32], strides = [1, 1]} : vector<2x128xf32> to vector<2x32xf32>
    %169 = arith.negf %168 : vector<2x32xf32>
    %170 = math.exp %169 : vector<2x32xf32>
    %cst_36 = arith.constant 1.000000e+00 : f32
    %171 = vector.broadcast %cst_36 : f32 to vector<2x32xf32>
    %172 = arith.addf %171, %170 : vector<2x32xf32>
    %173 = arith.divf %171, %172 : vector<2x32xf32>
    %174 = vector.extract_strided_slice %167 {offsets = [0, 32], sizes = [2, 32], strides = [1, 1]} : vector<2x128xf32> to vector<2x32xf32>
    %175 = arith.negf %174 : vector<2x32xf32>
    %176 = math.exp %175 : vector<2x32xf32>
    %cst_37 = arith.constant 1.000000e+00 : f32
    %177 = vector.broadcast %cst_37 : f32 to vector<2x32xf32>
    %178 = arith.addf %177, %176 : vector<2x32xf32>
    %179 = arith.divf %177, %178 : vector<2x32xf32>
    %180 = vector.extract_strided_slice %167 {offsets = [0, 64], sizes = [2, 32], strides = [1, 1]} : vector<2x128xf32> to vector<2x32xf32>
    %181 = math.tanh %180 : vector<2x32xf32>
    %182 = vector.extract_strided_slice %167 {offsets = [0, 96], sizes = [2, 32], strides = [1, 1]} : vector<2x128xf32> to vector<2x32xf32>
    %183 = arith.negf %182 : vector<2x32xf32>
    %184 = math.exp %183 : vector<2x32xf32>
    %cst_38 = arith.constant 1.000000e+00 : f32
    %185 = vector.broadcast %cst_38 : f32 to vector<2x32xf32>
    %186 = arith.addf %185, %184 : vector<2x32xf32>
    %187 = arith.divf %185, %186 : vector<2x32xf32>
    %188 = arith.mulf %179, %128 : vector<2x32xf32>
    %189 = arith.mulf %173, %181 : vector<2x32xf32>
    %190 = arith.addf %188, %189 : vector<2x32xf32>
    %191 = math.tanh %190 : vector<2x32xf32>
    %192 = arith.mulf %187, %191 : vector<2x32xf32>
    %193 = arith.truncf %192 : vector<2x32xf32> to vector<2x32xbf16>
    %c10 = arith.constant 10 : index
    %c32_39 = arith.constant 32 : index
    %194 = vector.load %arg5[%c10, %c32_39] : memref<16x64xbf16, #tpu.memory_space<vmem>>, vector<2x32xbf16>
    tpu.vector_store %arg5[%c10, %c32_39], %193 {strides = array<i32>} : memref<16x64xbf16, #tpu.memory_space<vmem>>, vector<2x32xbf16>,
    %195 = vector.extract_strided_slice %5 {offsets = [6, 0], sizes = [2, 128], strides = [1, 1]} : vector<16x256xf32> to vector<2x128xf32>
    %196 = arith.truncf %161 : vector<2x32xf32> to vector<2x32xbf16>
    %cst_40 = arith.constant dense<0.000000e+00> : vector<2x128xf32>
    %197 = tpu.matmul %196, %6, %cst_40 {dimension_numbers = #tpu.dot_dimension_numbers<[1], [0], [0], [1], [0, 0, 1, 1], [], []>} : vector<2x32xbf16>, vector<32x128xbf16>, vector<2x128xf32> -> vector<2x128xf32>
    %198 = arith.addf %195, %197 : vector<2x128xf32>
    %199 = vector.extract_strided_slice %198 {offsets = [0, 0], sizes = [2, 32], strides = [1, 1]} : vector<2x128xf32> to vector<2x32xf32>
    %200 = arith.negf %199 : vector<2x32xf32>
    %201 = math.exp %200 : vector<2x32xf32>
    %cst_41 = arith.constant 1.000000e+00 : f32
    %202 = vector.broadcast %cst_41 : f32 to vector<2x32xf32>
    %203 = arith.addf %202, %201 : vector<2x32xf32>
    %204 = arith.divf %202, %203 : vector<2x32xf32>
    %205 = vector.extract_strided_slice %198 {offsets = [0, 32], sizes = [2, 32], strides = [1, 1]} : vector<2x128xf32> to vector<2x32xf32>
    %206 = arith.negf %205 : vector<2x32xf32>
    %207 = math.exp %206 : vector<2x32xf32>
    %cst_42 = arith.constant 1.000000e+00 : f32
    %208 = vector.broadcast %cst_42 : f32 to vector<2x32xf32>
    %209 = arith.addf %208, %207 : vector<2x32xf32>
    %210 = arith.divf %208, %209 : vector<2x32xf32>
    %211 = vector.extract_strided_slice %198 {offsets = [0, 64], sizes = [2, 32], strides = [1, 1]} : vector<2x128xf32> to vector<2x32xf32>
    %212 = math.tanh %211 : vector<2x32xf32>
    %213 = vector.extract_strided_slice %198 {offsets = [0, 96], sizes = [2, 32], strides = [1, 1]} : vector<2x128xf32> to vector<2x32xf32>
    %214 = arith.negf %213 : vector<2x32xf32>
    %215 = math.exp %214 : vector<2x32xf32>
    %cst_43 = arith.constant 1.000000e+00 : f32
    %216 = vector.broadcast %cst_43 : f32 to vector<2x32xf32>
    %217 = arith.addf %216, %215 : vector<2x32xf32>
    %218 = arith.divf %216, %217 : vector<2x32xf32>
    %219 = arith.mulf %210, %159 : vector<2x32xf32>
    %220 = arith.mulf %204, %212 : vector<2x32xf32>
    %221 = arith.addf %219, %220 : vector<2x32xf32>
    %222 = math.tanh %221 : vector<2x32xf32>
    %223 = arith.mulf %218, %222 : vector<2x32xf32>
    %224 = arith.truncf %223 : vector<2x32xf32> to vector<2x32xbf16>
    %c6 = arith.constant 6 : index
    %c0_44 = arith.constant 0 : index
    %225 = vector.load %arg5[%c6, %c0_44] : memref<16x64xbf16, #tpu.memory_space<vmem>>, vector<2x32xbf16>
    tpu.vector_store %arg5[%c6, %c0_44], %224 {strides = array<i32>} : memref<16x64xbf16, #tpu.memory_space<vmem>>, vector<2x32xbf16>,
    %226 = vector.extract_strided_slice %5 {offsets = [8, 128], sizes = [2, 128], strides = [1, 1]} : vector<16x256xf32> to vector<2x128xf32>
    %227 = arith.truncf %192 : vector<2x32xf32> to vector<2x32xbf16>
    %cst_45 = arith.constant dense<0.000000e+00> : vector<2x128xf32>
    %228 = tpu.matmul %227, %7, %cst_45 {dimension_numbers = #tpu.dot_dimension_numbers<[1], [0], [0], [1], [0, 0, 1, 1], [], []>} : vector<2x32xbf16>, vector<32x128xbf16>, vector<2x128xf32> -> vector<2x128xf32>
    %229 = arith.addf %226, %228 : vector<2x128xf32>
    %230 = vector.extract_strided_slice %229 {offsets = [0, 0], sizes = [2, 32], strides = [1, 1]} : vector<2x128xf32> to vector<2x32xf32>
    %231 = arith.negf %230 : vector<2x32xf32>
    %232 = math.exp %231 : vector<2x32xf32>
    %cst_46 = arith.constant 1.000000e+00 : f32
    %233 = vector.broadcast %cst_46 : f32 to vector<2x32xf32>
    %234 = arith.addf %233, %232 : vector<2x32xf32>
    %235 = arith.divf %233, %234 : vector<2x32xf32>
    %236 = vector.extract_strided_slice %229 {offsets = [0, 32], sizes = [2, 32], strides = [1, 1]} : vector<2x128xf32> to vector<2x32xf32>
    %237 = arith.negf %236 : vector<2x32xf32>
    %238 = math.exp %237 : vector<2x32xf32>
    %cst_47 = arith.constant 1.000000e+00 : f32
    %239 = vector.broadcast %cst_47 : f32 to vector<2x32xf32>
    %240 = arith.addf %239, %238 : vector<2x32xf32>
    %241 = arith.divf %239, %240 : vector<2x32xf32>
    %242 = vector.extract_strided_slice %229 {offsets = [0, 64], sizes = [2, 32], strides = [1, 1]} : vector<2x128xf32> to vector<2x32xf32>
    %243 = math.tanh %242 : vector<2x32xf32>
    %244 = vector.extract_strided_slice %229 {offsets = [0, 96], sizes = [2, 32], strides = [1, 1]} : vector<2x128xf32> to vector<2x32xf32>
    %245 = arith.negf %244 : vector<2x32xf32>
    %246 = math.exp %245 : vector<2x32xf32>
    %cst_48 = arith.constant 1.000000e+00 : f32
    %247 = vector.broadcast %cst_48 : f32 to vector<2x32xf32>
    %248 = arith.addf %247, %246 : vector<2x32xf32>
    %249 = arith.divf %247, %248 : vector<2x32xf32>
    %250 = arith.mulf %241, %190 : vector<2x32xf32>
    %251 = arith.mulf %235, %243 : vector<2x32xf32>
    %252 = arith.addf %250, %251 : vector<2x32xf32>
    %253 = math.tanh %252 : vector<2x32xf32>
    %254 = arith.mulf %249, %253 : vector<2x32xf32>
    %255 = arith.truncf %254 : vector<2x32xf32> to vector<2x32xbf16>
    %c8 = arith.constant 8 : index
    %c32_49 = arith.constant 32 : index
    %256 = vector.load %arg5[%c8, %c32_49] : memref<16x64xbf16, #tpu.memory_space<vmem>>, vector<2x32xbf16>
    tpu.vector_store %arg5[%c8, %c32_49], %255 {strides = array<i32>} : memref<16x64xbf16, #tpu.memory_space<vmem>>, vector<2x32xbf16>,
    %257 = vector.extract_strided_slice %5 {offsets = [8, 0], sizes = [2, 128], strides = [1, 1]} : vector<16x256xf32> to vector<2x128xf32>
    %258 = arith.truncf %223 : vector<2x32xf32> to vector<2x32xbf16>
    %cst_50 = arith.constant dense<0.000000e+00> : vector<2x128xf32>
    %259 = tpu.matmul %258, %6, %cst_50 {dimension_numbers = #tpu.dot_dimension_numbers<[1], [0], [0], [1], [0, 0, 1, 1], [], []>} : vector<2x32xbf16>, vector<32x128xbf16>, vector<2x128xf32> -> vector<2x128xf32>
    %260 = arith.addf %257, %259 : vector<2x128xf32>
    %261 = vector.extract_strided_slice %260 {offsets = [0, 0], sizes = [2, 32], strides = [1, 1]} : vector<2x128xf32> to vector<2x32xf32>
    %262 = arith.negf %261 : vector<2x32xf32>
    %263 = math.exp %262 : vector<2x32xf32>
    %cst_51 = arith.constant 1.000000e+00 : f32
    %264 = vector.broadcast %cst_51 : f32 to vector<2x32xf32>
    %265 = arith.addf %264, %263 : vector<2x32xf32>
    %266 = arith.divf %264, %265 : vector<2x32xf32>
    %267 = vector.extract_strided_slice %260 {offsets = [0, 32], sizes = [2, 32], strides = [1, 1]} : vector<2x128xf32> to vector<2x32xf32>
    %268 = arith.negf %267 : vector<2x32xf32>
    %269 = math.exp %268 : vector<2x32xf32>
    %cst_52 = arith.constant 1.000000e+00 : f32
    %270 = vector.broadcast %cst_52 : f32 to vector<2x32xf32>
    %271 = arith.addf %270, %269 : vector<2x32xf32>
    %272 = arith.divf %270, %271 : vector<2x32xf32>
    %273 = vector.extract_strided_slice %260 {offsets = [0, 64], sizes = [2, 32], strides = [1, 1]} : vector<2x128xf32> to vector<2x32xf32>
    %274 = math.tanh %273 : vector<2x32xf32>
    %275 = vector.extract_strided_slice %260 {offsets = [0, 96], sizes = [2, 32], strides = [1, 1]} : vector<2x128xf32> to vector<2x32xf32>
    %276 = arith.negf %275 : vector<2x32xf32>
    %277 = math.exp %276 : vector<2x32xf32>
    %cst_53 = arith.constant 1.000000e+00 : f32
    %278 = vector.broadcast %cst_53 : f32 to vector<2x32xf32>
    %279 = arith.addf %278, %277 : vector<2x32xf32>
    %280 = arith.divf %278, %279 : vector<2x32xf32>
    %281 = arith.mulf %272, %221 : vector<2x32xf32>
    %282 = arith.mulf %266, %274 : vector<2x32xf32>
    %283 = arith.addf %281, %282 : vector<2x32xf32>
    %284 = math.tanh %283 : vector<2x32xf32>
    %285 = arith.mulf %280, %284 : vector<2x32xf32>
    %286 = arith.truncf %285 : vector<2x32xf32> to vector<2x32xbf16>
    %c8_54 = arith.constant 8 : index
    %c0_55 = arith.constant 0 : index
    %287 = vector.load %arg5[%c8_54, %c0_55] : memref<16x64xbf16, #tpu.memory_space<vmem>>, vector<2x32xbf16>
    tpu.vector_store %arg5[%c8_54, %c0_55], %286 {strides = array<i32>} : memref<16x64xbf16, #tpu.memory_space<vmem>>, vector<2x32xbf16>,
    %288 = vector.extract_strided_slice %5 {offsets = [6, 128], sizes = [2, 128], strides = [1, 1]} : vector<16x256xf32> to vector<2x128xf32>
    %289 = arith.truncf %254 : vector<2x32xf32> to vector<2x32xbf16>
    %cst_56 = arith.constant dense<0.000000e+00> : vector<2x128xf32>
    %290 = tpu.matmul %289, %7, %cst_56 {dimension_numbers = #tpu.dot_dimension_numbers<[1], [0], [0], [1], [0, 0, 1, 1], [], []>} : vector<2x32xbf16>, vector<32x128xbf16>, vector<2x128xf32> -> vector<2x128xf32>
    %291 = arith.addf %288, %290 : vector<2x128xf32>
    %292 = vector.extract_strided_slice %291 {offsets = [0, 0], sizes = [2, 32], strides = [1, 1]} : vector<2x128xf32> to vector<2x32xf32>
    %293 = arith.negf %292 : vector<2x32xf32>
    %294 = math.exp %293 : vector<2x32xf32>
    %cst_57 = arith.constant 1.000000e+00 : f32
    %295 = vector.broadcast %cst_57 : f32 to vector<2x32xf32>
    %296 = arith.addf %295, %294 : vector<2x32xf32>
    %297 = arith.divf %295, %296 : vector<2x32xf32>
    %298 = vector.extract_strided_slice %291 {offsets = [0, 32], sizes = [2, 32], strides = [1, 1]} : vector<2x128xf32> to vector<2x32xf32>
    %299 = arith.negf %298 : vector<2x32xf32>
    %300 = math.exp %299 : vector<2x32xf32>
    %cst_58 = arith.constant 1.000000e+00 : f32
    %301 = vector.broadcast %cst_58 : f32 to vector<2x32xf32>
    %302 = arith.addf %301, %300 : vector<2x32xf32>
    %303 = arith.divf %301, %302 : vector<2x32xf32>
    %304 = vector.extract_strided_slice %291 {offsets = [0, 64], sizes = [2, 32], strides = [1, 1]} : vector<2x128xf32> to vector<2x32xf32>
    %305 = math.tanh %304 : vector<2x32xf32>
    %306 = vector.extract_strided_slice %291 {offsets = [0, 96], sizes = [2, 32], strides = [1, 1]} : vector<2x128xf32> to vector<2x32xf32>
    %307 = arith.negf %306 : vector<2x32xf32>
    %308 = math.exp %307 : vector<2x32xf32>
    %cst_59 = arith.constant 1.000000e+00 : f32
    %309 = vector.broadcast %cst_59 : f32 to vector<2x32xf32>
    %310 = arith.addf %309, %308 : vector<2x32xf32>
    %311 = arith.divf %309, %310 : vector<2x32xf32>
    %312 = arith.mulf %303, %252 : vector<2x32xf32>
    %313 = arith.mulf %297, %305 : vector<2x32xf32>
    %314 = arith.addf %312, %313 : vector<2x32xf32>
    %315 = math.tanh %314 : vector<2x32xf32>
    %316 = arith.mulf %311, %315 : vector<2x32xf32>
    %317 = arith.truncf %316 : vector<2x32xf32> to vector<2x32xbf16>
    %c6_60 = arith.constant 6 : index
    %c32_61 = arith.constant 32 : index
    %318 = vector.load %arg5[%c6_60, %c32_61] : memref<16x64xbf16, #tpu.memory_space<vmem>>, vector<2x32xbf16>
    tpu.vector_store %arg5[%c6_60, %c32_61], %317 {strides = array<i32>} : memref<16x64xbf16, #tpu.memory_space<vmem>>, vector<2x32xbf16>,
    %319 = vector.extract_strided_slice %5 {offsets = [10, 0], sizes = [2, 128], strides = [1, 1]} : vector<16x256xf32> to vector<2x128xf32>
    %320 = arith.truncf %285 : vector<2x32xf32> to vector<2x32xbf16>
    %cst_62 = arith.constant dense<0.000000e+00> : vector<2x128xf32>
    %321 = tpu.matmul %320, %6, %cst_62 {dimension_numbers = #tpu.dot_dimension_numbers<[1], [0], [0], [1], [0, 0, 1, 1], [], []>} : vector<2x32xbf16>, vector<32x128xbf16>, vector<2x128xf32> -> vector<2x128xf32>
    %322 = arith.addf %319, %321 : vector<2x128xf32>
    %323 = vector.extract_strided_slice %322 {offsets = [0, 0], sizes = [2, 32], strides = [1, 1]} : vector<2x128xf32> to vector<2x32xf32>
    %324 = arith.negf %323 : vector<2x32xf32>
    %325 = math.exp %324 : vector<2x32xf32>
    %cst_63 = arith.constant 1.000000e+00 : f32
    %326 = vector.broadcast %cst_63 : f32 to vector<2x32xf32>
    %327 = arith.addf %326, %325 : vector<2x32xf32>
    %328 = arith.divf %326, %327 : vector<2x32xf32>
    %329 = vector.extract_strided_slice %322 {offsets = [0, 32], sizes = [2, 32], strides = [1, 1]} : vector<2x128xf32> to vector<2x32xf32>
    %330 = arith.negf %329 : vector<2x32xf32>
    %331 = math.exp %330 : vector<2x32xf32>
    %cst_64 = arith.constant 1.000000e+00 : f32
    %332 = vector.broadcast %cst_64 : f32 to vector<2x32xf32>
    %333 = arith.addf %332, %331 : vector<2x32xf32>
    %334 = arith.divf %332, %333 : vector<2x32xf32>
    %335 = vector.extract_strided_slice %322 {offsets = [0, 64], sizes = [2, 32], strides = [1, 1]} : vector<2x128xf32> to vector<2x32xf32>
    %336 = math.tanh %335 : vector<2x32xf32>
    %337 = vector.extract_strided_slice %322 {offsets = [0, 96], sizes = [2, 32], strides = [1, 1]} : vector<2x128xf32> to vector<2x32xf32>
    %338 = arith.negf %337 : vector<2x32xf32>
    %339 = math.exp %338 : vector<2x32xf32>
    %cst_65 = arith.constant 1.000000e+00 : f32
    %340 = vector.broadcast %cst_65 : f32 to vector<2x32xf32>
    %341 = arith.addf %340, %339 : vector<2x32xf32>
    %342 = arith.divf %340, %341 : vector<2x32xf32>
    %343 = arith.mulf %334, %283 : vector<2x32xf32>
    %344 = arith.mulf %328, %336 : vector<2x32xf32>
    %345 = arith.addf %343, %344 : vector<2x32xf32>
    %346 = math.tanh %345 : vector<2x32xf32>
    %347 = arith.mulf %342, %346 : vector<2x32xf32>
    %348 = arith.truncf %347 : vector<2x32xf32> to vector<2x32xbf16>
    %c10_66 = arith.constant 10 : index
    %c0_67 = arith.constant 0 : index
    %349 = vector.load %arg5[%c10_66, %c0_67] : memref<16x64xbf16, #tpu.memory_space<vmem>>, vector<2x32xbf16>
    tpu.vector_store %arg5[%c10_66, %c0_67], %348 {strides = array<i32>} : memref<16x64xbf16, #tpu.memory_space<vmem>>, vector<2x32xbf16>,
    %350 = vector.extract_strided_slice %5 {offsets = [4, 128], sizes = [2, 128], strides = [1, 1]} : vector<16x256xf32> to vector<2x128xf32>
    %351 = arith.truncf %316 : vector<2x32xf32> to vector<2x32xbf16>
    %cst_68 = arith.constant dense<0.000000e+00> : vector<2x128xf32>
    %352 = tpu.matmul %351, %7, %cst_68 {dimension_numbers = #tpu.dot_dimension_numbers<[1], [0], [0], [1], [0, 0, 1, 1], [], []>} : vector<2x32xbf16>, vector<32x128xbf16>, vector<2x128xf32> -> vector<2x128xf32>
    %353 = arith.addf %350, %352 : vector<2x128xf32>
    %354 = vector.extract_strided_slice %353 {offsets = [0, 0], sizes = [2, 32], strides = [1, 1]} : vector<2x128xf32> to vector<2x32xf32>
    %355 = arith.negf %354 : vector<2x32xf32>
    %356 = math.exp %355 : vector<2x32xf32>
    %cst_69 = arith.constant 1.000000e+00 : f32
    %357 = vector.broadcast %cst_69 : f32 to vector<2x32xf32>
    %358 = arith.addf %357, %356 : vector<2x32xf32>
    %359 = arith.divf %357, %358 : vector<2x32xf32>
    %360 = vector.extract_strided_slice %353 {offsets = [0, 32], sizes = [2, 32], strides = [1, 1]} : vector<2x128xf32> to vector<2x32xf32>
    %361 = arith.negf %360 : vector<2x32xf32>
    %362 = math.exp %361 : vector<2x32xf32>
    %cst_70 = arith.constant 1.000000e+00 : f32
    %363 = vector.broadcast %cst_70 : f32 to vector<2x32xf32>
    %364 = arith.addf %363, %362 : vector<2x32xf32>
    %365 = arith.divf %363, %364 : vector<2x32xf32>
    %366 = vector.extract_strided_slice %353 {offsets = [0, 64], sizes = [2, 32], strides = [1, 1]} : vector<2x128xf32> to vector<2x32xf32>
    %367 = math.tanh %366 : vector<2x32xf32>
    %368 = vector.extract_strided_slice %353 {offsets = [0, 96], sizes = [2, 32], strides = [1, 1]} : vector<2x128xf32> to vector<2x32xf32>
    %369 = arith.negf %368 : vector<2x32xf32>
    %370 = math.exp %369 : vector<2x32xf32>
    %cst_71 = arith.constant 1.000000e+00 : f32
    %371 = vector.broadcast %cst_71 : f32 to vector<2x32xf32>
    %372 = arith.addf %371, %370 : vector<2x32xf32>
    %373 = arith.divf %371, %372 : vector<2x32xf32>
    %374 = arith.mulf %365, %314 : vector<2x32xf32>
    %375 = arith.mulf %359, %367 : vector<2x32xf32>
    %376 = arith.addf %374, %375 : vector<2x32xf32>
    %377 = math.tanh %376 : vector<2x32xf32>
    %378 = arith.mulf %373, %377 : vector<2x32xf32>
    %379 = arith.truncf %378 : vector<2x32xf32> to vector<2x32xbf16>
    %c4_72 = arith.constant 4 : index
    %c32_73 = arith.constant 32 : index
    %380 = vector.load %arg5[%c4_72, %c32_73] : memref<16x64xbf16, #tpu.memory_space<vmem>>, vector<2x32xbf16>
    tpu.vector_store %arg5[%c4_72, %c32_73], %379 {strides = array<i32>} : memref<16x64xbf16, #tpu.memory_space<vmem>>, vector<2x32xbf16>,
    %381 = vector.extract_strided_slice %5 {offsets = [12, 0], sizes = [2, 128], strides = [1, 1]} : vector<16x256xf32> to vector<2x128xf32>
    %382 = arith.truncf %347 : vector<2x32xf32> to vector<2x32xbf16>
    %cst_74 = arith.constant dense<0.000000e+00> : vector<2x128xf32>
    %383 = tpu.matmul %382, %6, %cst_74 {dimension_numbers = #tpu.dot_dimension_numbers<[1], [0], [0], [1], [0, 0, 1, 1], [], []>} : vector<2x32xbf16>, vector<32x128xbf16>, vector<2x128xf32> -> vector<2x128xf32>
    %384 = arith.addf %381, %383 : vector<2x128xf32>
    %385 = vector.extract_strided_slice %384 {offsets = [0, 0], sizes = [2, 32], strides = [1, 1]} : vector<2x128xf32> to vector<2x32xf32>
    %386 = arith.negf %385 : vector<2x32xf32>
    %387 = math.exp %386 : vector<2x32xf32>
    %cst_75 = arith.constant 1.000000e+00 : f32
    %388 = vector.broadcast %cst_75 : f32 to vector<2x32xf32>
    %389 = arith.addf %388, %387 : vector<2x32xf32>
    %390 = arith.divf %388, %389 : vector<2x32xf32>
    %391 = vector.extract_strided_slice %384 {offsets = [0, 32], sizes = [2, 32], strides = [1, 1]} : vector<2x128xf32> to vector<2x32xf32>
    %392 = arith.negf %391 : vector<2x32xf32>
    %393 = math.exp %392 : vector<2x32xf32>
    %cst_76 = arith.constant 1.000000e+00 : f32
    %394 = vector.broadcast %cst_76 : f32 to vector<2x32xf32>
    %395 = arith.addf %394, %393 : vector<2x32xf32>
    %396 = arith.divf %394, %395 : vector<2x32xf32>
    %397 = vector.extract_strided_slice %384 {offsets = [0, 64], sizes = [2, 32], strides = [1, 1]} : vector<2x128xf32> to vector<2x32xf32>
    %398 = math.tanh %397 : vector<2x32xf32>
    %399 = vector.extract_strided_slice %384 {offsets = [0, 96], sizes = [2, 32], strides = [1, 1]} : vector<2x128xf32> to vector<2x32xf32>
    %400 = arith.negf %399 : vector<2x32xf32>
    %401 = math.exp %400 : vector<2x32xf32>
    %cst_77 = arith.constant 1.000000e+00 : f32
    %402 = vector.broadcast %cst_77 : f32 to vector<2x32xf32>
    %403 = arith.addf %402, %401 : vector<2x32xf32>
    %404 = arith.divf %402, %403 : vector<2x32xf32>
    %405 = arith.mulf %396, %345 : vector<2x32xf32>
    %406 = arith.mulf %390, %398 : vector<2x32xf32>
    %407 = arith.addf %405, %406 : vector<2x32xf32>
    %408 = math.tanh %407 : vector<2x32xf32>
    %409 = arith.mulf %404, %408 : vector<2x32xf32>
    %410 = arith.truncf %409 : vector<2x32xf32> to vector<2x32xbf16>
    %c12_78 = arith.constant 12 : index
    %c0_79 = arith.constant 0 : index
    %411 = vector.load %arg5[%c12_78, %c0_79] : memref<16x64xbf16, #tpu.memory_space<vmem>>, vector<2x32xbf16>
    tpu.vector_store %arg5[%c12_78, %c0_79], %410 {strides = array<i32>} : memref<16x64xbf16, #tpu.memory_space<vmem>>, vector<2x32xbf16>,
    %412 = vector.extract_strided_slice %5 {offsets = [2, 128], sizes = [2, 128], strides = [1, 1]} : vector<16x256xf32> to vector<2x128xf32>
    %413 = arith.truncf %378 : vector<2x32xf32> to vector<2x32xbf16>
    %cst_80 = arith.constant dense<0.000000e+00> : vector<2x128xf32>
    %414 = tpu.matmul %413, %7, %cst_80 {dimension_numbers = #tpu.dot_dimension_numbers<[1], [0], [0], [1], [0, 0, 1, 1], [], []>} : vector<2x32xbf16>, vector<32x128xbf16>, vector<2x128xf32> -> vector<2x128xf32>
    %415 = arith.addf %412, %414 : vector<2x128xf32>
    %416 = vector.extract_strided_slice %415 {offsets = [0, 0], sizes = [2, 32], strides = [1, 1]} : vector<2x128xf32> to vector<2x32xf32>
    %417 = arith.negf %416 : vector<2x32xf32>
    %418 = math.exp %417 : vector<2x32xf32>
    %cst_81 = arith.constant 1.000000e+00 : f32
    %419 = vector.broadcast %cst_81 : f32 to vector<2x32xf32>
    %420 = arith.addf %419, %418 : vector<2x32xf32>
    %421 = arith.divf %419, %420 : vector<2x32xf32>
    %422 = vector.extract_strided_slice %415 {offsets = [0, 32], sizes = [2, 32], strides = [1, 1]} : vector<2x128xf32> to vector<2x32xf32>
    %423 = arith.negf %422 : vector<2x32xf32>
    %424 = math.exp %423 : vector<2x32xf32>
    %cst_82 = arith.constant 1.000000e+00 : f32
    %425 = vector.broadcast %cst_82 : f32 to vector<2x32xf32>
    %426 = arith.addf %425, %424 : vector<2x32xf32>
    %427 = arith.divf %425, %426 : vector<2x32xf32>
    %428 = vector.extract_strided_slice %415 {offsets = [0, 64], sizes = [2, 32], strides = [1, 1]} : vector<2x128xf32> to vector<2x32xf32>
    %429 = math.tanh %428 : vector<2x32xf32>
    %430 = vector.extract_strided_slice %415 {offsets = [0, 96], sizes = [2, 32], strides = [1, 1]} : vector<2x128xf32> to vector<2x32xf32>
    %431 = arith.negf %430 : vector<2x32xf32>
    %432 = math.exp %431 : vector<2x32xf32>
    %cst_83 = arith.constant 1.000000e+00 : f32
    %433 = vector.broadcast %cst_83 : f32 to vector<2x32xf32>
    %434 = arith.addf %433, %432 : vector<2x32xf32>
    %435 = arith.divf %433, %434 : vector<2x32xf32>
    %436 = arith.mulf %427, %376 : vector<2x32xf32>
    %437 = arith.mulf %421, %429 : vector<2x32xf32>
    %438 = arith.addf %436, %437 : vector<2x32xf32>
    %439 = math.tanh %438 : vector<2x32xf32>
    %440 = arith.mulf %435, %439 : vector<2x32xf32>
    %441 = arith.truncf %440 : vector<2x32xf32> to vector<2x32xbf16>
    %c2_84 = arith.constant 2 : index
    %c32_85 = arith.constant 32 : index
    %442 = vector.load %arg5[%c2_84, %c32_85] : memref<16x64xbf16, #tpu.memory_space<vmem>>, vector<2x32xbf16>
    tpu.vector_store %arg5[%c2_84, %c32_85], %441 {strides = array<i32>} : memref<16x64xbf16, #tpu.memory_space<vmem>>, vector<2x32xbf16>,
    %443 = vector.extract_strided_slice %5 {offsets = [14, 0], sizes = [2, 128], strides = [1, 1]} : vector<16x256xf32> to vector<2x128xf32>
    %444 = arith.truncf %409 : vector<2x32xf32> to vector<2x32xbf16>
    %cst_86 = arith.constant dense<0.000000e+00> : vector<2x128xf32>
    %445 = tpu.matmul %444, %6, %cst_86 {dimension_numbers = #tpu.dot_dimension_numbers<[1], [0], [0], [1], [0, 0, 1, 1], [], []>} : vector<2x32xbf16>, vector<32x128xbf16>, vector<2x128xf32> -> vector<2x128xf32>
    %446 = arith.addf %443, %445 : vector<2x128xf32>
    %447 = vector.extract_strided_slice %446 {offsets = [0, 0], sizes = [2, 32], strides = [1, 1]} : vector<2x128xf32> to vector<2x32xf32>
    %448 = arith.negf %447 : vector<2x32xf32>
    %449 = math.exp %448 : vector<2x32xf32>
    %cst_87 = arith.constant 1.000000e+00 : f32
    %450 = vector.broadcast %cst_87 : f32 to vector<2x32xf32>
    %451 = arith.addf %450, %449 : vector<2x32xf32>
    %452 = arith.divf %450, %451 : vector<2x32xf32>
    %453 = vector.extract_strided_slice %446 {offsets = [0, 32], sizes = [2, 32], strides = [1, 1]} : vector<2x128xf32> to vector<2x32xf32>
    %454 = arith.negf %453 : vector<2x32xf32>
    %455 = math.exp %454 : vector<2x32xf32>
    %cst_88 = arith.constant 1.000000e+00 : f32
    %456 = vector.broadcast %cst_88 : f32 to vector<2x32xf32>
    %457 = arith.addf %456, %455 : vector<2x32xf32>
    %458 = arith.divf %456, %457 : vector<2x32xf32>
    %459 = vector.extract_strided_slice %446 {offsets = [0, 64], sizes = [2, 32], strides = [1, 1]} : vector<2x128xf32> to vector<2x32xf32>
    %460 = math.tanh %459 : vector<2x32xf32>
    %461 = vector.extract_strided_slice %446 {offsets = [0, 96], sizes = [2, 32], strides = [1, 1]} : vector<2x128xf32> to vector<2x32xf32>
    %462 = arith.negf %461 : vector<2x32xf32>
    %463 = math.exp %462 : vector<2x32xf32>
    %cst_89 = arith.constant 1.000000e+00 : f32
    %464 = vector.broadcast %cst_89 : f32 to vector<2x32xf32>
    %465 = arith.addf %464, %463 : vector<2x32xf32>
    %466 = arith.divf %464, %465 : vector<2x32xf32>
    %467 = arith.mulf %458, %407 : vector<2x32xf32>
    %468 = arith.mulf %452, %460 : vector<2x32xf32>
    %469 = arith.addf %467, %468 : vector<2x32xf32>
    %470 = math.tanh %469 : vector<2x32xf32>
    %471 = arith.mulf %466, %470 : vector<2x32xf32>
    %472 = arith.truncf %471 : vector<2x32xf32> to vector<2x32xbf16>
    %c14_90 = arith.constant 14 : index
    %c0_91 = arith.constant 0 : index
    %473 = vector.load %arg5[%c14_90, %c0_91] : memref<16x64xbf16, #tpu.memory_space<vmem>>, vector<2x32xbf16>
    tpu.vector_store %arg5[%c14_90, %c0_91], %472 {strides = array<i32>} : memref<16x64xbf16, #tpu.memory_space<vmem>>, vector<2x32xbf16>,
    %474 = vector.extract_strided_slice %5 {offsets = [0, 128], sizes = [2, 128], strides = [1, 1]} : vector<16x256xf32> to vector<2x128xf32>
    %475 = arith.truncf %440 : vector<2x32xf32> to vector<2x32xbf16>
    %cst_92 = arith.constant dense<0.000000e+00> : vector<2x128xf32>
    %476 = tpu.matmul %475, %7, %cst_92 {dimension_numbers = #tpu.dot_dimension_numbers<[1], [0], [0], [1], [0, 0, 1, 1], [], []>} : vector<2x32xbf16>, vector<32x128xbf16>, vector<2x128xf32> -> vector<2x128xf32>
    %477 = arith.addf %474, %476 : vector<2x128xf32>
    %478 = vector.extract_strided_slice %477 {offsets = [0, 0], sizes = [2, 32], strides = [1, 1]} : vector<2x128xf32> to vector<2x32xf32>
    %479 = arith.negf %478 : vector<2x32xf32>
    %480 = math.exp %479 : vector<2x32xf32>
    %cst_93 = arith.constant 1.000000e+00 : f32
    %481 = vector.broadcast %cst_93 : f32 to vector<2x32xf32>
    %482 = arith.addf %481, %480 : vector<2x32xf32>
    %483 = arith.divf %481, %482 : vector<2x32xf32>
    %484 = vector.extract_strided_slice %477 {offsets = [0, 32], sizes = [2, 32], strides = [1, 1]} : vector<2x128xf32> to vector<2x32xf32>
    %485 = arith.negf %484 : vector<2x32xf32>
    %486 = math.exp %485 : vector<2x32xf32>
    %cst_94 = arith.constant 1.000000e+00 : f32
    %487 = vector.broadcast %cst_94 : f32 to vector<2x32xf32>
    %488 = arith.addf %487, %486 : vector<2x32xf32>
    %489 = arith.divf %487, %488 : vector<2x32xf32>
    %490 = vector.extract_strided_slice %477 {offsets = [0, 64], sizes = [2, 32], strides = [1, 1]} : vector<2x128xf32> to vector<2x32xf32>
    %491 = math.tanh %490 : vector<2x32xf32>
    %492 = vector.extract_strided_slice %477 {offsets = [0, 96], sizes = [2, 32], strides = [1, 1]} : vector<2x128xf32> to vector<2x32xf32>
    %493 = arith.negf %492 : vector<2x32xf32>
    %494 = math.exp %493 : vector<2x32xf32>
    %cst_95 = arith.constant 1.000000e+00 : f32
    %495 = vector.broadcast %cst_95 : f32 to vector<2x32xf32>
    %496 = arith.addf %495, %494 : vector<2x32xf32>
    %497 = arith.divf %495, %496 : vector<2x32xf32>
    %498 = arith.mulf %489, %438 : vector<2x32xf32>
    %499 = arith.mulf %483, %491 : vector<2x32xf32>
    %500 = arith.addf %498, %499 : vector<2x32xf32>
    %501 = math.tanh %500 : vector<2x32xf32>
    %502 = arith.mulf %497, %501 : vector<2x32xf32>
    %503 = arith.truncf %502 : vector<2x32xf32> to vector<2x32xbf16>
    %c0_96 = arith.constant 0 : index
    %c32_97 = arith.constant 32 : index
    %504 = vector.load %arg5[%c0_96, %c32_97] : memref<16x64xbf16, #tpu.memory_space<vmem>>, vector<2x32xbf16>
    tpu.vector_store %arg5[%c0_96, %c32_97], %503 {strides = array<i32>} : memref<16x64xbf16, #tpu.memory_space<vmem>>, vector<2x32xbf16>,
    return
  }
}

module attributes {stable_mosaic.version = 11 : i64} {
  func.func @_bilstm_head_kernel(%arg0: memref<16x64xbf16, #tpu.memory_space<vmem>>, %arg1: memref<64x256xbf16, #tpu.memory_space<vmem>>, %arg2: memref<32x128xbf16, #tpu.memory_space<vmem>>, %arg3: memref<32x128xbf16, #tpu.memory_space<vmem>>, %arg4: memref<1x256xf32, #tpu.memory_space<vmem>>, %arg5: memref<1x64xf32, #tpu.memory_space<vmem>>, %arg6: memref<1x64xf32, #tpu.memory_space<vmem>>, %arg7: memref<1x64xf32, #tpu.memory_space<vmem>>, %arg8: memref<1x64xf32, #tpu.memory_space<vmem>>, %arg9: memref<64x10xbf16, #tpu.memory_space<vmem>>, %arg10: memref<1x10xf32, #tpu.memory_space<vmem>>, %arg11: memref<2x10xf32, #tpu.memory_space<vmem>>) attributes {dimension_semantics = [], scalar_prefetch = 0 : i64, scratch_operands = 0 : i64, tpu.core_type = #tpu.core_type<tc>} {
    %c0 = arith.constant 0 : index
    %c0_0 = arith.constant 0 : index
    %0 = vector.load %arg0[%c0, %c0_0] : memref<16x64xbf16, #tpu.memory_space<vmem>>, vector<16x64xbf16>
    %c0_1 = arith.constant 0 : index
    %c0_2 = arith.constant 0 : index
    %1 = vector.load %arg1[%c0_1, %c0_2] : memref<64x256xbf16, #tpu.memory_space<vmem>>, vector<64x256xbf16>
    %cst = arith.constant dense<0.000000e+00> : vector<16x256xf32>
    %2 = tpu.matmul %0, %1, %cst {dimension_numbers = #tpu.dot_dimension_numbers<[1], [0], [0], [1], [0, 0, 1, 1], [], []>} : vector<16x64xbf16>, vector<64x256xbf16>, vector<16x256xf32> -> vector<16x256xf32>
    %c0_3 = arith.constant 0 : index
    %c0_4 = arith.constant 0 : index
    %3 = vector.load %arg4[%c0_3, %c0_4] : memref<1x256xf32, #tpu.memory_space<vmem>>, vector<1x256xf32>
    %4 = vector.broadcast %3 : vector<1x256xf32> to vector<16x256xf32>
    %5 = arith.addf %2, %4 : vector<16x256xf32>
    %c0_5 = arith.constant 0 : index
    %c0_6 = arith.constant 0 : index
    %6 = vector.load %arg2[%c0_5, %c0_6] : memref<32x128xbf16, #tpu.memory_space<vmem>>, vector<32x128xbf16>
    %c0_7 = arith.constant 0 : index
    %c0_8 = arith.constant 0 : index
    %7 = vector.load %arg3[%c0_7, %c0_8] : memref<32x128xbf16, #tpu.memory_space<vmem>>, vector<32x128xbf16>
    %cst_9 = arith.constant 0.000000e+00 : f32
    %8 = vector.broadcast %cst_9 : f32 to vector<2x32xf32>
    %9 = vector.extract_strided_slice %5 {offsets = [0, 0], sizes = [2, 128], strides = [1, 1]} : vector<16x256xf32> to vector<2x128xf32>
    %10 = arith.truncf %8 : vector<2x32xf32> to vector<2x32xbf16>
    %cst_10 = arith.constant dense<0.000000e+00> : vector<2x128xf32>
    %11 = tpu.matmul %10, %6, %cst_10 {dimension_numbers = #tpu.dot_dimension_numbers<[1], [0], [0], [1], [0, 0, 1, 1], [], []>} : vector<2x32xbf16>, vector<32x128xbf16>, vector<2x128xf32> -> vector<2x128xf32>
    %12 = arith.addf %9, %11 : vector<2x128xf32>
    %13 = vector.extract_strided_slice %12 {offsets = [0, 0], sizes = [2, 32], strides = [1, 1]} : vector<2x128xf32> to vector<2x32xf32>
    %14 = arith.negf %13 : vector<2x32xf32>
    %15 = math.exp %14 : vector<2x32xf32>
    %cst_11 = arith.constant 1.000000e+00 : f32
    %16 = vector.broadcast %cst_11 : f32 to vector<2x32xf32>
    %17 = arith.addf %16, %15 : vector<2x32xf32>
    %18 = arith.divf %16, %17 : vector<2x32xf32>
    %19 = vector.extract_strided_slice %12 {offsets = [0, 32], sizes = [2, 32], strides = [1, 1]} : vector<2x128xf32> to vector<2x32xf32>
    %20 = arith.negf %19 : vector<2x32xf32>
    %21 = math.exp %20 : vector<2x32xf32>
    %cst_12 = arith.constant 1.000000e+00 : f32
    %22 = vector.broadcast %cst_12 : f32 to vector<2x32xf32>
    %23 = arith.addf %22, %21 : vector<2x32xf32>
    %24 = arith.divf %22, %23 : vector<2x32xf32>
    %25 = vector.extract_strided_slice %12 {offsets = [0, 64], sizes = [2, 32], strides = [1, 1]} : vector<2x128xf32> to vector<2x32xf32>
    %26 = math.tanh %25 : vector<2x32xf32>
    %27 = vector.extract_strided_slice %12 {offsets = [0, 96], sizes = [2, 32], strides = [1, 1]} : vector<2x128xf32> to vector<2x32xf32>
    %28 = arith.negf %27 : vector<2x32xf32>
    %29 = math.exp %28 : vector<2x32xf32>
    %cst_13 = arith.constant 1.000000e+00 : f32
    %30 = vector.broadcast %cst_13 : f32 to vector<2x32xf32>
    %31 = arith.addf %30, %29 : vector<2x32xf32>
    %32 = arith.divf %30, %31 : vector<2x32xf32>
    %33 = arith.mulf %24, %8 : vector<2x32xf32>
    %34 = arith.mulf %18, %26 : vector<2x32xf32>
    %35 = arith.addf %33, %34 : vector<2x32xf32>
    %36 = math.tanh %35 : vector<2x32xf32>
    %37 = arith.mulf %32, %36 : vector<2x32xf32>
    %38 = vector.extract_strided_slice %5 {offsets = [2, 0], sizes = [2, 128], strides = [1, 1]} : vector<16x256xf32> to vector<2x128xf32>
    %39 = arith.truncf %37 : vector<2x32xf32> to vector<2x32xbf16>
    %cst_14 = arith.constant dense<0.000000e+00> : vector<2x128xf32>
    %40 = tpu.matmul %39, %6, %cst_14 {dimension_numbers = #tpu.dot_dimension_numbers<[1], [0], [0], [1], [0, 0, 1, 1], [], []>} : vector<2x32xbf16>, vector<32x128xbf16>, vector<2x128xf32> -> vector<2x128xf32>
    %41 = arith.addf %38, %40 : vector<2x128xf32>
    %42 = vector.extract_strided_slice %41 {offsets = [0, 0], sizes = [2, 32], strides = [1, 1]} : vector<2x128xf32> to vector<2x32xf32>
    %43 = arith.negf %42 : vector<2x32xf32>
    %44 = math.exp %43 : vector<2x32xf32>
    %cst_15 = arith.constant 1.000000e+00 : f32
    %45 = vector.broadcast %cst_15 : f32 to vector<2x32xf32>
    %46 = arith.addf %45, %44 : vector<2x32xf32>
    %47 = arith.divf %45, %46 : vector<2x32xf32>
    %48 = vector.extract_strided_slice %41 {offsets = [0, 32], sizes = [2, 32], strides = [1, 1]} : vector<2x128xf32> to vector<2x32xf32>
    %49 = arith.negf %48 : vector<2x32xf32>
    %50 = math.exp %49 : vector<2x32xf32>
    %cst_16 = arith.constant 1.000000e+00 : f32
    %51 = vector.broadcast %cst_16 : f32 to vector<2x32xf32>
    %52 = arith.addf %51, %50 : vector<2x32xf32>
    %53 = arith.divf %51, %52 : vector<2x32xf32>
    %54 = vector.extract_strided_slice %41 {offsets = [0, 64], sizes = [2, 32], strides = [1, 1]} : vector<2x128xf32> to vector<2x32xf32>
    %55 = math.tanh %54 : vector<2x32xf32>
    %56 = vector.extract_strided_slice %41 {offsets = [0, 96], sizes = [2, 32], strides = [1, 1]} : vector<2x128xf32> to vector<2x32xf32>
    %57 = arith.negf %56 : vector<2x32xf32>
    %58 = math.exp %57 : vector<2x32xf32>
    %cst_17 = arith.constant 1.000000e+00 : f32
    %59 = vector.broadcast %cst_17 : f32 to vector<2x32xf32>
    %60 = arith.addf %59, %58 : vector<2x32xf32>
    %61 = arith.divf %59, %60 : vector<2x32xf32>
    %62 = arith.mulf %53, %35 : vector<2x32xf32>
    %63 = arith.mulf %47, %55 : vector<2x32xf32>
    %64 = arith.addf %62, %63 : vector<2x32xf32>
    %65 = math.tanh %64 : vector<2x32xf32>
    %66 = arith.mulf %61, %65 : vector<2x32xf32>
    %67 = vector.extract_strided_slice %5 {offsets = [4, 0], sizes = [2, 128], strides = [1, 1]} : vector<16x256xf32> to vector<2x128xf32>
    %68 = arith.truncf %66 : vector<2x32xf32> to vector<2x32xbf16>
    %cst_18 = arith.constant dense<0.000000e+00> : vector<2x128xf32>
    %69 = tpu.matmul %68, %6, %cst_18 {dimension_numbers = #tpu.dot_dimension_numbers<[1], [0], [0], [1], [0, 0, 1, 1], [], []>} : vector<2x32xbf16>, vector<32x128xbf16>, vector<2x128xf32> -> vector<2x128xf32>
    %70 = arith.addf %67, %69 : vector<2x128xf32>
    %71 = vector.extract_strided_slice %70 {offsets = [0, 0], sizes = [2, 32], strides = [1, 1]} : vector<2x128xf32> to vector<2x32xf32>
    %72 = arith.negf %71 : vector<2x32xf32>
    %73 = math.exp %72 : vector<2x32xf32>
    %cst_19 = arith.constant 1.000000e+00 : f32
    %74 = vector.broadcast %cst_19 : f32 to vector<2x32xf32>
    %75 = arith.addf %74, %73 : vector<2x32xf32>
    %76 = arith.divf %74, %75 : vector<2x32xf32>
    %77 = vector.extract_strided_slice %70 {offsets = [0, 32], sizes = [2, 32], strides = [1, 1]} : vector<2x128xf32> to vector<2x32xf32>
    %78 = arith.negf %77 : vector<2x32xf32>
    %79 = math.exp %78 : vector<2x32xf32>
    %cst_20 = arith.constant 1.000000e+00 : f32
    %80 = vector.broadcast %cst_20 : f32 to vector<2x32xf32>
    %81 = arith.addf %80, %79 : vector<2x32xf32>
    %82 = arith.divf %80, %81 : vector<2x32xf32>
    %83 = vector.extract_strided_slice %70 {offsets = [0, 64], sizes = [2, 32], strides = [1, 1]} : vector<2x128xf32> to vector<2x32xf32>
    %84 = math.tanh %83 : vector<2x32xf32>
    %85 = vector.extract_strided_slice %70 {offsets = [0, 96], sizes = [2, 32], strides = [1, 1]} : vector<2x128xf32> to vector<2x32xf32>
    %86 = arith.negf %85 : vector<2x32xf32>
    %87 = math.exp %86 : vector<2x32xf32>
    %cst_21 = arith.constant 1.000000e+00 : f32
    %88 = vector.broadcast %cst_21 : f32 to vector<2x32xf32>
    %89 = arith.addf %88, %87 : vector<2x32xf32>
    %90 = arith.divf %88, %89 : vector<2x32xf32>
    %91 = arith.mulf %82, %64 : vector<2x32xf32>
    %92 = arith.mulf %76, %84 : vector<2x32xf32>
    %93 = arith.addf %91, %92 : vector<2x32xf32>
    %94 = math.tanh %93 : vector<2x32xf32>
    %95 = arith.mulf %90, %94 : vector<2x32xf32>
    %96 = vector.extract_strided_slice %5 {offsets = [6, 0], sizes = [2, 128], strides = [1, 1]} : vector<16x256xf32> to vector<2x128xf32>
    %97 = arith.truncf %95 : vector<2x32xf32> to vector<2x32xbf16>
    %cst_22 = arith.constant dense<0.000000e+00> : vector<2x128xf32>
    %98 = tpu.matmul %97, %6, %cst_22 {dimension_numbers = #tpu.dot_dimension_numbers<[1], [0], [0], [1], [0, 0, 1, 1], [], []>} : vector<2x32xbf16>, vector<32x128xbf16>, vector<2x128xf32> -> vector<2x128xf32>
    %99 = arith.addf %96, %98 : vector<2x128xf32>
    %100 = vector.extract_strided_slice %99 {offsets = [0, 0], sizes = [2, 32], strides = [1, 1]} : vector<2x128xf32> to vector<2x32xf32>
    %101 = arith.negf %100 : vector<2x32xf32>
    %102 = math.exp %101 : vector<2x32xf32>
    %cst_23 = arith.constant 1.000000e+00 : f32
    %103 = vector.broadcast %cst_23 : f32 to vector<2x32xf32>
    %104 = arith.addf %103, %102 : vector<2x32xf32>
    %105 = arith.divf %103, %104 : vector<2x32xf32>
    %106 = vector.extract_strided_slice %99 {offsets = [0, 32], sizes = [2, 32], strides = [1, 1]} : vector<2x128xf32> to vector<2x32xf32>
    %107 = arith.negf %106 : vector<2x32xf32>
    %108 = math.exp %107 : vector<2x32xf32>
    %cst_24 = arith.constant 1.000000e+00 : f32
    %109 = vector.broadcast %cst_24 : f32 to vector<2x32xf32>
    %110 = arith.addf %109, %108 : vector<2x32xf32>
    %111 = arith.divf %109, %110 : vector<2x32xf32>
    %112 = vector.extract_strided_slice %99 {offsets = [0, 64], sizes = [2, 32], strides = [1, 1]} : vector<2x128xf32> to vector<2x32xf32>
    %113 = math.tanh %112 : vector<2x32xf32>
    %114 = vector.extract_strided_slice %99 {offsets = [0, 96], sizes = [2, 32], strides = [1, 1]} : vector<2x128xf32> to vector<2x32xf32>
    %115 = arith.negf %114 : vector<2x32xf32>
    %116 = math.exp %115 : vector<2x32xf32>
    %cst_25 = arith.constant 1.000000e+00 : f32
    %117 = vector.broadcast %cst_25 : f32 to vector<2x32xf32>
    %118 = arith.addf %117, %116 : vector<2x32xf32>
    %119 = arith.divf %117, %118 : vector<2x32xf32>
    %120 = arith.mulf %111, %93 : vector<2x32xf32>
    %121 = arith.mulf %105, %113 : vector<2x32xf32>
    %122 = arith.addf %120, %121 : vector<2x32xf32>
    %123 = math.tanh %122 : vector<2x32xf32>
    %124 = arith.mulf %119, %123 : vector<2x32xf32>
    %125 = vector.extract_strided_slice %5 {offsets = [8, 0], sizes = [2, 128], strides = [1, 1]} : vector<16x256xf32> to vector<2x128xf32>
    %126 = arith.truncf %124 : vector<2x32xf32> to vector<2x32xbf16>
    %cst_26 = arith.constant dense<0.000000e+00> : vector<2x128xf32>
    %127 = tpu.matmul %126, %6, %cst_26 {dimension_numbers = #tpu.dot_dimension_numbers<[1], [0], [0], [1], [0, 0, 1, 1], [], []>} : vector<2x32xbf16>, vector<32x128xbf16>, vector<2x128xf32> -> vector<2x128xf32>
    %128 = arith.addf %125, %127 : vector<2x128xf32>
    %129 = vector.extract_strided_slice %128 {offsets = [0, 0], sizes = [2, 32], strides = [1, 1]} : vector<2x128xf32> to vector<2x32xf32>
    %130 = arith.negf %129 : vector<2x32xf32>
    %131 = math.exp %130 : vector<2x32xf32>
    %cst_27 = arith.constant 1.000000e+00 : f32
    %132 = vector.broadcast %cst_27 : f32 to vector<2x32xf32>
    %133 = arith.addf %132, %131 : vector<2x32xf32>
    %134 = arith.divf %132, %133 : vector<2x32xf32>
    %135 = vector.extract_strided_slice %128 {offsets = [0, 32], sizes = [2, 32], strides = [1, 1]} : vector<2x128xf32> to vector<2x32xf32>
    %136 = arith.negf %135 : vector<2x32xf32>
    %137 = math.exp %136 : vector<2x32xf32>
    %cst_28 = arith.constant 1.000000e+00 : f32
    %138 = vector.broadcast %cst_28 : f32 to vector<2x32xf32>
    %139 = arith.addf %138, %137 : vector<2x32xf32>
    %140 = arith.divf %138, %139 : vector<2x32xf32>
    %141 = vector.extract_strided_slice %128 {offsets = [0, 64], sizes = [2, 32], strides = [1, 1]} : vector<2x128xf32> to vector<2x32xf32>
    %142 = math.tanh %141 : vector<2x32xf32>
    %143 = vector.extract_strided_slice %128 {offsets = [0, 96], sizes = [2, 32], strides = [1, 1]} : vector<2x128xf32> to vector<2x32xf32>
    %144 = arith.negf %143 : vector<2x32xf32>
    %145 = math.exp %144 : vector<2x32xf32>
    %cst_29 = arith.constant 1.000000e+00 : f32
    %146 = vector.broadcast %cst_29 : f32 to vector<2x32xf32>
    %147 = arith.addf %146, %145 : vector<2x32xf32>
    %148 = arith.divf %146, %147 : vector<2x32xf32>
    %149 = arith.mulf %140, %122 : vector<2x32xf32>
    %150 = arith.mulf %134, %142 : vector<2x32xf32>
    %151 = arith.addf %149, %150 : vector<2x32xf32>
    %152 = math.tanh %151 : vector<2x32xf32>
    %153 = arith.mulf %148, %152 : vector<2x32xf32>
    %154 = vector.extract_strided_slice %5 {offsets = [10, 0], sizes = [2, 128], strides = [1, 1]} : vector<16x256xf32> to vector<2x128xf32>
    %155 = arith.truncf %153 : vector<2x32xf32> to vector<2x32xbf16>
    %cst_30 = arith.constant dense<0.000000e+00> : vector<2x128xf32>
    %156 = tpu.matmul %155, %6, %cst_30 {dimension_numbers = #tpu.dot_dimension_numbers<[1], [0], [0], [1], [0, 0, 1, 1], [], []>} : vector<2x32xbf16>, vector<32x128xbf16>, vector<2x128xf32> -> vector<2x128xf32>
    %157 = arith.addf %154, %156 : vector<2x128xf32>
    %158 = vector.extract_strided_slice %157 {offsets = [0, 0], sizes = [2, 32], strides = [1, 1]} : vector<2x128xf32> to vector<2x32xf32>
    %159 = arith.negf %158 : vector<2x32xf32>
    %160 = math.exp %159 : vector<2x32xf32>
    %cst_31 = arith.constant 1.000000e+00 : f32
    %161 = vector.broadcast %cst_31 : f32 to vector<2x32xf32>
    %162 = arith.addf %161, %160 : vector<2x32xf32>
    %163 = arith.divf %161, %162 : vector<2x32xf32>
    %164 = vector.extract_strided_slice %157 {offsets = [0, 32], sizes = [2, 32], strides = [1, 1]} : vector<2x128xf32> to vector<2x32xf32>
    %165 = arith.negf %164 : vector<2x32xf32>
    %166 = math.exp %165 : vector<2x32xf32>
    %cst_32 = arith.constant 1.000000e+00 : f32
    %167 = vector.broadcast %cst_32 : f32 to vector<2x32xf32>
    %168 = arith.addf %167, %166 : vector<2x32xf32>
    %169 = arith.divf %167, %168 : vector<2x32xf32>
    %170 = vector.extract_strided_slice %157 {offsets = [0, 64], sizes = [2, 32], strides = [1, 1]} : vector<2x128xf32> to vector<2x32xf32>
    %171 = math.tanh %170 : vector<2x32xf32>
    %172 = vector.extract_strided_slice %157 {offsets = [0, 96], sizes = [2, 32], strides = [1, 1]} : vector<2x128xf32> to vector<2x32xf32>
    %173 = arith.negf %172 : vector<2x32xf32>
    %174 = math.exp %173 : vector<2x32xf32>
    %cst_33 = arith.constant 1.000000e+00 : f32
    %175 = vector.broadcast %cst_33 : f32 to vector<2x32xf32>
    %176 = arith.addf %175, %174 : vector<2x32xf32>
    %177 = arith.divf %175, %176 : vector<2x32xf32>
    %178 = arith.mulf %169, %151 : vector<2x32xf32>
    %179 = arith.mulf %163, %171 : vector<2x32xf32>
    %180 = arith.addf %178, %179 : vector<2x32xf32>
    %181 = math.tanh %180 : vector<2x32xf32>
    %182 = arith.mulf %177, %181 : vector<2x32xf32>
    %183 = vector.extract_strided_slice %5 {offsets = [12, 0], sizes = [2, 128], strides = [1, 1]} : vector<16x256xf32> to vector<2x128xf32>
    %184 = arith.truncf %182 : vector<2x32xf32> to vector<2x32xbf16>
    %cst_34 = arith.constant dense<0.000000e+00> : vector<2x128xf32>
    %185 = tpu.matmul %184, %6, %cst_34 {dimension_numbers = #tpu.dot_dimension_numbers<[1], [0], [0], [1], [0, 0, 1, 1], [], []>} : vector<2x32xbf16>, vector<32x128xbf16>, vector<2x128xf32> -> vector<2x128xf32>
    %186 = arith.addf %183, %185 : vector<2x128xf32>
    %187 = vector.extract_strided_slice %186 {offsets = [0, 0], sizes = [2, 32], strides = [1, 1]} : vector<2x128xf32> to vector<2x32xf32>
    %188 = arith.negf %187 : vector<2x32xf32>
    %189 = math.exp %188 : vector<2x32xf32>
    %cst_35 = arith.constant 1.000000e+00 : f32
    %190 = vector.broadcast %cst_35 : f32 to vector<2x32xf32>
    %191 = arith.addf %190, %189 : vector<2x32xf32>
    %192 = arith.divf %190, %191 : vector<2x32xf32>
    %193 = vector.extract_strided_slice %186 {offsets = [0, 32], sizes = [2, 32], strides = [1, 1]} : vector<2x128xf32> to vector<2x32xf32>
    %194 = arith.negf %193 : vector<2x32xf32>
    %195 = math.exp %194 : vector<2x32xf32>
    %cst_36 = arith.constant 1.000000e+00 : f32
    %196 = vector.broadcast %cst_36 : f32 to vector<2x32xf32>
    %197 = arith.addf %196, %195 : vector<2x32xf32>
    %198 = arith.divf %196, %197 : vector<2x32xf32>
    %199 = vector.extract_strided_slice %186 {offsets = [0, 64], sizes = [2, 32], strides = [1, 1]} : vector<2x128xf32> to vector<2x32xf32>
    %200 = math.tanh %199 : vector<2x32xf32>
    %201 = vector.extract_strided_slice %186 {offsets = [0, 96], sizes = [2, 32], strides = [1, 1]} : vector<2x128xf32> to vector<2x32xf32>
    %202 = arith.negf %201 : vector<2x32xf32>
    %203 = math.exp %202 : vector<2x32xf32>
    %cst_37 = arith.constant 1.000000e+00 : f32
    %204 = vector.broadcast %cst_37 : f32 to vector<2x32xf32>
    %205 = arith.addf %204, %203 : vector<2x32xf32>
    %206 = arith.divf %204, %205 : vector<2x32xf32>
    %207 = arith.mulf %198, %180 : vector<2x32xf32>
    %208 = arith.mulf %192, %200 : vector<2x32xf32>
    %209 = arith.addf %207, %208 : vector<2x32xf32>
    %210 = math.tanh %209 : vector<2x32xf32>
    %211 = arith.mulf %206, %210 : vector<2x32xf32>
    %212 = vector.extract_strided_slice %5 {offsets = [14, 0], sizes = [2, 128], strides = [1, 1]} : vector<16x256xf32> to vector<2x128xf32>
    %213 = arith.truncf %211 : vector<2x32xf32> to vector<2x32xbf16>
    %cst_38 = arith.constant dense<0.000000e+00> : vector<2x128xf32>
    %214 = tpu.matmul %213, %6, %cst_38 {dimension_numbers = #tpu.dot_dimension_numbers<[1], [0], [0], [1], [0, 0, 1, 1], [], []>} : vector<2x32xbf16>, vector<32x128xbf16>, vector<2x128xf32> -> vector<2x128xf32>
    %215 = arith.addf %212, %214 : vector<2x128xf32>
    %216 = vector.extract_strided_slice %215 {offsets = [0, 0], sizes = [2, 32], strides = [1, 1]} : vector<2x128xf32> to vector<2x32xf32>
    %217 = arith.negf %216 : vector<2x32xf32>
    %218 = math.exp %217 : vector<2x32xf32>
    %cst_39 = arith.constant 1.000000e+00 : f32
    %219 = vector.broadcast %cst_39 : f32 to vector<2x32xf32>
    %220 = arith.addf %219, %218 : vector<2x32xf32>
    %221 = arith.divf %219, %220 : vector<2x32xf32>
    %222 = vector.extract_strided_slice %215 {offsets = [0, 32], sizes = [2, 32], strides = [1, 1]} : vector<2x128xf32> to vector<2x32xf32>
    %223 = arith.negf %222 : vector<2x32xf32>
    %224 = math.exp %223 : vector<2x32xf32>
    %cst_40 = arith.constant 1.000000e+00 : f32
    %225 = vector.broadcast %cst_40 : f32 to vector<2x32xf32>
    %226 = arith.addf %225, %224 : vector<2x32xf32>
    %227 = arith.divf %225, %226 : vector<2x32xf32>
    %228 = vector.extract_strided_slice %215 {offsets = [0, 64], sizes = [2, 32], strides = [1, 1]} : vector<2x128xf32> to vector<2x32xf32>
    %229 = math.tanh %228 : vector<2x32xf32>
    %230 = vector.extract_strided_slice %215 {offsets = [0, 96], sizes = [2, 32], strides = [1, 1]} : vector<2x128xf32> to vector<2x32xf32>
    %231 = arith.negf %230 : vector<2x32xf32>
    %232 = math.exp %231 : vector<2x32xf32>
    %cst_41 = arith.constant 1.000000e+00 : f32
    %233 = vector.broadcast %cst_41 : f32 to vector<2x32xf32>
    %234 = arith.addf %233, %232 : vector<2x32xf32>
    %235 = arith.divf %233, %234 : vector<2x32xf32>
    %236 = arith.mulf %227, %209 : vector<2x32xf32>
    %237 = arith.mulf %221, %229 : vector<2x32xf32>
    %238 = arith.addf %236, %237 : vector<2x32xf32>
    %239 = math.tanh %238 : vector<2x32xf32>
    %240 = arith.mulf %235, %239 : vector<2x32xf32>
    %241 = vector.extract_strided_slice %5 {offsets = [14, 128], sizes = [2, 128], strides = [1, 1]} : vector<16x256xf32> to vector<2x128xf32>
    %242 = arith.truncf %8 : vector<2x32xf32> to vector<2x32xbf16>
    %cst_42 = arith.constant dense<0.000000e+00> : vector<2x128xf32>
    %243 = tpu.matmul %242, %7, %cst_42 {dimension_numbers = #tpu.dot_dimension_numbers<[1], [0], [0], [1], [0, 0, 1, 1], [], []>} : vector<2x32xbf16>, vector<32x128xbf16>, vector<2x128xf32> -> vector<2x128xf32>
    %244 = arith.addf %241, %243 : vector<2x128xf32>
    %245 = vector.extract_strided_slice %244 {offsets = [0, 0], sizes = [2, 32], strides = [1, 1]} : vector<2x128xf32> to vector<2x32xf32>
    %246 = arith.negf %245 : vector<2x32xf32>
    %247 = math.exp %246 : vector<2x32xf32>
    %cst_43 = arith.constant 1.000000e+00 : f32
    %248 = vector.broadcast %cst_43 : f32 to vector<2x32xf32>
    %249 = arith.addf %248, %247 : vector<2x32xf32>
    %250 = arith.divf %248, %249 : vector<2x32xf32>
    %251 = vector.extract_strided_slice %244 {offsets = [0, 32], sizes = [2, 32], strides = [1, 1]} : vector<2x128xf32> to vector<2x32xf32>
    %252 = arith.negf %251 : vector<2x32xf32>
    %253 = math.exp %252 : vector<2x32xf32>
    %cst_44 = arith.constant 1.000000e+00 : f32
    %254 = vector.broadcast %cst_44 : f32 to vector<2x32xf32>
    %255 = arith.addf %254, %253 : vector<2x32xf32>
    %256 = arith.divf %254, %255 : vector<2x32xf32>
    %257 = vector.extract_strided_slice %244 {offsets = [0, 64], sizes = [2, 32], strides = [1, 1]} : vector<2x128xf32> to vector<2x32xf32>
    %258 = math.tanh %257 : vector<2x32xf32>
    %259 = vector.extract_strided_slice %244 {offsets = [0, 96], sizes = [2, 32], strides = [1, 1]} : vector<2x128xf32> to vector<2x32xf32>
    %260 = arith.negf %259 : vector<2x32xf32>
    %261 = math.exp %260 : vector<2x32xf32>
    %cst_45 = arith.constant 1.000000e+00 : f32
    %262 = vector.broadcast %cst_45 : f32 to vector<2x32xf32>
    %263 = arith.addf %262, %261 : vector<2x32xf32>
    %264 = arith.divf %262, %263 : vector<2x32xf32>
    %265 = arith.mulf %256, %8 : vector<2x32xf32>
    %266 = arith.mulf %250, %258 : vector<2x32xf32>
    %267 = arith.addf %265, %266 : vector<2x32xf32>
    %268 = math.tanh %267 : vector<2x32xf32>
    %269 = arith.mulf %264, %268 : vector<2x32xf32>
    %270 = tpu.concatenate %240, %269 in 1 : vector<2x32xf32>, vector<2x32xf32> -> vector<2x64xf32>
    %cst_46 = arith.constant 0.000000e+00 : f32
    %271 = vector.broadcast %cst_46 : f32 to vector<2x64xf32>
    %272 = arith.maximumf %270, %271 : vector<2x64xf32>
    %c0_47 = arith.constant 0 : index
    %c0_48 = arith.constant 0 : index
    %273 = vector.load %arg7[%c0_47, %c0_48] : memref<1x64xf32, #tpu.memory_space<vmem>>, vector<1x64xf32>
    %274 = vector.broadcast %273 : vector<1x64xf32> to vector<2x64xf32>
    %275 = arith.subf %272, %274 : vector<2x64xf32>
    %c0_49 = arith.constant 0 : index
    %c0_50 = arith.constant 0 : index
    %276 = vector.load %arg8[%c0_49, %c0_50] : memref<1x64xf32, #tpu.memory_space<vmem>>, vector<1x64xf32>
    %cst_51 = arith.constant 9.99999974E-6 : f32
    %277 = vector.broadcast %cst_51 : f32 to vector<1x64xf32>
    %278 = arith.addf %276, %277 : vector<1x64xf32>
    %279 = math.rsqrt %278 : vector<1x64xf32>
    %280 = vector.broadcast %279 : vector<1x64xf32> to vector<2x64xf32>
    %281 = arith.mulf %275, %280 : vector<2x64xf32>
    %c0_52 = arith.constant 0 : index
    %c0_53 = arith.constant 0 : index
    %282 = vector.load %arg5[%c0_52, %c0_53] : memref<1x64xf32, #tpu.memory_space<vmem>>, vector<1x64xf32>
    %283 = vector.broadcast %282 : vector<1x64xf32> to vector<2x64xf32>
    %284 = arith.mulf %281, %283 : vector<2x64xf32>
    %c0_54 = arith.constant 0 : index
    %c0_55 = arith.constant 0 : index
    %285 = vector.load %arg6[%c0_54, %c0_55] : memref<1x64xf32, #tpu.memory_space<vmem>>, vector<1x64xf32>
    %286 = vector.broadcast %285 : vector<1x64xf32> to vector<2x64xf32>
    %287 = arith.addf %284, %286 : vector<2x64xf32>
    %288 = arith.truncf %287 : vector<2x64xf32> to vector<2x64xbf16>
    %c0_56 = arith.constant 0 : index
    %c0_57 = arith.constant 0 : index
    %289 = vector.load %arg9[%c0_56, %c0_57] : memref<64x10xbf16, #tpu.memory_space<vmem>>, vector<64x10xbf16>
    %cst_58 = arith.constant dense<0.000000e+00> : vector<2x10xf32>
    %290 = tpu.matmul %288, %289, %cst_58 {dimension_numbers = #tpu.dot_dimension_numbers<[1], [0], [0], [1], [0, 0, 1, 1], [], []>} : vector<2x64xbf16>, vector<64x10xbf16>, vector<2x10xf32> -> vector<2x10xf32>
    %c0_59 = arith.constant 0 : index
    %c0_60 = arith.constant 0 : index
    %291 = vector.load %arg10[%c0_59, %c0_60] : memref<1x10xf32, #tpu.memory_space<vmem>>, vector<1x10xf32>
    %292 = vector.broadcast %291 : vector<1x10xf32> to vector<2x10xf32>
    %293 = arith.addf %290, %292 : vector<2x10xf32>
    %cst_61 = arith.constant dense<0xFF800000> : vector<2xf32>
    %294 = vector.multi_reduction <maximumf>, %293, %cst_61 [1] : vector<2x10xf32> to vector<2xf32>
    %295 = vector.shape_cast %294 : vector<2xf32> to vector<2x1xf32>
    %296 = vector.broadcast %295 : vector<2x1xf32> to vector<2x10xf32>
    %297 = arith.subf %293, %296 : vector<2x10xf32>
    %298 = math.exp %297 : vector<2x10xf32>
    %cst_62 = arith.constant dense<0.000000e+00> : vector<2xf32>
    %299 = vector.multi_reduction <add>, %298, %cst_62 [1] : vector<2x10xf32> to vector<2xf32>
    %300 = vector.shape_cast %299 : vector<2xf32> to vector<2x1xf32>
    %301 = math.log %300 : vector<2x1xf32>
    %302 = arith.addf %301, %295 : vector<2x1xf32>
    %303 = vector.broadcast %302 : vector<2x1xf32> to vector<2x10xf32>
    %304 = arith.subf %293, %303 : vector<2x10xf32>
    %c0_63 = arith.constant 0 : index
    %c0_64 = arith.constant 0 : index
    %305 = vector.load %arg11[%c0_63, %c0_64] : memref<2x10xf32, #tpu.memory_space<vmem>>, vector<2x10xf32>
    tpu.vector_store %arg11[%c0_63, %c0_64], %304 {strides = array<i32>} : memref<2x10xf32, #tpu.memory_space<vmem>>, vector<2x10xf32>,
    return
  }
}

</mosaic_0001>

<llo_original>
// kernel: sequence_classifier_forward.7
$region0: #{sequence_classifier_forward.7}
  #allocation0 [shape = 'u32[]', space=smem, size = 0x4, offset = 0x4, fixed_abs, tag = 'smem constant byte address 0x4 - core index']
  #allocation1 [shape = 'u32[144,128]{1,0:T(1,128)}', space=vmem, size = 0x12000, scoped, tag = 'internal scratch']
  %s0 = inlined_call_operand.vmem [shape: bf16[16,64], index: 0, kind: input, shape index: {}]
  %s1 = inlined_call_operand.vmem [shape: bf16[64,256], index: 1, kind: input, shape index: {}]
  %s2 = inlined_call_operand.vmem [shape: bf16[32,128], index: 2, kind: input, shape index: {}]
  %s3 = inlined_call_operand.vmem [shape: bf16[32,128], index: 3, kind: input, shape index: {}]
  %s4 = inlined_call_operand.vmem [shape: f32[1,256], index: 4, kind: input, shape index: {}]
  %s5 = inlined_call_operand.vmem [shape: f32[1,64], index: 5, kind: input, shape index: {}]
  %s6 = inlined_call_operand.vmem [shape: f32[1,64], index: 6, kind: input, shape index: {}]
  %s7 = inlined_call_operand.vmem [shape: f32[1,64], index: 7, kind: input, shape index: {}]
  %s8 = inlined_call_operand.vmem [shape: f32[1,64], index: 8, kind: input, shape index: {}]
  %s9 = inlined_call_operand.vmem [shape: bf16[64,10], index: 9, kind: input, shape index: {}]
  %s10 = inlined_call_operand.vmem [shape: f32[1,10], index: 10, kind: input, shape index: {}]
  %s11 = inlined_call_operand.hbm [shape: f32[2,10], index: 11, kind: output, shape index: {}]
  %s12 = sld [smem:[#allocation0]]
  $region54: #{sequence_classifier_forward.7} parent=0
    _
  %s14 = ssub.s32 1, %s12
  %s15 = scalar_select 0, %s14, %s12
  $region1: #{sequence_classifier_forward.7} parent=0
    #allocation2 [shape = 'u8[1024]{0}', space=vmem, size = 0x400, scoped, tag = 'output window, operand 0, single buffered']
    #allocation3 [shape = 's32[1]{0}', space=sflag, size = 0x4, scoped, tag = 'scoped memory for sequence_classifier_forward.7']
    %16 = vsyncpa [#allocation3], 0
    // Predicated region
    $region2: #{sequence_classifier_forward.7} parent=1 // pred_check
      _
    $region3: #{sequence_classifier_forward.7} parent=1 // pred_check_branch
      %18 = sbr.rel (0) target = $region5
    $region4: #{sequence_classifier_forward.7} parent=1 // pred_region
      _
    $region5: #{sequence_classifier_forward.7} parent=1 // pred_fallthru
      _
    // Predicated region
    $region6: #{sequence_classifier_forward.7} parent=1 // pred_check
      _
    $region7: #{sequence_classifier_forward.7} parent=1 // pred_check_branch
      %20 = sbr.rel (0) target = $region9
    $region8: #{sequence_classifier_forward.7} parent=1 // pred_region
      _
    $region9: #{sequence_classifier_forward.7} parent=1 // pred_fallthru
      _
    // Predicated region
    $region10: #{sequence_classifier_forward.7} parent=1 // pred_check
      _
    $region11: #{sequence_classifier_forward.7} parent=1 // pred_check_branch
      %22 = sbr.rel (0) target = $region13
    $region12: #{sequence_classifier_forward.7} parent=1 // pred_region
      _
    $region13: #{sequence_classifier_forward.7} parent=1 // pred_fallthru
      _
    // Predicated region
    $region14: #{sequence_classifier_forward.7} parent=1 // pred_check
      _
    $region15: #{sequence_classifier_forward.7} parent=1 // pred_check_branch
      %24 = sbr.rel (0) target = $region17
    $region16: #{sequence_classifier_forward.7} parent=1 // pred_region
      _
    $region17: #{sequence_classifier_forward.7} parent=1 // pred_fallthru
      _
    // Predicated region
    $region18: #{sequence_classifier_forward.7} parent=1 // pred_check
      _
    $region19: #{sequence_classifier_forward.7} parent=1 // pred_check_branch
      %26 = sbr.rel (0) target = $region21
    $region20: #{sequence_classifier_forward.7} parent=1 // pred_region
      _
    $region21: #{sequence_classifier_forward.7} parent=1 // pred_fallthru
      _
    // Predicated region
    $region22: #{sequence_classifier_forward.7} parent=1 // pred_check
      _
    $region23: #{sequence_classifier_forward.7} parent=1 // pred_check_branch
      %28 = sbr.rel (0) target = $region25
    $region24: #{sequence_classifier_forward.7} parent=1 // pred_region
      _
    $region25: #{sequence_classifier_forward.7} parent=1 // pred_fallthru
      _
    // Predicated region
    $region26: #{sequence_classifier_forward.7} parent=1 // pred_check
      _
    $region27: #{sequence_classifier_forward.7} parent=1 // pred_check_branch
      %30 = sbr.rel (0) target = $region29
    $region28: #{sequence_classifier_forward.7} parent=1 // pred_region
      _
    $region29: #{sequence_classifier_forward.7} parent=1 // pred_fallthru
      _
    // Predicated region
    $region30: #{sequence_classifier_forward.7} parent=1 // pred_check
      _
    $region31: #{sequence_classifier_forward.7} parent=1 // pred_check_branch
      %32 = sbr.rel (0) target = $region33
    $region32: #{sequence_classifier_forward.7} parent=1 // pred_region
      _
    $region33: #{sequence_classifier_forward.7} parent=1 // pred_fallthru
      _
    // Predicated region
    $region34: #{sequence_classifier_forward.7} parent=1 // pred_check
      _
    $region35: #{sequence_classifier_forward.7} parent=1 // pred_check_branch
      %34 = sbr.rel (0) target = $region37
    $region36: #{sequence_classifier_forward.7} parent=1 // pred_region
      _
    $region37: #{sequence_classifier_forward.7} parent=1 // pred_fallthru
      _
    // Predicated region
    $region38: #{sequence_classifier_forward.7} parent=1 // pred_check
      _
    $region39: #{sequence_classifier_forward.7} parent=1 // pred_check_branch
      %36 = sbr.rel (0) target = $region41
    $region40: #{sequence_classifier_forward.7} parent=1 // pred_region
      _
    $region41: #{sequence_classifier_forward.7} parent=1 // pred_fallthru
      _
    // Predicated region
    $region42: #{sequence_classifier_forward.7} parent=1 // pred_check
      _
    $region43: #{sequence_classifier_forward.7} parent=1 // pred_check_branch
      %38 = sbr.rel (0) target = $region45
    $region44: #{sequence_classifier_forward.7} parent=1 // pred_region
      _
    $region45: #{sequence_classifier_forward.7} parent=1 // pred_fallthru
      _
    %v40 = vld [vmem:[%s0] sm:$0xf]
    %v41 = vld [vmem:[%s0 + $0x4] sm:$0xf]
    %v42 = vld [vmem:[%s1] sm:$0xff]
    %v43 = vld [vmem:[%s1 + $0x8] sm:$0xff]
    %v44 = vld [vmem:[%s1 + $0x10] sm:$0xff]
    %v45 = vld [vmem:[%s1 + $0x18] sm:$0xff]
    %v46 = vld [vmem:[%s1 + $0x20] sm:$0xff]
    %v47 = vld [vmem:[%s1 + $0x28] sm:$0xff]
    %v48 = vld [vmem:[%s1 + $0x30] sm:$0xff]
    %v49 = vld [vmem:[%s1 + $0x38] sm:$0xff]
    %v50 = vld [vmem:[%s4] sm:$0x3]
    %v52 = vlaneseq
    %v53 = vshrl.u32 %v52, 7
    %v54 = vsub.s32 0, %v53
    %v55 = vrot.slane %v50, %v54
    %v56 = vlaneseq
    %v57 = vshrl.u32 %v56, 7
    %v58 = vsub.s32 1, %v57
    %v59 = vrot.slane %v50, %v58
    %v64 = vunpack.c.l.b16 %v40
    %v65 = vunpack.c.l.b16 %v41
    %v66 = vpack.c.b16 %v65, %v64
    %v75 = vunpack.c.l.b16 %v42
    %v76 = vunpack.c.h.b16 %v42
    %v77 = vunpack.c.l.b16 %v43
    %v78 = vunpack.c.h.b16 %v43
    %v79 = vunpack.c.l.b16 %v44
    %v80 = vunpack.c.h.b16 %v44
    %v81 = vunpack.c.l.b16 %v45
    %v82 = vunpack.c.h.b16 %v45
    %v83 = vunpack.c.l.b16 %v46
    %v84 = vunpack.c.h.b16 %v46
    %v85 = vunpack.c.l.b16 %v47
    %v86 = vunpack.c.h.b16 %v47
    %v87 = vunpack.c.l.b16 %v48
    %v88 = vunpack.c.h.b16 %v48
    %v89 = vunpack.c.l.b16 %v49
    %v90 = vunpack.c.h.b16 %v49
    %v91 = vpack.c.b16 %v77, %v75
    %v92 = vpack.c.b16 %v78, %v76
    %v93 = vpack.c.b16 %v81, %v79
    %v94 = vpack.c.b16 %v82, %v80
    %v95 = vpack.c.b16 %v85, %v83
    %v96 = vpack.c.b16 %v86, %v84
    %v97 = vpack.c.b16 %v89, %v87
    %v98 = vpack.c.b16 %v90, %v88
    %vm107 = vcmask 523264
    %v109 = vsel %vm107, %v66, 0
    %111 = vmatprep.subr.bf16.mxu0 0
    %112 = vmatpush1.bf16.msra.mxu0 0
    %113 = vmatprep.subr.bf16.mxu0 0
    %114 = vmatpush1.bf16.msra.mxu0 0
    %115 = vmatprep.subr.bf16.mxu0 0
    %116 = vmatpush1.bf16.msra.mxu0 0
    %117 = vmatprep.subr.bf16.mxu0 0
    %118 = vmatpush1.bf16.msra.mxu0 0
    %119 = vmatprep.subr.bf16.mxu0 %v98
    %120 = vmatpush1.bf16.msra.mxu0 %v97
    %121 = vmatprep.subr.bf16.mxu0 %v96
    %122 = vmatpush1.bf16.msra.mxu0 %v95
    %123 = vmatprep.subr.bf16.mxu0 %v94
    %124 = vmatpush1.bf16.msra.mxu0 %v93
    %125 = vmatprep.subr.bf16.mxu0 %v92
    %126 = vmatpush1.bf16.msra.mxu0 %v91
    %127 = vmatprep.subr.bf16.mxu0 0
    %128 = vmatpush2.bf16.msra.mxu0 0
    %129 = vmatprep.subr.bf16.mxu0 0
    %130 = vmatpush2.bf16.msra.mxu0 0
    %131 = vmatprep.subr.bf16.mxu0 0
    %132 = vmatpush2.bf16.msra.mxu0 0
    %133 = vmatprep.subr.bf16.mxu0 0
    %134 = vmatpush2.bf16.msra.mxu0 0
    %135 = vmatprep.subr.bf16.mxu0 0
    %136 = vmatpush2.bf16.msra.mxu0 0
    %137 = vmatprep.subr.bf16.mxu0 0
    %138 = vmatpush2.bf16.msra.mxu0 0
    %139 = vmatprep.subr.bf16.mxu0 0
    %140 = vmatpush2.bf16.msra.mxu0 0
    %141 = vmatprep.subr.bf16.mxu0 0
    %142 = vmatpush2.bf16.msra.mxu0 0
    %143 = vmatprep.mubr.bf16.mxu0 0
    %144 = vmatmul.mubr.bf16.gmra.mxu0 %v109
    %v145 = vpop.f32.mrf.mxu0
    %v146 = vadd.f32 %v55, %v145
    %v147 = vpop.f32.mrf.mxu0
    %v148 = vpop.f32.mrf.mxu0
    %v149 = vadd.f32 %v55, %v148
    %v150 = vpop.f32.mrf.mxu0
    %v151 = vadd.f32 %v59, %v150
    %152 = vdwg.mxu0
    %v153 = vld [vmem:[%s2] sm:$0xf]
    %v154 = vld [vmem:[%s2 + $0x4] sm:$0xf]
    %v155 = vld [vmem:[%s2 + $0x8] sm:$0xf]
    %v156 = vld [vmem:[%s2 + $0xc] sm:$0xf]
    %v157 = vld [vmem:[%s3] sm:$0xf]
    %v158 = vld [vmem:[%s3 + $0x4] sm:$0xf]
    %v159 = vld [vmem:[%s3 + $0x8] sm:$0xf]
    %v160 = vld [vmem:[%s3 + $0xc] sm:$0xf]
    %v165 = vunpack.c.l.b16 %v153
    %v166 = vunpack.c.l.b16 %v154
    %v167 = vunpack.c.l.b16 %v155
    %v168 = vunpack.c.l.b16 %v156
    %v169 = vpack.c.b16 %v166, %v165
    %v170 = vpack.c.b16 %v168, %v167
    %vm173 = vcmask 261120
    %v175 = vsel %vm173, 0, 0
    %177 = vmatprep.subr.bf16.mxu0 0
    %178 = vmatpush1.bf16.msra.mxu0 0
    %179 = vmatprep.subr.bf16.mxu0 0
    %180 = vmatpush1.bf16.msra.mxu0 0
    %181 = vmatprep.subr.bf16.mxu0 0
    %182 = vmatpush1.bf16.msra.mxu0 0
    %183 = vmatprep.subr.bf16.mxu0 0
    %184 = vmatpush1.bf16.msra.mxu0 0
    %185 = vmatprep.subr.bf16.mxu0 0
    %186 = vmatpush1.bf16.msra.mxu0 0
    %187 = vmatprep.subr.bf16.mxu0 0
    %188 = vmatpush1.bf16.msra.mxu0 0
    %189 = vmatprep.subr.bf16.mxu0 0
    %190 = vmatpush1.bf16.msra.mxu0 %v170
    %191 = vmatprep.subr.bf16.mxu0 0
    %192 = vmatpush1.bf16.msra.mxu0 %v169
    %193 = vmatprep.subr.bf16.mxu0 0
    %194 = vmatpush2.bf16.msra.mxu0 0
    %195 = vmatprep.subr.bf16.mxu0 0
    %196 = vmatpush2.bf16.msra.mxu0 0
    %197 = vmatprep.subr.bf16.mxu0 0
    %198 = vmatpush2.bf16.msra.mxu0 0
    %199 = vmatprep.subr.bf16.mxu0 0
    %200 = vmatpush2.bf16.msra.mxu0 0
    %201 = vmatprep.subr.bf16.mxu0 0
    %202 = vmatpush2.bf16.msra.mxu0 0
    %203 = vmatprep.subr.bf16.mxu0 0
    %204 = vmatpush2.bf16.msra.mxu0 0
    %205 = vmatprep.subr.bf16.mxu0 0
    %206 = vmatpush2.bf16.msra.mxu0 0
    %207 = vmatprep.subr.bf16.mxu0 0
    %208 = vmatpush2.bf16.msra.mxu0 0
    %209 = vmatprep.mubr.bf16.mxu0 0
    %210 = vmatmul.mubr.bf16.gmra.mxu0 %v175
    %v211 = vpop.f32.mrf.mxu0
    %v212 = vadd.f32 0.0, %v211
    %v213 = vpop.f32.mrf.mxu0
    %v214 = vpop.f32.mrf.mxu0
    %v215 = vpop.f32.mrf.mxu0
    %216 = vdwg.mxu0
    %v217 = vadd.f32 %v146, %v212
    %v218 = vxor.u32 %v217, 2147483648
    %v219 = vmul.f32 %v218, 1.442695
    %v220 = vpow.pop %v219
    %v221 = vadd.f32 %v220, 1.0
    %v222 = vrcp.pop %v221
    %v223 = vmul.f32 1.0, %v222
    %v224 = vtanh.pop %v217
    %v225 = vmul.f32 %v223, 0.0
    %227 = vrot.lane.b32.xlu0 %v224, 64
    %v228 = vpop.permute.xlu0 %227
    %v230 = vmul.f32 %v223, %v228
    %232 = vrot.lane.b32.xlu0 %v230, 32
    %v233 = vpop.permute.xlu0 %232
    %v235 = vadd.f32 %v225, %v233
    %v236 = vtanh.pop %v235
    %238 = vrot.lane.b32.xlu0 %v236, 64
    %v239 = vpop.permute.xlu0 %238
    %v241 = vmul.f32 %v223, %v239
    %v242 = vpack.c.bf16 %v241, %v241
    %244 = vrot.lane.b32.xlu0 %v242, 32
    %v245 = vpop.permute.xlu0 %244
    %v247 = vsel %vm173, %v245, 0
    %249 = vmatprep.subr.bf16.mxu0 0
    %250 = vmatpush1.bf16.msra.mxu0 0
    %251 = vmatprep.subr.bf16.mxu0 0
    %252 = vmatpush1.bf16.msra.mxu0 0
    %253 = vmatprep.subr.bf16.mxu0 0
    %254 = vmatpush1.bf16.msra.mxu0 0
    %255 = vmatprep.subr.bf16.mxu0 0
    %256 = vmatpush1.bf16.msra.mxu0 0
    %257 = vmatprep.subr.bf16.mxu0 0
    %258 = vmatpush1.bf16.msra.mxu0 0
    %259 = vmatprep.subr.bf16.mxu0 0
    %260 = vmatpush1.bf16.msra.mxu0 0
    %261 = vmatprep.subr.bf16.mxu0 0
    %262 = vmatpush1.bf16.msra.mxu0 %v170
    %263 = vmatprep.subr.bf16.mxu0 0
    %264 = vmatpush1.bf16.msra.mxu0 %v169
    %265 = vmatprep.subr.bf16.mxu0 0
    %266 = vmatpush2.bf16.msra.mxu0 0
    %267 = vmatprep.subr.bf16.mxu0 0
    %268 = vmatpush2.bf16.msra.mxu0 0
    %269 = vmatprep.subr.bf16.mxu0 0
    %270 = vmatpush2.bf16.msra.mxu0 0
    %271 = vmatprep.subr.bf16.mxu0 0
    %272 = vmatpush2.bf16.msra.mxu0 0
    %273 = vmatprep.subr.bf16.mxu0 0
    %274 = vmatpush2.bf16.msra.mxu0 0
    %275 = vmatprep.subr.bf16.mxu0 0
    %276 = vmatpush2.bf16.msra.mxu0 0
    %277 = vmatprep.subr.bf16.mxu0 0
    %278 = vmatpush2.bf16.msra.mxu0 0
    %279 = vmatprep.subr.bf16.mxu0 0
    %280 = vmatpush2.bf16.msra.mxu0 0
    %281 = vmatprep.mubr.bf16.mxu0 0
    %282 = vmatmul.mubr.bf16.gmra.mxu0 %v247
    %v283 = vpop.f32.mrf.mxu0
    %v284 = vadd.f32 0.0, %v283
    %v285 = vpop.f32.mrf.mxu0
    %v286 = vpop.f32.mrf.mxu0
    %v287 = vpop.f32.mrf.mxu0
    %288 = vdwg.mxu0
    %v290 = vrot.slane %v284, 6
    %v292 = vadd.f32 %v146, %v290
    %v293 = vxor.u32 %v292, 2147483648
    %v294 = vmul.f32 %v293, 1.442695
    %v295 = vpow.pop %v294
    %v296 = vadd.f32 %v295, 1.0
    %v297 = vrcp.pop %v296
    %v298 = vmul.f32 1.0, %v297
    %v299 = vtanh.pop %v292
    %v301 = vrot.slane %v235, 6
    %v303 = vmul.f32 %v298, %v301
    %305 = vrot.lane.b32.xlu0 %v299, 64
    %v306 = vpop.permute.xlu0 %305
    %v308 = vmul.f32 %v298, %v306
    %310 = vrot.lane.b32.xlu0 %v308, 32
    %v311 = vpop.permute.xlu0 %310
    %v313 = vadd.f32 %v303, %v311
    %v314 = vtanh.pop %v313
    %316 = vrot.lane.b32.xlu0 %v314, 64
    %v317 = vpop.permute.xlu0 %316
    %v319 = vmul.f32 %v298, %v317
    %v320 = vpack.c.bf16 %v319, %v319
    %v322 = vrot.slane %v320, 1
    %323 = vrot.lane.b32.xlu0 %v322, 32
    %v324 = vpop.permute.xlu0 %323
    %v326 = vsel %vm173, %v324, 0
    %328 = vmatprep.subr.bf16.mxu0 0
    %329 = vmatpush1.bf16.msra.mxu0 0
    %330 = vmatprep.subr.bf16.mxu0 0
    %331 = vmatpush1.bf16.msra.mxu0 0
    %332 = vmatprep.subr.bf16.mxu0 0
    %333 = vmatpush1.bf16.msra.mxu0 0
    %334 = vmatprep.subr.bf16.mxu0 0
    %335 = vmatpush1.bf16.msra.mxu0 0
    %336 = vmatprep.subr.bf16.mxu0 0
    %337 = vmatpush1.bf16.msra.mxu0 0
    %338 = vmatprep.subr.bf16.mxu0 0
    %339 = vmatpush1.bf16.msra.mxu0 0
    %340 = vmatprep.subr.bf16.mxu0 0
    %341 = vmatpush1.bf16.msra.mxu0 %v170
    %342 = vmatprep.subr.bf16.mxu0 0
    %343 = vmatpush1.bf16.msra.mxu0 %v169
    %344 = vmatprep.subr.bf16.mxu0 0
    %345 = vmatpush2.bf16.msra.mxu0 0
    %346 = vmatprep.subr.bf16.mxu0 0
    %347 = vmatpush2.bf16.msra.mxu0 0
    %348 = vmatprep.subr.bf16.mxu0 0
    %349 = vmatpush2.bf16.msra.mxu0 0
    %350 = vmatprep.subr.bf16.mxu0 0
    %351 = vmatpush2.bf16.msra.mxu0 0
    %352 = vmatprep.subr.bf16.mxu0 0
    %353 = vmatpush2.bf16.msra.mxu0 0
    %354 = vmatprep.subr.bf16.mxu0 0
    %355 = vmatpush2.bf16.msra.mxu0 0
    %356 = vmatprep.subr.bf16.mxu0 0
    %357 = vmatpush2.bf16.msra.mxu0 0
    %358 = vmatprep.subr.bf16.mxu0 0
    %359 = vmatpush2.bf16.msra.mxu0 0
    %360 = vmatprep.mubr.bf16.mxu0 0
    %361 = vmatmul.mubr.bf16.gmra.mxu0 %v326
    %v362 = vpop.f32.mrf.mxu0
    %v363 = vadd.f32 0.0, %v362
    %v364 = vpop.f32.mrf.mxu0
    %v365 = vpop.f32.mrf.mxu0
    %v366 = vpop.f32.mrf.mxu0
    %367 = vdwg.mxu0
    %v369 = vrot.slane %v363, 4
    %v371 = vadd.f32 %v146, %v369
    %v372 = vxor.u32 %v371, 2147483648
    %v373 = vmul.f32 %v372, 1.442695
    %v374 = vpow.pop %v373
    %v375 = vadd.f32 %v374, 1.0
    %v376 = vrcp.pop %v375
    %v377 = vmul.f32 1.0, %v376
    %v378 = vtanh.pop %v371
    %v380 = vrot.slane %v313, 6
    %v382 = vmul.f32 %v377, %v380
    %384 = vrot.lane.b32.xlu0 %v378, 64
    %v385 = vpop.permute.xlu0 %384
    %v387 = vmul.f32 %v377, %v385
    %389 = vrot.lane.b32.xlu0 %v387, 32
    %v390 = vpop.permute.xlu0 %389
    %v392 = vadd.f32 %v382, %v390
    %v393 = vtanh.pop %v392
    %395 = vrot.lane.b32.xlu0 %v393, 64
    %v396 = vpop.permute.xlu0 %395
    %v398 = vmul.f32 %v377, %v396
    %v399 = vpack.c.bf16 %v398, %v398
    %v401 = vrot.slane %v399, 2
    %402 = vrot.lane.b32.xlu0 %v401, 32
    %v403 = vpop.permute.xlu0 %402
    %v405 = vsel %vm173, %v403, 0
    %407 = vmatprep.subr.bf16.mxu0 0
    %408 = vmatpush1.bf16.msra.mxu0 0
    %409 = vmatprep.subr.bf16.mxu0 0
    %410 = vmatpush1.bf16.msra.mxu0 0
    %411 = vmatprep.subr.bf16.mxu0 0
    %412 = vmatpush1.bf16.msra.mxu0 0
    %413 = vmatprep.subr.bf16.mxu0 0
    %414 = vmatpush1.bf16.msra.mxu0 0
    %415 = vmatprep.subr.bf16.mxu0 0
    %416 = vmatpush1.bf16.msra.mxu0 0
    %417 = vmatprep.subr.bf16.mxu0 0
    %418 = vmatpush1.bf16.msra.mxu0 0
    %419 = vmatprep.subr.bf16.mxu0 0
    %420 = vmatpush1.bf16.msra.mxu0 %v170
    %421 = vmatprep.subr.bf16.mxu0 0
    %422 = vmatpush1.bf16.msra.mxu0 %v169
    %423 = vmatprep.subr.bf16.mxu0 0
    %424 = vmatpush2.bf16.msra.mxu0 0
    %425 = vmatprep.subr.bf16.mxu0 0
    %426 = vmatpush2.bf16.msra.mxu0 0
    %427 = vmatprep.subr.bf16.mxu0 0
    %428 = vmatpush2.bf16.msra.mxu0 0
    %429 = vmatprep.subr.bf16.mxu0 0
    %430 = vmatpush2.bf16.msra.mxu0 0
    %431 = vmatprep.subr.bf16.mxu0 0
    %432 = vmatpush2.bf16.msra.mxu0 0
    %433 = vmatprep.subr.bf16.mxu0 0
    %434 = vmatpush2.bf16.msra.mxu0 0
    %435 = vmatprep.subr.bf16.mxu0 0
    %436 = vmatpush2.bf16.msra.mxu0 0
    %437 = vmatprep.subr.bf16.mxu0 0
    %438 = vmatpush2.bf16.msra.mxu0 0
    %439 = vmatprep.mubr.bf16.mxu0 0
    %440 = vmatmul.mubr.bf16.gmra.mxu0 %v405
    %v441 = vpop.f32.mrf.mxu0
    %v442 = vadd.f32 0.0, %v441
    %v443 = vpop.f32.mrf.mxu0
    %v444 = vpop.f32.mrf.mxu0
    %v445 = vpop.f32.mrf.mxu0
    %446 = vdwg.mxu0
    %v448 = vrot.slane %v442, 2
    %v450 = vadd.f32 %v146, %v448
    %v451 = vxor.u32 %v450, 2147483648
    %v452 = vmul.f32 %v451, 1.442695
    %v453 = vpow.pop %v452
    %v454 = vadd.f32 %v453, 1.0
    %v455 = vrcp.pop %v454
    %v456 = vmul.f32 1.0, %v455
    %v457 = vtanh.pop %v450
    %v459 = vrot.slane %v392, 6
    %v461 = vmul.f32 %v456, %v459
    %463 = vrot.lane.b32.xlu0 %v457, 64
    %v464 = vpop.permute.xlu0 %463
    %v466 = vmul.f32 %v456, %v464
    %468 = vrot.lane.b32.xlu0 %v466, 32
    %v469 = vpop.permute.xlu0 %468
    %v471 = vadd.f32 %v461, %v469
    %v472 = vtanh.pop %v471
    %474 = vrot.lane.b32.xlu0 %v472, 64
    %v475 = vpop.permute.xlu0 %474
    %v477 = vmul.f32 %v456, %v475
    %v478 = vpack.c.bf16 %v477, %v477
    %v480 = vrot.slane %v478, 3
    %481 = vrot.lane.b32.xlu0 %v480, 32
    %v482 = vpop.permute.xlu0 %481
    %v484 = vsel %vm173, %v482, 0
    %486 = vmatprep.subr.bf16.mxu0 0
    %487 = vmatpush1.bf16.msra.mxu0 0
    %488 = vmatprep.subr.bf16.mxu0 0
    %489 = vmatpush1.bf16.msra.mxu0 0
    %490 = vmatprep.subr.bf16.mxu0 0
    %491 = vmatpush1.bf16.msra.mxu0 0
    %492 = vmatprep.subr.bf16.mxu0 0
    %493 = vmatpush1.bf16.msra.mxu0 0
    %494 = vmatprep.subr.bf16.mxu0 0
    %495 = vmatpush1.bf16.msra.mxu0 0
    %496 = vmatprep.subr.bf16.mxu0 0
    %497 = vmatpush1.bf16.msra.mxu0 0
    %498 = vmatprep.subr.bf16.mxu0 0
    %499 = vmatpush1.bf16.msra.mxu0 %v170
    %500 = vmatprep.subr.bf16.mxu0 0
    %501 = vmatpush1.bf16.msra.mxu0 %v169
    %502 = vmatprep.subr.bf16.mxu0 0
    %503 = vmatpush2.bf16.msra.mxu0 0
    %504 = vmatprep.subr.bf16.mxu0 0
    %505 = vmatpush2.bf16.msra.mxu0 0
    %506 = vmatprep.subr.bf16.mxu0 0
    %507 = vmatpush2.bf16.msra.mxu0 0
    %508 = vmatprep.subr.bf16.mxu0 0
    %509 = vmatpush2.bf16.msra.mxu0 0
    %510 = vmatprep.subr.bf16.mxu0 0
    %511 = vmatpush2.bf16.msra.mxu0 0
    %512 = vmatprep.subr.bf16.mxu0 0
    %513 = vmatpush2.bf16.msra.mxu0 0
    %514 = vmatprep.subr.bf16.mxu0 0
    %515 = vmatpush2.bf16.msra.mxu0 0
    %516 = vmatprep.subr.bf16.mxu0 0
    %517 = vmatpush2.bf16.msra.mxu0 0
    %518 = vmatprep.mubr.bf16.mxu0 0
    %519 = vmatmul.mubr.bf16.gmra.mxu0 %v484
    %v520 = vpop.f32.mrf.mxu0
    %v521 = vadd.f32 0.0, %v520
    %v522 = vpop.f32.mrf.mxu0
    %v523 = vpop.f32.mrf.mxu0
    %v524 = vpop.f32.mrf.mxu0
    %525 = vdwg.mxu0
    %v526 = vadd.f32 %v149, %v521
    %v527 = vxor.u32 %v526, 2147483648
    %v528 = vmul.f32 %v527, 1.442695
    %v529 = vpow.pop %v528
    %v530 = vadd.f32 %v529, 1.0
    %v531 = vrcp.pop %v530
    %v532 = vmul.f32 1.0, %v531
    %v533 = vtanh.pop %v526
    %v535 = vrot.slane %v471, 6
    %v537 = vmul.f32 %v532, %v535
    %539 = vrot.lane.b32.xlu0 %v533, 64
    %v540 = vpop.permute.xlu0 %539
    %v542 = vmul.f32 %v532, %v540
    %544 = vrot.lane.b32.xlu0 %v542, 32
    %v545 = vpop.permute.xlu0 %544
    %v547 = vadd.f32 %v537, %v545
    %v548 = vtanh.pop %v547
    %550 = vrot.lane.b32.xlu0 %v548, 64
    %v551 = vpop.permute.xlu0 %550
    %v553 = vmul.f32 %v532, %v551
    %v554 = vpack.c.bf16 %v553, %v553
    %556 = vrot.lane.b32.xlu0 %v554, 32
    %v557 = vpop.permute.xlu0 %556
    %v559 = vsel %vm173, %v557, 0
    %561 = vmatprep.subr.bf16.mxu0 0
    %562 = vmatpush1.bf16.msra.mxu0 0
    %563 = vmatprep.subr.bf16.mxu0 0
    %564 = vmatpush1.bf16.msra.mxu0 0
    %565 = vmatprep.subr.bf16.mxu0 0
    %566 = vmatpush1.bf16.msra.mxu0 0
    %567 = vmatprep.subr.bf16.mxu0 0
    %568 = vmatpush1.bf16.msra.mxu0 0
    %569 = vmatprep.subr.bf16.mxu0 0
    %570 = vmatpush1.bf16.msra.mxu0 0
    %571 = vmatprep.subr.bf16.mxu0 0
    %572 = vmatpush1.bf16.msra.mxu0 0
    %573 = vmatprep.subr.bf16.mxu0 0
    %574 = vmatpush1.bf16.msra.mxu0 %v170
    %575 = vmatprep.subr.bf16.mxu0 0
    %576 = vmatpush1.bf16.msra.mxu0 %v169
    %577 = vmatprep.subr.bf16.mxu0 0
    %578 = vmatpush2.bf16.msra.mxu0 0
    %579 = vmatprep.subr.bf16.mxu0 0
    %580 = vmatpush2.bf16.msra.mxu0 0
    %581 = vmatprep.subr.bf16.mxu0 0
    %582 = vmatpush2.bf16.msra.mxu0 0
    %583 = vmatprep.subr.bf16.mxu0 0
    %584 = vmatpush2.bf16.msra.mxu0 0
    %585 = vmatprep.subr.bf16.mxu0 0
    %586 = vmatpush2.bf16.msra.mxu0 0
    %587 = vmatprep.subr.bf16.mxu0 0
    %588 = vmatpush2.bf16.msra.mxu0 0
    %589 = vmatprep.subr.bf16.mxu0 0
    %590 = vmatpush2.bf16.msra.mxu0 0
    %591 = vmatprep.subr.bf16.mxu0 0
    %592 = vmatpush2.bf16.msra.mxu0 0
    %593 = vmatprep.mubr.bf16.mxu0 0
    %594 = vmatmul.mubr.bf16.gmra.mxu0 %v559
    %v595 = vpop.f32.mrf.mxu0
    %v596 = vadd.f32 0.0, %v595
    %v597 = vpop.f32.mrf.mxu0
    %v598 = vpop.f32.mrf.mxu0
    %v599 = vpop.f32.mrf.mxu0
    %600 = vdwg.mxu0
    %v602 = vrot.slane %v596, 6
    %v604 = vadd.f32 %v149, %v602
    %v605 = vxor.u32 %v604, 2147483648
    %v606 = vmul.f32 %v605, 1.442695
    %v607 = vpow.pop %v606
    %v608 = vadd.f32 %v607, 1.0
    %v609 = vrcp.pop %v608
    %v610 = vmul.f32 1.0, %v609
    %v611 = vtanh.pop %v604
    %v613 = vrot.slane %v547, 6
    %v615 = vmul.f32 %v610, %v613
    %617 = vrot.lane.b32.xlu0 %v611, 64
    %v618 = vpop.permute.xlu0 %617
    %v620 = vmul.f32 %v610, %v618
    %622 = vrot.lane.b32.xlu0 %v620, 32
    %v623 = vpop.permute.xlu0 %622
    %v625 = vadd.f32 %v615, %v623
    %v626 = vtanh.pop %v625
    %628 = vrot.lane.b32.xlu0 %v626, 64
    %v629 = vpop.permute.xlu0 %628
    %v631 = vmul.f32 %v610, %v629
    %v632 = vpack.c.bf16 %v631, %v631
    %v634 = vrot.slane %v632, 1
    %635 = vrot.lane.b32.xlu0 %v634, 32
    %v636 = vpop.permute.xlu0 %635
    %v638 = vsel %vm173, %v636, 0
    %640 = vmatprep.subr.bf16.mxu0 0
    %641 = vmatpush1.bf16.msra.mxu0 0
    %642 = vmatprep.subr.bf16.mxu0 0
    %643 = vmatpush1.bf16.msra.mxu0 0
    %644 = vmatprep.subr.bf16.mxu0 0
    %645 = vmatpush1.bf16.msra.mxu0 0
    %646 = vmatprep.subr.bf16.mxu0 0
    %647 = vmatpush1.bf16.msra.mxu0 0
    %648 = vmatprep.subr.bf16.mxu0 0
    %649 = vmatpush1.bf16.msra.mxu0 0
    %650 = vmatprep.subr.bf16.mxu0 0
    %651 = vmatpush1.bf16.msra.mxu0 0
    %652 = vmatprep.subr.bf16.mxu0 0
    %653 = vmatpush1.bf16.msra.mxu0 %v170
    %654 = vmatprep.subr.bf16.mxu0 0
    %655 = vmatpush1.bf16.msra.mxu0 %v169
    %656 = vmatprep.subr.bf16.mxu0 0
    %657 = vmatpush2.bf16.msra.mxu0 0
    %658 = vmatprep.subr.bf16.mxu0 0
    %659 = vmatpush2.bf16.msra.mxu0 0
    %660 = vmatprep.subr.bf16.mxu0 0
    %661 = vmatpush2.bf16.msra.mxu0 0
    %662 = vmatprep.subr.bf16.mxu0 0
    %663 = vmatpush2.bf16.msra.mxu0 0
    %664 = vmatprep.subr.bf16.mxu0 0
    %665 = vmatpush2.bf16.msra.mxu0 0
    %666 = vmatprep.subr.bf16.mxu0 0
    %667 = vmatpush2.bf16.msra.mxu0 0
    %668 = vmatprep.subr.bf16.mxu0 0
    %669 = vmatpush2.bf16.msra.mxu0 0
    %670 = vmatprep.subr.bf16.mxu0 0
    %671 = vmatpush2.bf16.msra.mxu0 0
    %672 = vmatprep.mubr.bf16.mxu0 0
    %673 = vmatmul.mubr.bf16.gmra.mxu0 %v638
    %v674 = vpop.f32.mrf.mxu0
    %v675 = vadd.f32 0.0, %v674
    %v676 = vpop.f32.mrf.mxu0
    %v677 = vpop.f32.mrf.mxu0
    %v678 = vpop.f32.mrf.mxu0
    %679 = vdwg.mxu0
    %v681 = vrot.slane %v675, 4
    %v683 = vadd.f32 %v149, %v681
    %v684 = vxor.u32 %v683, 2147483648
    %v685 = vmul.f32 %v684, 1.442695
    %v686 = vpow.pop %v685
    %v687 = vadd.f32 %v686, 1.0
    %v688 = vrcp.pop %v687
    %v689 = vmul.f32 1.0, %v688
    %v690 = vtanh.pop %v683
    %v692 = vrot.slane %v625, 6
    %v694 = vmul.f32 %v689, %v692
    %696 = vrot.lane.b32.xlu0 %v690, 64
    %v697 = vpop.permute.xlu0 %696
    %v699 = vmul.f32 %v689, %v697
    %701 = vrot.lane.b32.xlu0 %v699, 32
    %v702 = vpop.permute.xlu0 %701
    %v704 = vadd.f32 %v694, %v702
    %v705 = vtanh.pop %v704
    %707 = vrot.lane.b32.xlu0 %v705, 64
    %v708 = vpop.permute.xlu0 %707
    %v710 = vmul.f32 %v689, %v708
    %v711 = vpack.c.bf16 %v710, %v710
    %v713 = vrot.slane %v711, 2
    %714 = vrot.lane.b32.xlu0 %v713, 32
    %v715 = vpop.permute.xlu0 %714
    %v717 = vsel %vm173, %v715, 0
    %719 = vmatprep.subr.bf16.mxu0 0
    %720 = vmatpush1.bf16.msra.mxu0 0
    %721 = vmatprep.subr.bf16.mxu0 0
    %722 = vmatpush1.bf16.msra.mxu0 0
    %723 = vmatprep.subr.bf16.mxu0 0
    %724 = vmatpush1.bf16.msra.mxu0 0
    %725 = vmatprep.subr.bf16.mxu0 0
    %726 = vmatpush1.bf16.msra.mxu0 0
    %727 = vmatprep.subr.bf16.mxu0 0
    %728 = vmatpush1.bf16.msra.mxu0 0
    %729 = vmatprep.subr.bf16.mxu0 0
    %730 = vmatpush1.bf16.msra.mxu0 0
    %731 = vmatprep.subr.bf16.mxu0 0
    %732 = vmatpush1.bf16.msra.mxu0 %v170
    %733 = vmatprep.subr.bf16.mxu0 0
    %734 = vmatpush1.bf16.msra.mxu0 %v169
    %735 = vmatprep.subr.bf16.mxu0 0
    %736 = vmatpush2.bf16.msra.mxu0 0
    %737 = vmatprep.subr.bf16.mxu0 0
    %738 = vmatpush2.bf16.msra.mxu0 0
    %739 = vmatprep.subr.bf16.mxu0 0
    %740 = vmatpush2.bf16.msra.mxu0 0
    %741 = vmatprep.subr.bf16.mxu0 0
    %742 = vmatpush2.bf16.msra.mxu0 0
    %743 = vmatprep.subr.bf16.mxu0 0
    %744 = vmatpush2.bf16.msra.mxu0 0
    %745 = vmatprep.subr.bf16.mxu0 0
    %746 = vmatpush2.bf16.msra.mxu0 0
    %747 = vmatprep.subr.bf16.mxu0 0
    %748 = vmatpush2.bf16.msra.mxu0 0
    %749 = vmatprep.subr.bf16.mxu0 0
    %750 = vmatpush2.bf16.msra.mxu0 0
    %751 = vmatprep.mubr.bf16.mxu0 0
    %752 = vmatmul.mubr.bf16.gmra.mxu0 %v717
    %v753 = vpop.f32.mrf.mxu0
    %v754 = vadd.f32 0.0, %v753
    %v755 = vpop.f32.mrf.mxu0
    %v756 = vpop.f32.mrf.mxu0
    %v757 = vpop.f32.mrf.mxu0
    %758 = vdwg.mxu0
    %v760 = vrot.slane %v754, 2
    %v762 = vadd.f32 %v149, %v760
    %v763 = vxor.u32 %v762, 2147483648
    %v764 = vmul.f32 %v763, 1.442695
    %v765 = vpow.pop %v764
    %v766 = vadd.f32 %v765, 1.0
    %v767 = vrcp.pop %v766
    %v768 = vmul.f32 1.0, %v767
    %v769 = vtanh.pop %v762
    %v771 = vrot.slane %v704, 6
    %v773 = vmul.f32 %v768, %v771
    %775 = vrot.lane.b32.xlu0 %v769, 64
    %v776 = vpop.permute.xlu0 %775
    %v778 = vmul.f32 %v768, %v776
    %780 = vrot.lane.b32.xlu0 %v778, 32
    %v781 = vpop.permute.xlu0 %780
    %v783 = vadd.f32 %v773, %v781
    %v784 = vtanh.pop %v783
    %786 = vrot.lane.b32.xlu0 %v784, 64
    %v787 = vpop.permute.xlu0 %786
    %v789 = vmul.f32 %v768, %v787
    %v794 = vunpack.c.l.b16 %v157
    %v795 = vunpack.c.l.b16 %v158
    %v796 = vunpack.c.l.b16 %v159
    %v797 = vunpack.c.l.b16 %v160
    %v798 = vpack.c.b16 %v795, %v794
    %v799 = vpack.c.b16 %v797, %v796
    %802 = vmatprep.subr.bf16.mxu0 0
    %803 = vmatpush1.bf16.msra.mxu0 0
    %804 = vmatprep.subr.bf16.mxu0 0
    %805 = vmatpush1.bf16.msra.mxu0 0
    %806 = vmatprep.subr.bf16.mxu0 0
    %807 = vmatpush1.bf16.msra.mxu0 0
    %808 = vmatprep.subr.bf16.mxu0 0
    %809 = vmatpush1.bf16.msra.mxu0 0
    %810 = vmatprep.subr.bf16.mxu0 0
    %811 = vmatpush1.bf16.msra.mxu0 0
    %812 = vmatprep.subr.bf16.mxu0 0
    %813 = vmatpush1.bf16.msra.mxu0 0
    %814 = vmatprep.subr.bf16.mxu0 0
    %815 = vmatpush1.bf16.msra.mxu0 %v799
    %816 = vmatprep.subr.bf16.mxu0 0
    %817 = vmatpush1.bf16.msra.mxu0 %v798
    %818 = vmatprep.subr.bf16.mxu0 0
    %819 = vmatpush2.bf16.msra.mxu0 0
    %820 = vmatprep.subr.bf16.mxu0 0
    %821 = vmatpush2.bf16.msra.mxu0 0
    %822 = vmatprep.subr.bf16.mxu0 0
    %823 = vmatpush2.bf16.msra.mxu0 0
    %824 = vmatprep.subr.bf16.mxu0 0
    %825 = vmatpush2.bf16.msra.mxu0 0
    %826 = vmatprep.subr.bf16.mxu0 0
    %827 = vmatpush2.bf16.msra.mxu0 0
    %828 = vmatprep.subr.bf16.mxu0 0
    %829 = vmatpush2.bf16.msra.mxu0 0
    %830 = vmatprep.subr.bf16.mxu0 0
    %831 = vmatpush2.bf16.msra.mxu0 0
    %832 = vmatprep.subr.bf16.mxu0 0
    %833 = vmatpush2.bf16.msra.mxu0 0
    %834 = vmatprep.mubr.bf16.mxu0 0
    %835 = vmatmul.mubr.bf16.gmra.mxu0 %v175
    %v836 = vpop.f32.mrf.mxu0
    %v837 = vadd.f32 0.0, %v836
    %v838 = vpop.f32.mrf.mxu0
    %v839 = vpop.f32.mrf.mxu0
    %v840 = vpop.f32.mrf.mxu0
    %841 = vdwg.mxu0
    %v843 = vrot.slane %v837, 2
    %v845 = vadd.f32 %v151, %v843
    %v846 = vxor.u32 %v845, 2147483648
    %v847 = vmul.f32 %v846, 1.442695
    %v848 = vpow.pop %v847
    %v849 = vadd.f32 %v848, 1.0
    %v850 = vrcp.pop %v849
    %v851 = vmul.f32 1.0, %v850
    %v852 = vtanh.pop %v845
    %v853 = vmul.f32 %v851, 0.0
    %855 = vrot.lane.b32.xlu0 %v852, 64
    %v856 = vpop.permute.xlu0 %855
    %v858 = vmul.f32 %v851, %v856
    %860 = vrot.lane.b32.xlu0 %v858, 32
    %v861 = vpop.permute.xlu0 %860
    %v863 = vadd.f32 %v853, %v861
    %v864 = vtanh.pop %v863
    %866 = vrot.lane.b32.xlu0 %v864, 64
    %v867 = vpop.permute.xlu0 %866
    %v869 = vmul.f32 %v851, %v867
    %871 = vrot.lane.b32.xlu0 %v789, 32
    %v872 = vpop.permute.xlu0 %871
    %875 = vrot.lane.b32.xlu0 %v869, 64
    %v876 = vpop.permute.xlu0 %875
    %v878 = vsel %vm173, %v872, %v876
    %v879 = vmax.f32 %v878, 0.0
    %v880 = vld [vmem:[%s7] sm:$0x1]
    %v882 = vlaneseq
    %v883 = vshrl.u32 %v882, 7
    %v884 = vsub.s32 0, %v883
    %v885 = vrot.slane %v880, %v884
    %v887 = vsub.f32 %v879, %v885
    %v888 = vld [vmem:[%s8] sm:$0x1]
    %v889 = vadd.f32 %v888, 1e-05
    %v890 = vrsqrt.pop %v889
    %v892 = vlaneseq
    %v893 = vshrl.u32 %v892, 7
    %v894 = vsub.s32 0, %v893
    %v895 = vrot.slane %v890, %v894
    %v897 = vmul.f32 %v887, %v895
    %v898 = vld [vmem:[%s5] sm:$0x1]
    %v900 = vlaneseq
    %v901 = vshrl.u32 %v900, 7
    %v902 = vsub.s32 0, %v901
    %v903 = vrot.slane %v898, %v902
    %v905 = vmul.f32 %v897, %v903
    %v906 = vld [vmem:[%s6] sm:$0x1]
    %v908 = vlaneseq
    %v909 = vshrl.u32 %v908, 7
    %v910 = vsub.s32 0, %v909
    %v911 = vrot.slane %v906, %v910
    %v913 = vadd.f32 %v905, %v911
    %v914 = vpack.c.bf16 %v913, %v913
    %v915 = vld [vmem:[%s9] sm:$0xf]
    %v916 = vld [vmem:[%s9 + $0x4] sm:$0xf]
    %v917 = vld [vmem:[%s9 + $0x8] sm:$0xf]
    %v918 = vld [vmem:[%s9 + $0xc] sm:$0xf]
    %v919 = vld [vmem:[%s9 + $0x10] sm:$0xf]
    %v920 = vld [vmem:[%s9 + $0x14] sm:$0xf]
    %v921 = vld [vmem:[%s9 + $0x18] sm:$0xf]
    %v922 = vld [vmem:[%s9 + $0x1c] sm:$0xf]
    %v923 = vld [vmem:[%s10] sm:$0x1]
    %v925 = vlaneseq
    %v926 = vshrl.u32 %v925, 7
    %v927 = vsub.s32 0, %v926
    %v928 = vrot.slane %v923, %v927
    %v931 = vrot.slane %v914, 3
    %v940 = vunpack.c.l.b16 %v915
    %v941 = vunpack.c.l.b16 %v916
    %v942 = vunpack.c.l.b16 %v917
    %v943 = vunpack.c.l.b16 %v918
    %v944 = vunpack.c.l.b16 %v919
    %v945 = vunpack.c.l.b16 %v920
    %v946 = vunpack.c.l.b16 %v921
    %v947 = vunpack.c.l.b16 %v922
    %v948 = vpack.c.b16 %v941, %v940
    %v949 = vpack.c.b16 %v943, %v942
    %v950 = vpack.c.b16 %v945, %v944
    %v951 = vpack.c.b16 %v947, %v946
    %v957 = vsel %vm107, %v931, 0
    %959 = vmatprep.subr.bf16.mxu0 0
    %960 = vmatpush1.bf16.msra.mxu0 0
    %961 = vmatprep.subr.bf16.mxu0 0
    %962 = vmatpush1.bf16.msra.mxu0 0
    %963 = vmatprep.subr.bf16.mxu0 0
    %964 = vmatpush1.bf16.msra.mxu0 0
    %965 = vmatprep.subr.bf16.mxu0 0
    %966 = vmatpush1.bf16.msra.mxu0 0
    %967 = vmatprep.subr.bf16.mxu0 0
    %968 = vmatpush1.bf16.msra.mxu0 %v951
    %969 = vmatprep.subr.bf16.mxu0 0
    %970 = vmatpush1.bf16.msra.mxu0 %v950
    %971 = vmatprep.subr.bf16.mxu0 0
    %972 = vmatpush1.bf16.msra.mxu0 %v949
    %973 = vmatprep.subr.bf16.mxu0 0
    %974 = vmatpush1.bf16.msra.mxu0 %v948
    %975 = vmatprep.subr.bf16.mxu0 0
    %976 = vmatpush2.bf16.msra.mxu0 0
    %977 = vmatprep.subr.bf16.mxu0 0
    %978 = vmatpush2.bf16.msra.mxu0 0
    %979 = vmatprep.subr.bf16.mxu0 0
    %980 = vmatpush2.bf16.msra.mxu0 0
    %981 = vmatprep.subr.bf16.mxu0 0
    %982 = vmatpush2.bf16.msra.mxu0 0
    %983 = vmatprep.subr.bf16.mxu0 0
    %984 = vmatpush2.bf16.msra.mxu0 0
    %985 = vmatprep.subr.bf16.mxu0 0
    %986 = vmatpush2.bf16.msra.mxu0 0
    %987 = vmatprep.subr.bf16.mxu0 0
    %988 = vmatpush2.bf16.msra.mxu0 0
    %989 = vmatprep.subr.bf16.mxu0 0
    %990 = vmatpush2.bf16.msra.mxu0 0
    %991 = vmatprep.mubr.bf16.mxu0 0
    %992 = vmatmul.mubr.bf16.gmra.mxu0 %v957
    %v993 = vpop.f32.mrf.mxu0
    %v994 = vadd.f32 %v928, %v993
    %v995 = vpop.f32.mrf.mxu0
    %v996 = vpop.f32.mrf.mxu0
    %v997 = vpop.f32.mrf.mxu0
    %998 = vdwg.mxu0
    %vm999 = vcmask 74752
    %v1000 = vsel %vm999, %v994, -inf
    %1001 = vmax.xlane.f32.xlu0 %v1000
    %v1002 = vpop.xlane.xlu0 %1001
    %v1003 = vsub.f32 %v994, %v1002
    %v1004 = vmul.f32 %v1003, 1.442695
    %v1005 = vpow.pop %v1004
    %v1006 = vsel %vm999, %v1005, 0.0
    %1007 = vadd.xlane.f32.xlu0 %v1006
    %v1008 = vpop.xlane.xlu0 %1007
    %v1009 = vlog2.pop %v1008
    %v1010 = vmul.f32 %v1009, 0.6931472
    %v1011 = vadd.f32 %v1010, %v1002
    %v1012 = vsub.f32 %v994, %v1011
    %1013 = vst.msk [vmem:[#allocation2] sm:$0x3] %vm999, %v1012
    // Predicated region
    $region46: #{sequence_classifier_forward.7} parent=1 // pred_check
      _
    $region47: #{sequence_classifier_forward.7} parent=1 // pred_check_branch
      %1015 = sbr.rel (0) target = $region49
    $region48: #{sequence_classifier_forward.7} parent=1 // pred_region
      %s1017 = ssub.s32 32, 32
      %1018 = vsyncadd [#allocation3], %s1017
      %s1020 = sshll.u32 [#allocation2], 4
      %s1021 = int_to_ptr.vmem [resolvable:$true] %s1020
      %1023 = dma.vmem_to_hbm [thread:$0]  %s1021, 32, %s11, [#allocation3]
    $region49: #{sequence_classifier_forward.7} parent=1 // pred_fallthru
      _
    // Predicated region
    $region50: #{sequence_classifier_forward.7} parent=1 // pred_check
      _
    $region51: #{sequence_classifier_forward.7} parent=1 // pred_check_branch
      %1025 = sbr.rel (0) target = $region53
    $region52: #{sequence_classifier_forward.7} parent=1 // pred_region
      %1026 = dma.done [#allocation3], 32
    $region53: #{sequence_classifier_forward.7} parent=1 // pred_fallthru
      _
    %1027 = vsyncpa [#allocation3], 1

// kernel: sequence_classifier_forward.4
$region0: #{sequence_classifier_forward.4}
  #allocation0 [shape = 'u32[]', space=smem, size = 0x4, offset = 0x4, fixed_abs, tag = 'smem constant byte address 0x4 - core index']
  #allocation1 [shape = 'u32[144,128]{1,0:T(1,128)}', space=vmem, size = 0x12000, scoped, tag = 'internal scratch']
  %s0 = inlined_call_operand.vmem [shape: bf16[16,16], index: 0, kind: input, shape index: {}]
  %s1 = inlined_call_operand.hbm [shape: bf16[16,256], index: 1, kind: input, shape index: {}]
  %s2 = inlined_call_operand.hbm [shape: bf16[32,128], index: 2, kind: input, shape index: {}]
  %s3 = inlined_call_operand.hbm [shape: bf16[32,128], index: 3, kind: input, shape index: {}]
  %s4 = inlined_call_operand.hbm [shape: f32[1,256], index: 4, kind: input, shape index: {}]
  %s5 = inlined_call_operand.vmem [shape: bf16[16,64], index: 5, kind: output, shape index: {}]
  %s6 = sld [smem:[#allocation0]]
  $region46: #{sequence_classifier_forward.4} parent=0
    _
  %s8 = ssub.s32 1, %s6
  %s9 = scalar_select 0, %s8, %s6
  $region1: #{sequence_classifier_forward.4} parent=0
    #allocation2 [shape = 'u8[8192]{0}', space=vmem, size = 0x2000, scoped, tag = 'input window, operand 1, single buffered']
    #allocation3 [shape = 's32[1]{0}', space=sflag, size = 0x4, scoped, tag = 'scoped memory for sequence_classifier_forward.4']
    #allocation4 [shape = 'u8[8192]{0}', space=vmem, size = 0x2000, scoped, tag = 'input window, operand 2, single buffered']
    #allocation5 [shape = 's32[1]{0}', space=sflag, size = 0x4, scoped, tag = 'scoped memory for sequence_classifier_forward.4']
    #allocation6 [shape = 'u8[8192]{0}', space=vmem, size = 0x2000, scoped, tag = 'input window, operand 3, single buffered']
    #allocation7 [shape = 'u8[1024]{0}', space=vmem, size = 0x400, scoped, tag = 'input window, operand 4, single buffered']
    #allocation8 [shape = 's32[1]{0}', space=sflag, size = 0x4, scoped, tag = 'scoped memory for sequence_classifier_forward.4']
    %10 = vsyncpa [#allocation3], 0
    %11 = vsyncpa [#allocation5], 0
    %12 = vsyncpa [#allocation8], 0
    // Predicated region
    $region2: #{sequence_classifier_forward.4} parent=1 // pred_check
      _
    $region3: #{sequence_classifier_forward.4} parent=1 // pred_check_branch
      %14 = sbr.rel (0) target = $region5
    $region4: #{sequence_classifier_forward.4} parent=1 // pred_region
      _
    $region5: #{sequence_classifier_forward.4} parent=1 // pred_fallthru
      _
    // Predicated region
    $region6: #{sequence_classifier_forward.4} parent=1 // pred_check
      _
    $region7: #{sequence_classifier_forward.4} parent=1 // pred_check_branch
      %16 = sbr.rel (0) target = $region9
    $region8: #{sequence_classifier_forward.4} parent=1 // pred_region
      %s18 = ssub.s32 256, 256
      %19 = vsyncadd [#allocation3], %s18
      %s20 = sshll.u32 [#allocation2], 4
      %s21 = int_to_ptr.vmem [resolvable:$true] %s20
      %26 = dma.hbm_to_vmem [thread:$0]  %s1, 256, %s21, [#allocation3], 128, 128, 8
    $region9: #{sequence_classifier_forward.4} parent=1 // pred_fallthru
      _
    // Predicated region
    $region10: #{sequence_classifier_forward.4} parent=1 // pred_check
      _
    $region11: #{sequence_classifier_forward.4} parent=1 // pred_check_branch
      %28 = sbr.rel (0) target = $region13
    $region12: #{sequence_classifier_forward.4} parent=1 // pred_region
      %s30 = ssub.s32 256, 256
      %31 = vsyncadd [#allocation5], %s30
      %s32 = sshll.u32 [#allocation4], 4
      %s33 = int_to_ptr.vmem [resolvable:$true] %s32
      %38 = dma.hbm_to_vmem [thread:$0]  %s2, 256, %s33, [#allocation5], 64, 64, 4
    $region13: #{sequence_classifier_forward.4} parent=1 // pred_fallthru
      _
    // Predicated region
    $region14: #{sequence_classifier_forward.4} parent=1 // pred_check
      _
    $region15: #{sequence_classifier_forward.4} parent=1 // pred_check_branch
      %40 = sbr.rel (0) target = $region17
    $region16: #{sequence_classifier_forward.4} parent=1 // pred_region
      %s42 = ssub.s32 256, 256
      %43 = vsyncadd [#allocation5], %s42
      %s44 = sshll.u32 [#allocation6], 4
      %s45 = int_to_ptr.vmem [resolvable:$true] %s44
      %50 = dma.hbm_to_vmem [thread:$0]  %s3, 256, %s45, [#allocation5], 64, 64, 4
    $region17: #{sequence_classifier_forward.4} parent=1 // pred_fallthru
      _
    // Predicated region
    $region18: #{sequence_classifier_forward.4} parent=1 // pred_check
      _
    $region19: #{sequence_classifier_forward.4} parent=1 // pred_check_branch
      %52 = sbr.rel (0) target = $region21
    $region20: #{sequence_classifier_forward.4} parent=1 // pred_region
      %s54 = ssub.s32 32, 32
      %55 = vsyncadd [#allocation8], %s54
      %s57 = sshll.u32 [#allocation7], 4
      %s58 = int_to_ptr.vmem [resolvable:$true] %s57
      %60 = dma.hbm_to_vmem [thread:$0]  %s4, 32, %s58, [#allocation8]
    $region21: #{sequence_classifier_forward.4} parent=1 // pred_fallthru
      _
    // Predicated region
    $region22: #{sequence_classifier_forward.4} parent=1 // pred_check
      _
    $region23: #{sequence_classifier_forward.4} parent=1 // pred_check_branch
      %62 = sbr.rel (0) target = $region25
    $region24: #{sequence_classifier_forward.4} parent=1 // pred_region
      %63 = dma.done [#allocation3], 256
    $region25: #{sequence_classifier_forward.4} parent=1 // pred_fallthru
      _
    // Predicated region
    $region26: #{sequence_classifier_forward.4} parent=1 // pred_check
      _
    $region27: #{sequence_classifier_forward.4} parent=1 // pred_check_branch
      %65 = sbr.rel (0) target = $region29
    $region28: #{sequence_classifier_forward.4} parent=1 // pred_region
      %66 = dma.done [#allocation5], 256
    $region29: #{sequence_classifier_forward.4} parent=1 // pred_fallthru
      _
    // Predicated region
    $region30: #{sequence_classifier_forward.4} parent=1 // pred_check
      _
    $region31: #{sequence_classifier_forward.4} parent=1 // pred_check_branch
      %68 = sbr.rel (0) target = $region33
    $region32: #{sequence_classifier_forward.4} parent=1 // pred_region
      %69 = dma.done [#allocation5], 256
    $region33: #{sequence_classifier_forward.4} parent=1 // pred_fallthru
      _
    // Predicated region
    $region34: #{sequence_classifier_forward.4} parent=1 // pred_check
      _
    $region35: #{sequence_classifier_forward.4} parent=1 // pred_check_branch
      %71 = sbr.rel (0) target = $region37
    $region36: #{sequence_classifier_forward.4} parent=1 // pred_region
      %72 = dma.done [#allocation8], 32
    $region37: #{sequence_classifier_forward.4} parent=1 // pred_fallthru
      _
    %v74 = vld [vmem:[%s0] sm:$0xf]
    %v75 = vld [vmem:[%s0 + $0x4] sm:$0xf]
    %v76 = vld [vmem:[#allocation2] sm:$0xff]
    %v77 = vld [vmem:[#allocation2 + $0x8] sm:$0xff]
    %v78 = vld [vmem:[#allocation7] sm:$0x3]
    %v80 = vlaneseq
    %v81 = vshrl.u32 %v80, 7
    %v82 = vsub.s32 0, %v81
    %v83 = vrot.slane %v78, %v82
    %v84 = vlaneseq
    %v85 = vshrl.u32 %v84, 7
    %v86 = vsub.s32 1, %v85
    %v87 = vrot.slane %v78, %v86
    %v92 = vunpack.c.l.b16 %v74
    %v93 = vunpack.c.l.b16 %v75
    %v94 = vpack.c.b16 %v93, %v92
    %v97 = vunpack.c.l.b16 %v76
    %v98 = vunpack.c.h.b16 %v76
    %v99 = vunpack.c.l.b16 %v77
    %v100 = vunpack.c.h.b16 %v77
    %v101 = vpack.c.b16 %v99, %v97
    %v102 = vpack.c.b16 %v100, %v98
    %vm105 = vcmask 130048
    %v107 = vsel %vm105, %v94, 0
    %109 = vmatprep.subr.bf16.mxu0 0
    %110 = vmatpush1.bf16.msra.mxu0 0
    %111 = vmatprep.subr.bf16.mxu0 0
    %112 = vmatpush1.bf16.msra.mxu0 0
    %113 = vmatprep.subr.bf16.mxu0 0
    %114 = vmatpush1.bf16.msra.mxu0 0
    %115 = vmatprep.subr.bf16.mxu0 0
    %116 = vmatpush1.bf16.msra.mxu0 0
    %117 = vmatprep.subr.bf16.mxu0 0
    %118 = vmatpush1.bf16.msra.mxu0 0
    %119 = vmatprep.subr.bf16.mxu0 0
    %120 = vmatpush1.bf16.msra.mxu0 0
    %121 = vmatprep.subr.bf16.mxu0 0
    %122 = vmatpush1.bf16.msra.mxu0 0
    %123 = vmatprep.subr.bf16.mxu0 %v102
    %124 = vmatpush1.bf16.msra.mxu0 %v101
    %125 = vmatprep.subr.bf16.mxu0 0
    %126 = vmatpush2.bf16.msra.mxu0 0
    %127 = vmatprep.subr.bf16.mxu0 0
    %128 = vmatpush2.bf16.msra.mxu0 0
    %129 = vmatprep.subr.bf16.mxu0 0
    %130 = vmatpush2.bf16.msra.mxu0 0
    %131 = vmatprep.subr.bf16.mxu0 0
    %132 = vmatpush2.bf16.msra.mxu0 0
    %133 = vmatprep.subr.bf16.mxu0 0
    %134 = vmatpush2.bf16.msra.mxu0 0
    %135 = vmatprep.subr.bf16.mxu0 0
    %136 = vmatpush2.bf16.msra.mxu0 0
    %137 = vmatprep.subr.bf16.mxu0 0
    %138 = vmatpush2.bf16.msra.mxu0 0
    %139 = vmatprep.subr.bf16.mxu0 0
    %140 = vmatpush2.bf16.msra.mxu0 0
    %141 = vmatprep.mubr.bf16.mxu0 0
    %142 = vmatmul.mubr.bf16.gmra.mxu0 %v107
    %v143 = vpop.f32.mrf.mxu0
    %v144 = vadd.f32 %v83, %v143
    %v145 = vpop.f32.mrf.mxu0
    %v146 = vadd.f32 %v87, %v145
    %v147 = vpop.f32.mrf.mxu0
    %v148 = vadd.f32 %v83, %v147
    %v149 = vpop.f32.mrf.mxu0
    %v150 = vadd.f32 %v87, %v149
    %151 = vdwg.mxu0
    %v152 = vld [vmem:[#allocation4] sm:$0xf]
    %v153 = vld [vmem:[#allocation4 + $0x4] sm:$0xf]
    %v154 = vld [vmem:[#allocation4 + $0x8] sm:$0xf]
    %v155 = vld [vmem:[#allocation4 + $0xc] sm:$0xf]
    %v156 = vld [vmem:[#allocation6] sm:$0xf]
    %v157 = vld [vmem:[#allocation6 + $0x4] sm:$0xf]
    %v158 = vld [vmem:[#allocation6 + $0x8] sm:$0xf]
    %v159 = vld [vmem:[#allocation6 + $0xc] sm:$0xf]
    %v164 = vunpack.c.l.b16 %v152
    %v165 = vunpack.c.l.b16 %v153
    %v166 = vunpack.c.l.b16 %v154
    %v167 = vunpack.c.l.b16 %v155
    %v168 = vpack.c.b16 %v165, %v164
    %v169 = vpack.c.b16 %v167, %v166
    %vm172 = vcmask 261120
    %v174 = vsel %vm172, 0, 0
    %176 = vmatprep.subr.bf16.mxu0 0
    %177 = vmatpush1.bf16.msra.mxu0 0
    %178 = vmatprep.subr.bf16.mxu0 0
    %179 = vmatpush1.bf16.msra.mxu0 0
    %180 = vmatprep.subr.bf16.mxu0 0
    %181 = vmatpush1.bf16.msra.mxu0 0
    %182 = vmatprep.subr.bf16.mxu0 0
    %183 = vmatpush1.bf16.msra.mxu0 0
    %184 = vmatprep.subr.bf16.mxu0 0
    %185 = vmatpush1.bf16.msra.mxu0 0
    %186 = vmatprep.subr.bf16.mxu0 0
    %187 = vmatpush1.bf16.msra.mxu0 0
    %188 = vmatprep.subr.bf16.mxu0 0
    %189 = vmatpush1.bf16.msra.mxu0 %v169
    %190 = vmatprep.subr.bf16.mxu0 0
    %191 = vmatpush1.bf16.msra.mxu0 %v168
    %192 = vmatprep.subr.bf16.mxu0 0
    %193 = vmatpush2.bf16.msra.mxu0 0
    %194 = vmatprep.subr.bf16.mxu0 0
    %195 = vmatpush2.bf16.msra.mxu0 0
    %196 = vmatprep.subr.bf16.mxu0 0
    %197 = vmatpush2.bf16.msra.mxu0 0
    %198 = vmatprep.subr.bf16.mxu0 0
    %199 = vmatpush2.bf16.msra.mxu0 0
    %200 = vmatprep.subr.bf16.mxu0 0
    %201 = vmatpush2.bf16.msra.mxu0 0
    %202 = vmatprep.subr.bf16.mxu0 0
    %203 = vmatpush2.bf16.msra.mxu0 0
    %204 = vmatprep.subr.bf16.mxu0 0
    %205 = vmatpush2.bf16.msra.mxu0 0
    %206 = vmatprep.subr.bf16.mxu0 0
    %207 = vmatpush2.bf16.msra.mxu0 0
    %208 = vmatprep.mubr.bf16.mxu0 0
    %209 = vmatmul.mubr.bf16.gmra.mxu0 %v174
    %v210 = vpop.f32.mrf.mxu0
    %v211 = vadd.f32 0.0, %v210
    %v212 = vpop.f32.mrf.mxu0
    %v213 = vpop.f32.mrf.mxu0
    %v214 = vpop.f32.mrf.mxu0
    %215 = vdwg.mxu0
    %v216 = vadd.f32 %v144, %v211
    %v217 = vxor.u32 %v216, 2147483648
    %v218 = vmul.f32 %v217, 1.442695
    %v219 = vpow.pop %v218
    %v220 = vadd.f32 %v219, 1.0
    %v221 = vrcp.pop %v220
    %v222 = vmul.f32 1.0, %v221
    %v223 = vtanh.pop %v216
    %v224 = vmul.f32 %v222, 0.0
    %226 = vrot.lane.b32.xlu0 %v223, 64
    %v227 = vpop.permute.xlu0 %226
    %v229 = vmul.f32 %v222, %v227
    %231 = vrot.lane.b32.xlu0 %v229, 32
    %v232 = vpop.permute.xlu0 %231
    %v234 = vadd.f32 %v224, %v232
    %v235 = vtanh.pop %v234
    %237 = vrot.lane.b32.xlu0 %v235, 64
    %v238 = vpop.permute.xlu0 %237
    %v240 = vmul.f32 %v222, %v238
    %v241 = vpack.c.bf16 %v240, %v240
    %v243 = vunpack.c.l.b16 %v241
    %v244 = vpack.c.b16 %v243, %v243
    %245 = vrot.lane.b32.xlu0 %v244, 32
    %v246 = vpop.permute.xlu0 %245
    %vm248 = vcmask 253952
    %249 = vst.msk [vmem:[%s5] sm:$0x1] %vm248, %v246
    %v254 = vunpack.c.l.b16 %v156
    %v255 = vunpack.c.l.b16 %v157
    %v256 = vunpack.c.l.b16 %v158
    %v257 = vunpack.c.l.b16 %v159
    %v258 = vpack.c.b16 %v255, %v254
    %v259 = vpack.c.b16 %v257, %v256
    %262 = vmatprep.subr.bf16.mxu0 0
    %263 = vmatpush1.bf16.msra.mxu0 0
    %264 = vmatprep.subr.bf16.mxu0 0
    %265 = vmatpush1.bf16.msra.mxu0 0
    %266 = vmatprep.subr.bf16.mxu0 0
    %267 = vmatpush1.bf16.msra.mxu0 0
    %268 = vmatprep.subr.bf16.mxu0 0
    %269 = vmatpush1.bf16.msra.mxu0 0
    %270 = vmatprep.subr.bf16.mxu0 0
    %271 = vmatpush1.bf16.msra.mxu0 0
    %272 = vmatprep.subr.bf16.mxu0 0
    %273 = vmatpush1.bf16.msra.mxu0 0
    %274 = vmatprep.subr.bf16.mxu0 0
    %275 = vmatpush1.bf16.msra.mxu0 %v259
    %276 = vmatprep.subr.bf16.mxu0 0
    %277 = vmatpush1.bf16.msra.mxu0 %v258
    %278 = vmatprep.subr.bf16.mxu0 0
    %279 = vmatpush2.bf16.msra.mxu0 0
    %280 = vmatprep.subr.bf16.mxu0 0
    %281 = vmatpush2.bf16.msra.mxu0 0
    %282 = vmatprep.subr.bf16.mxu0 0
    %283 = vmatpush2.bf16.msra.mxu0 0
    %284 = vmatprep.subr.bf16.mxu0 0
    %285 = vmatpush2.bf16.msra.mxu0 0
    %286 = vmatprep.subr.bf16.mxu0 0
    %287 = vmatpush2.bf16.msra.mxu0 0
    %288 = vmatprep.subr.bf16.mxu0 0
    %289 = vmatpush2.bf16.msra.mxu0 0
    %290 = vmatprep.subr.bf16.mxu0 0
    %291 = vmatpush2.bf16.msra.mxu0 0
    %292 = vmatprep.subr.bf16.mxu0 0
    %293 = vmatpush2.bf16.msra.mxu0 0
    %294 = vmatprep.mubr.bf16.mxu0 0
    %295 = vmatmul.mubr.bf16.gmra.mxu0 %v174
    %v296 = vpop.f32.mrf.mxu0
    %v297 = vadd.f32 0.0, %v296
    %v298 = vpop.f32.mrf.mxu0
    %v299 = vpop.f32.mrf.mxu0
    %v300 = vpop.f32.mrf.mxu0
    %301 = vdwg.mxu0
    %v303 = vrot.slane %v297, 2
    %v305 = vadd.f32 %v150, %v303
    %v306 = vxor.u32 %v305, 2147483648
    %v307 = vmul.f32 %v306, 1.442695
    %v308 = vpow.pop %v307
    %v309 = vadd.f32 %v308, 1.0
    %v310 = vrcp.pop %v309
    %v311 = vmul.f32 1.0, %v310
    %v312 = vtanh.pop %v305
    %v313 = vmul.f32 %v311, 0.0
    %315 = vrot.lane.b32.xlu0 %v312, 64
    %v316 = vpop.permute.xlu0 %315
    %v318 = vmul.f32 %v311, %v316
    %320 = vrot.lane.b32.xlu0 %v318, 32
    %v321 = vpop.permute.xlu0 %320
    %v323 = vadd.f32 %v313, %v321
    %v324 = vtanh.pop %v323
    %326 = vrot.lane.b32.xlu0 %v324, 64
    %v327 = vpop.permute.xlu0 %326
    %v329 = vmul.f32 %v311, %v327
    %v330 = vpack.c.bf16 %v329, %v329
    %v332 = vunpack.c.l.b16 %v330
    %v333 = vpack.c.b16 %v332, %v332
    %334 = vrot.lane.b32.xlu0 %v333, 64
    %v335 = vpop.permute.xlu0 %334
    %vm337 = vcmask 519427
    %338 = vst.msk [vmem:[%s5 + $0x4] sm:$0x8] %vm337, %v335
    %339 = vrot.lane.b32.xlu0 %v241, 32
    %v340 = vpop.permute.xlu0 %339
    %v342 = vsel %vm172, %v340, 0
    %344 = vmatprep.subr.bf16.mxu0 0
    %345 = vmatpush1.bf16.msra.mxu0 0
    %346 = vmatprep.subr.bf16.mxu0 0
    %347 = vmatpush1.bf16.msra.mxu0 0
    %348 = vmatprep.subr.bf16.mxu0 0
    %349 = vmatpush1.bf16.msra.mxu0 0
    %350 = vmatprep.subr.bf16.mxu0 0
    %351 = vmatpush1.bf16.msra.mxu0 0
    %352 = vmatprep.subr.bf16.mxu0 0
    %353 = vmatpush1.bf16.msra.mxu0 0
    %354 = vmatprep.subr.bf16.mxu0 0
    %355 = vmatpush1.bf16.msra.mxu0 0
    %356 = vmatprep.subr.bf16.mxu0 0
    %357 = vmatpush1.bf16.msra.mxu0 %v169
    %358 = vmatprep.subr.bf16.mxu0 0
    %359 = vmatpush1.bf16.msra.mxu0 %v168
    %360 = vmatprep.subr.bf16.mxu0 0
    %361 = vmatpush2.bf16.msra.mxu0 0
    %362 = vmatprep.subr.bf16.mxu0 0
    %363 = vmatpush2.bf16.msra.mxu0 0
    %364 = vmatprep.subr.bf16.mxu0 0
    %365 = vmatpush2.bf16.msra.mxu0 0
    %366 = vmatprep.subr.bf16.mxu0 0
    %367 = vmatpush2.bf16.msra.mxu0 0
    %368 = vmatprep.subr.bf16.mxu0 0
    %369 = vmatpush2.bf16.msra.mxu0 0
    %370 = vmatprep.subr.bf16.mxu0 0
    %371 = vmatpush2.bf16.msra.mxu0 0
    %372 = vmatprep.subr.bf16.mxu0 0
    %373 = vmatpush2.bf16.msra.mxu0 0
    %374 = vmatprep.subr.bf16.mxu0 0
    %375 = vmatpush2.bf16.msra.mxu0 0
    %376 = vmatprep.mubr.bf16.mxu0 0
    %377 = vmatmul.mubr.bf16.gmra.mxu0 %v342
    %v378 = vpop.f32.mrf.mxu0
    %v379 = vadd.f32 0.0, %v378
    %v380 = vpop.f32.mrf.mxu0
    %v381 = vpop.f32.mrf.mxu0
    %v382 = vpop.f32.mrf.mxu0
    %383 = vdwg.mxu0
    %v385 = vrot.slane %v379, 6
    %v387 = vadd.f32 %v144, %v385
    %v388 = vxor.u32 %v387, 2147483648
    %v389 = vmul.f32 %v388, 1.442695
    %v390 = vpow.pop %v389
    %v391 = vadd.f32 %v390, 1.0
    %v392 = vrcp.pop %v391
    %v393 = vmul.f32 1.0, %v392
    %v394 = vtanh.pop %v387
    %v396 = vrot.slane %v234, 6
    %v398 = vmul.f32 %v393, %v396
    %400 = vrot.lane.b32.xlu0 %v394, 64
    %v401 = vpop.permute.xlu0 %400
    %v403 = vmul.f32 %v393, %v401
    %405 = vrot.lane.b32.xlu0 %v403, 32
    %v406 = vpop.permute.xlu0 %405
    %v408 = vadd.f32 %v398, %v406
    %v409 = vtanh.pop %v408
    %411 = vrot.lane.b32.xlu0 %v409, 64
    %v412 = vpop.permute.xlu0 %411
    %v414 = vmul.f32 %v393, %v412
    %v415 = vpack.c.bf16 %v414, %v414
    %v417 = vunpack.c.l.b16 %v415
    %v418 = vpack.c.b16 %v417, %v417
    %419 = vrot.lane.b32.xlu0 %v418, 32
    %v420 = vpop.permute.xlu0 %419
    %vm422 = vcmask 254977
    %423 = vst.msk [vmem:[%s5] sm:$0x2] %vm422, %v420
    %v424 = vrot.slane %v330, 3
    %425 = vrot.lane.b32.xlu0 %v424, 32
    %v426 = vpop.permute.xlu0 %425
    %v428 = vsel %vm172, %v426, 0
    %430 = vmatprep.subr.bf16.mxu0 0
    %431 = vmatpush1.bf16.msra.mxu0 0
    %432 = vmatprep.subr.bf16.mxu0 0
    %433 = vmatpush1.bf16.msra.mxu0 0
    %434 = vmatprep.subr.bf16.mxu0 0
    %435 = vmatpush1.bf16.msra.mxu0 0
    %436 = vmatprep.subr.bf16.mxu0 0
    %437 = vmatpush1.bf16.msra.mxu0 0
    %438 = vmatprep.subr.bf16.mxu0 0
    %439 = vmatpush1.bf16.msra.mxu0 0
    %440 = vmatprep.subr.bf16.mxu0 0
    %441 = vmatpush1.bf16.msra.mxu0 0
    %442 = vmatprep.subr.bf16.mxu0 0
    %443 = vmatpush1.bf16.msra.mxu0 %v259
    %444 = vmatprep.subr.bf16.mxu0 0
    %445 = vmatpush1.bf16.msra.mxu0 %v258
    %446 = vmatprep.subr.bf16.mxu0 0
    %447 = vmatpush2.bf16.msra.mxu0 0
    %448 = vmatprep.subr.bf16.mxu0 0
    %449 = vmatpush2.bf16.msra.mxu0 0
    %450 = vmatprep.subr.bf16.mxu0 0
    %451 = vmatpush2.bf16.msra.mxu0 0
    %452 = vmatprep.subr.bf16.mxu0 0
    %453 = vmatpush2.bf16.msra.mxu0 0
    %454 = vmatprep.subr.bf16.mxu0 0
    %455 = vmatpush2.bf16.msra.mxu0 0
    %456 = vmatprep.subr.bf16.mxu0 0
    %457 = vmatpush2.bf16.msra.mxu0 0
    %458 = vmatprep.subr.bf16.mxu0 0
    %459 = vmatpush2.bf16.msra.mxu0 0
    %460 = vmatprep.subr.bf16.mxu0 0
    %461 = vmatpush2.bf16.msra.mxu0 0
    %462 = vmatprep.mubr.bf16.mxu0 0
    %463 = vmatmul.mubr.bf16.gmra.mxu0 %v428
    %v464 = vpop.f32.mrf.mxu0
    %v465 = vadd.f32 0.0, %v464
    %v466 = vpop.f32.mrf.mxu0
    %v467 = vpop.f32.mrf.mxu0
    %v468 = vpop.f32.mrf.mxu0
    %469 = vdwg.mxu0
    %v471 = vrot.slane %v465, 4
    %v473 = vadd.f32 %v150, %v471
    %v474 = vxor.u32 %v473, 2147483648
    %v475 = vmul.f32 %v474, 1.442695
    %v476 = vpow.pop %v475
    %v477 = vadd.f32 %v476, 1.0
    %v478 = vrcp.pop %v477
    %v479 = vmul.f32 1.0, %v478
    %v480 = vtanh.pop %v473
    %v482 = vrot.slane %v323, 2
    %v484 = vmul.f32 %v479, %v482
    %486 = vrot.lane.b32.xlu0 %v480, 64
    %v487 = vpop.permute.xlu0 %486
    %v489 = vmul.f32 %v479, %v487
    %491 = vrot.lane.b32.xlu0 %v489, 32
    %v492 = vpop.permute.xlu0 %491
    %v494 = vadd.f32 %v484, %v492
    %v495 = vtanh.pop %v494
    %497 = vrot.lane.b32.xlu0 %v495, 64
    %v498 = vpop.permute.xlu0 %497
    %v500 = vmul.f32 %v479, %v498
    %v501 = vpack.c.bf16 %v500, %v500
    %v503 = vunpack.c.l.b16 %v501
    %v504 = vpack.c.b16 %v503, %v503
    %505 = vrot.lane.b32.xlu0 %v504, 64
    %v506 = vpop.permute.xlu0 %505
    %vm508 = vcmask 518402
    %509 = vst.msk [vmem:[%s5 + $0x4] sm:$0x4] %vm508, %v506
    %v510 = vrot.slane %v415, 1
    %511 = vrot.lane.b32.xlu0 %v510, 32
    %v512 = vpop.permute.xlu0 %511
    %v514 = vsel %vm172, %v512, 0
    %516 = vmatprep.subr.bf16.mxu0 0
    %517 = vmatpush1.bf16.msra.mxu0 0
    %518 = vmatprep.subr.bf16.mxu0 0
    %519 = vmatpush1.bf16.msra.mxu0 0
    %520 = vmatprep.subr.bf16.mxu0 0
    %521 = vmatpush1.bf16.msra.mxu0 0
    %522 = vmatprep.subr.bf16.mxu0 0
    %523 = vmatpush1.bf16.msra.mxu0 0
    %524 = vmatprep.subr.bf16.mxu0 0
    %525 = vmatpush1.bf16.msra.mxu0 0
    %526 = vmatprep.subr.bf16.mxu0 0
    %527 = vmatpush1.bf16.msra.mxu0 0
    %528 = vmatprep.subr.bf16.mxu0 0
    %529 = vmatpush1.bf16.msra.mxu0 %v169
    %530 = vmatprep.subr.bf16.mxu0 0
    %531 = vmatpush1.bf16.msra.mxu0 %v168
    %532 = vmatprep.subr.bf16.mxu0 0
    %533 = vmatpush2.bf16.msra.mxu0 0
    %534 = vmatprep.subr.bf16.mxu0 0
    %535 = vmatpush2.bf16.msra.mxu0 0
    %536 = vmatprep.subr.bf16.mxu0 0
    %537 = vmatpush2.bf16.msra.mxu0 0
    %538 = vmatprep.subr.bf16.mxu0 0
    %539 = vmatpush2.bf16.msra.mxu0 0
    %540 = vmatprep.subr.bf16.mxu0 0
    %541 = vmatpush2.bf16.msra.mxu0 0
    %542 = vmatprep.subr.bf16.mxu0 0
    %543 = vmatpush2.bf16.msra.mxu0 0
    %544 = vmatprep.subr.bf16.mxu0 0
    %545 = vmatpush2.bf16.msra.mxu0 0
    %546 = vmatprep.subr.bf16.mxu0 0
    %547 = vmatpush2.bf16.msra.mxu0 0
    %548 = vmatprep.mubr.bf16.mxu0 0
    %549 = vmatmul.mubr.bf16.gmra.mxu0 %v514
    %v550 = vpop.f32.mrf.mxu0
    %v551 = vadd.f32 0.0, %v550
    %v552 = vpop.f32.mrf.mxu0
    %v553 = vpop.f32.mrf.mxu0
    %v554 = vpop.f32.mrf.mxu0
    %555 = vdwg.mxu0
    %v557 = vrot.slane %v551, 4
    %v559 = vadd.f32 %v144, %v557
    %v560 = vxor.u32 %v559, 2147483648
    %v561 = vmul.f32 %v560, 1.442695
    %v562 = vpow.pop %v561
    %v563 = vadd.f32 %v562, 1.0
    %v564 = vrcp.pop %v563
    %v565 = vmul.f32 1.0, %v564
    %v566 = vtanh.pop %v559
    %v568 = vrot.slane %v408, 6
    %v570 = vmul.f32 %v565, %v568
    %572 = vrot.lane.b32.xlu0 %v566, 64
    %v573 = vpop.permute.xlu0 %572
    %v575 = vmul.f32 %v565, %v573
    %577 = vrot.lane.b32.xlu0 %v575, 32
    %v578 = vpop.permute.xlu0 %577
    %v580 = vadd.f32 %v570, %v578
    %v581 = vtanh.pop %v580
    %583 = vrot.lane.b32.xlu0 %v581, 64
    %v584 = vpop.permute.xlu0 %583
    %v586 = vmul.f32 %v565, %v584
    %v587 = vpack.c.bf16 %v586, %v586
    %v589 = vunpack.c.l.b16 %v587
    %v590 = vpack.c.b16 %v589, %v589
    %591 = vrot.lane.b32.xlu0 %v590, 32
    %v592 = vpop.permute.xlu0 %591
    %vm594 = vcmask 256002
    %595 = vst.msk [vmem:[%s5] sm:$0x4] %vm594, %v592
    %v596 = vrot.slane %v501, 2
    %597 = vrot.lane.b32.xlu0 %v596, 32
    %v598 = vpop.permute.xlu0 %597
    %v600 = vsel %vm172, %v598, 0
    %602 = vmatprep.subr.bf16.mxu0 0
    %603 = vmatpush1.bf16.msra.mxu0 0
    %604 = vmatprep.subr.bf16.mxu0 0
    %605 = vmatpush1.bf16.msra.mxu0 0
    %606 = vmatprep.subr.bf16.mxu0 0
    %607 = vmatpush1.bf16.msra.mxu0 0
    %608 = vmatprep.subr.bf16.mxu0 0
    %609 = vmatpush1.bf16.msra.mxu0 0
    %610 = vmatprep.subr.bf16.mxu0 0
    %611 = vmatpush1.bf16.msra.mxu0 0
    %612 = vmatprep.subr.bf16.mxu0 0
    %613 = vmatpush1.bf16.msra.mxu0 0
    %614 = vmatprep.subr.bf16.mxu0 0
    %615 = vmatpush1.bf16.msra.mxu0 %v259
    %616 = vmatprep.subr.bf16.mxu0 0
    %617 = vmatpush1.bf16.msra.mxu0 %v258
    %618 = vmatprep.subr.bf16.mxu0 0
    %619 = vmatpush2.bf16.msra.mxu0 0
    %620 = vmatprep.subr.bf16.mxu0 0
    %621 = vmatpush2.bf16.msra.mxu0 0
    %622 = vmatprep.subr.bf16.mxu0 0
    %623 = vmatpush2.bf16.msra.mxu0 0
    %624 = vmatprep.subr.bf16.mxu0 0
    %625 = vmatpush2.bf16.msra.mxu0 0
    %626 = vmatprep.subr.bf16.mxu0 0
    %627 = vmatpush2.bf16.msra.mxu0 0
    %628 = vmatprep.subr.bf16.mxu0 0
    %629 = vmatpush2.bf16.msra.mxu0 0
    %630 = vmatprep.subr.bf16.mxu0 0
    %631 = vmatpush2.bf16.msra.mxu0 0
    %632 = vmatprep.subr.bf16.mxu0 0
    %633 = vmatpush2.bf16.msra.mxu0 0
    %634 = vmatprep.mubr.bf16.mxu0 0
    %635 = vmatmul.mubr.bf16.gmra.mxu0 %v600
    %v636 = vpop.f32.mrf.mxu0
    %v637 = vadd.f32 0.0, %v636
    %v638 = vpop.f32.mrf.mxu0
    %v639 = vpop.f32.mrf.mxu0
    %v640 = vpop.f32.mrf.mxu0
    %641 = vdwg.mxu0
    %v643 = vrot.slane %v637, 6
    %v645 = vadd.f32 %v150, %v643
    %v646 = vxor.u32 %v645, 2147483648
    %v647 = vmul.f32 %v646, 1.442695
    %v648 = vpow.pop %v647
    %v649 = vadd.f32 %v648, 1.0
    %v650 = vrcp.pop %v649
    %v651 = vmul.f32 1.0, %v650
    %v652 = vtanh.pop %v645
    %v654 = vrot.slane %v494, 2
    %v656 = vmul.f32 %v651, %v654
    %658 = vrot.lane.b32.xlu0 %v652, 64
    %v659 = vpop.permute.xlu0 %658
    %v661 = vmul.f32 %v651, %v659
    %663 = vrot.lane.b32.xlu0 %v661, 32
    %v664 = vpop.permute.xlu0 %663
    %v666 = vadd.f32 %v656, %v664
    %v667 = vtanh.pop %v666
    %669 = vrot.lane.b32.xlu0 %v667, 64
    %v670 = vpop.permute.xlu0 %669
    %v672 = vmul.f32 %v651, %v670
    %v673 = vpack.c.bf16 %v672, %v672
    %v675 = vunpack.c.l.b16 %v673
    %v676 = vpack.c.b16 %v675, %v675
    %677 = vrot.lane.b32.xlu0 %v676, 64
    %v678 = vpop.permute.xlu0 %677
    %vm680 = vcmask 517377
    %681 = vst.msk [vmem:[%s5 + $0x4] sm:$0x2] %vm680, %v678
    %v682 = vrot.slane %v587, 2
    %683 = vrot.lane.b32.xlu0 %v682, 32
    %v684 = vpop.permute.xlu0 %683
    %v686 = vsel %vm172, %v684, 0
    %688 = vmatprep.subr.bf16.mxu0 0
    %689 = vmatpush1.bf16.msra.mxu0 0
    %690 = vmatprep.subr.bf16.mxu0 0
    %691 = vmatpush1.bf16.msra.mxu0 0
    %692 = vmatprep.subr.bf16.mxu0 0
    %693 = vmatpush1.bf16.msra.mxu0 0
    %694 = vmatprep.subr.bf16.mxu0 0
    %695 = vmatpush1.bf16.msra.mxu0 0
    %696 = vmatprep.subr.bf16.mxu0 0
    %697 = vmatpush1.bf16.msra.mxu0 0
    %698 = vmatprep.subr.bf16.mxu0 0
    %699 = vmatpush1.bf16.msra.mxu0 0
    %700 = vmatprep.subr.bf16.mxu0 0
    %701 = vmatpush1.bf16.msra.mxu0 %v169
    %702 = vmatprep.subr.bf16.mxu0 0
    %703 = vmatpush1.bf16.msra.mxu0 %v168
    %704 = vmatprep.subr.bf16.mxu0 0
    %705 = vmatpush2.bf16.msra.mxu0 0
    %706 = vmatprep.subr.bf16.mxu0 0
    %707 = vmatpush2.bf16.msra.mxu0 0
    %708 = vmatprep.subr.bf16.mxu0 0
    %709 = vmatpush2.bf16.msra.mxu0 0
    %710 = vmatprep.subr.bf16.mxu0 0
    %711 = vmatpush2.bf16.msra.mxu0 0
    %712 = vmatprep.subr.bf16.mxu0 0
    %713 = vmatpush2.bf16.msra.mxu0 0
    %714 = vmatprep.subr.bf16.mxu0 0
    %715 = vmatpush2.bf16.msra.mxu0 0
    %716 = vmatprep.subr.bf16.mxu0 0
    %717 = vmatpush2.bf16.msra.mxu0 0
    %718 = vmatprep.subr.bf16.mxu0 0
    %719 = vmatpush2.bf16.msra.mxu0 0
    %720 = vmatprep.mubr.bf16.mxu0 0
    %721 = vmatmul.mubr.bf16.gmra.mxu0 %v686
    %v722 = vpop.f32.mrf.mxu0
    %v723 = vadd.f32 0.0, %v722
    %v724 = vpop.f32.mrf.mxu0
    %v725 = vpop.f32.mrf.mxu0
    %v726 = vpop.f32.mrf.mxu0
    %727 = vdwg.mxu0
    %v729 = vrot.slane %v723, 2
    %v731 = vadd.f32 %v144, %v729
    %v732 = vxor.u32 %v731, 2147483648
    %v733 = vmul.f32 %v732, 1.442695
    %v734 = vpow.pop %v733
    %v735 = vadd.f32 %v734, 1.0
    %v736 = vrcp.pop %v735
    %v737 = vmul.f32 1.0, %v736
    %v738 = vtanh.pop %v731
    %v740 = vrot.slane %v580, 6
    %v742 = vmul.f32 %v737, %v740
    %744 = vrot.lane.b32.xlu0 %v738, 64
    %v745 = vpop.permute.xlu0 %744
    %v747 = vmul.f32 %v737, %v745
    %749 = vrot.lane.b32.xlu0 %v747, 32
    %v750 = vpop.permute.xlu0 %749
    %v752 = vadd.f32 %v742, %v750
    %v753 = vtanh.pop %v752
    %755 = vrot.lane.b32.xlu0 %v753, 64
    %v756 = vpop.permute.xlu0 %755
    %v758 = vmul.f32 %v737, %v756
    %v759 = vpack.c.bf16 %v758, %v758
    %v761 = vunpack.c.l.b16 %v759
    %v762 = vpack.c.b16 %v761, %v761
    %763 = vrot.lane.b32.xlu0 %v762, 32
    %v764 = vpop.permute.xlu0 %763
    %vm766 = vcmask 257027
    %767 = vst.msk [vmem:[%s5] sm:$0x8] %vm766, %v764
    %v768 = vrot.slane %v673, 1
    %769 = vrot.lane.b32.xlu0 %v768, 32
    %v770 = vpop.permute.xlu0 %769
    %v772 = vsel %vm172, %v770, 0
    %774 = vmatprep.subr.bf16.mxu0 0
    %775 = vmatpush1.bf16.msra.mxu0 0
    %776 = vmatprep.subr.bf16.mxu0 0
    %777 = vmatpush1.bf16.msra.mxu0 0
    %778 = vmatprep.subr.bf16.mxu0 0
    %779 = vmatpush1.bf16.msra.mxu0 0
    %780 = vmatprep.subr.bf16.mxu0 0
    %781 = vmatpush1.bf16.msra.mxu0 0
    %782 = vmatprep.subr.bf16.mxu0 0
    %783 = vmatpush1.bf16.msra.mxu0 0
    %784 = vmatprep.subr.bf16.mxu0 0
    %785 = vmatpush1.bf16.msra.mxu0 0
    %786 = vmatprep.subr.bf16.mxu0 0
    %787 = vmatpush1.bf16.msra.mxu0 %v259
    %788 = vmatprep.subr.bf16.mxu0 0
    %789 = vmatpush1.bf16.msra.mxu0 %v258
    %790 = vmatprep.subr.bf16.mxu0 0
    %791 = vmatpush2.bf16.msra.mxu0 0
    %792 = vmatprep.subr.bf16.mxu0 0
    %793 = vmatpush2.bf16.msra.mxu0 0
    %794 = vmatprep.subr.bf16.mxu0 0
    %795 = vmatpush2.bf16.msra.mxu0 0
    %796 = vmatprep.subr.bf16.mxu0 0
    %797 = vmatpush2.bf16.msra.mxu0 0
    %798 = vmatprep.subr.bf16.mxu0 0
    %799 = vmatpush2.bf16.msra.mxu0 0
    %800 = vmatprep.subr.bf16.mxu0 0
    %801 = vmatpush2.bf16.msra.mxu0 0
    %802 = vmatprep.subr.bf16.mxu0 0
    %803 = vmatpush2.bf16.msra.mxu0 0
    %804 = vmatprep.subr.bf16.mxu0 0
    %805 = vmatpush2.bf16.msra.mxu0 0
    %806 = vmatprep.mubr.bf16.mxu0 0
    %807 = vmatmul.mubr.bf16.gmra.mxu0 %v772
    %v808 = vpop.f32.mrf.mxu0
    %v809 = vadd.f32 0.0, %v808
    %v810 = vpop.f32.mrf.mxu0
    %v811 = vpop.f32.mrf.mxu0
    %v812 = vpop.f32.mrf.mxu0
    %813 = vdwg.mxu0
    %v814 = vadd.f32 %v150, %v809
    %v815 = vxor.u32 %v814, 2147483648
    %v816 = vmul.f32 %v815, 1.442695
    %v817 = vpow.pop %v816
    %v818 = vadd.f32 %v817, 1.0
    %v819 = vrcp.pop %v818
    %v820 = vmul.f32 1.0, %v819
    %v821 = vtanh.pop %v814
    %v823 = vrot.slane %v666, 2
    %v825 = vmul.f32 %v820, %v823
    %827 = vrot.lane.b32.xlu0 %v821, 64
    %v828 = vpop.permute.xlu0 %827
    %v830 = vmul.f32 %v820, %v828
    %832 = vrot.lane.b32.xlu0 %v830, 32
    %v833 = vpop.permute.xlu0 %832
    %v835 = vadd.f32 %v825, %v833
    %v836 = vtanh.pop %v835
    %838 = vrot.lane.b32.xlu0 %v836, 64
    %v839 = vpop.permute.xlu0 %838
    %v841 = vmul.f32 %v820, %v839
    %v842 = vpack.c.bf16 %v841, %v841
    %v844 = vunpack.c.l.b16 %v842
    %v845 = vpack.c.b16 %v844, %v844
    %846 = vrot.lane.b32.xlu0 %v845, 64
    %v847 = vpop.permute.xlu0 %846
    %vm849 = vcmask 516352
    %850 = vst.msk [vmem:[%s5 + $0x4] sm:$0x1] %vm849, %v847
    %v851 = vrot.slane %v759, 3
    %852 = vrot.lane.b32.xlu0 %v851, 32
    %v853 = vpop.permute.xlu0 %852
    %v855 = vsel %vm172, %v853, 0
    %857 = vmatprep.subr.bf16.mxu0 0
    %858 = vmatpush1.bf16.msra.mxu0 0
    %859 = vmatprep.subr.bf16.mxu0 0
    %860 = vmatpush1.bf16.msra.mxu0 0
    %861 = vmatprep.subr.bf16.mxu0 0
    %862 = vmatpush1.bf16.msra.mxu0 0
    %863 = vmatprep.subr.bf16.mxu0 0
    %864 = vmatpush1.bf16.msra.mxu0 0
    %865 = vmatprep.subr.bf16.mxu0 0
    %866 = vmatpush1.bf16.msra.mxu0 0
    %867 = vmatprep.subr.bf16.mxu0 0
    %868 = vmatpush1.bf16.msra.mxu0 0
    %869 = vmatprep.subr.bf16.mxu0 0
    %870 = vmatpush1.bf16.msra.mxu0 %v169
    %871 = vmatprep.subr.bf16.mxu0 0
    %872 = vmatpush1.bf16.msra.mxu0 %v168
    %873 = vmatprep.subr.bf16.mxu0 0
    %874 = vmatpush2.bf16.msra.mxu0 0
    %875 = vmatprep.subr.bf16.mxu0 0
    %876 = vmatpush2.bf16.msra.mxu0 0
    %877 = vmatprep.subr.bf16.mxu0 0
    %878 = vmatpush2.bf16.msra.mxu0 0
    %879 = vmatprep.subr.bf16.mxu0 0
    %880 = vmatpush2.bf16.msra.mxu0 0
    %881 = vmatprep.subr.bf16.mxu0 0
    %882 = vmatpush2.bf16.msra.mxu0 0
    %883 = vmatprep.subr.bf16.mxu0 0
    %884 = vmatpush2.bf16.msra.mxu0 0
    %885 = vmatprep.subr.bf16.mxu0 0
    %886 = vmatpush2.bf16.msra.mxu0 0
    %887 = vmatprep.subr.bf16.mxu0 0
    %888 = vmatpush2.bf16.msra.mxu0 0
    %889 = vmatprep.mubr.bf16.mxu0 0
    %890 = vmatmul.mubr.bf16.gmra.mxu0 %v855
    %v891 = vpop.f32.mrf.mxu0
    %v892 = vadd.f32 0.0, %v891
    %v893 = vpop.f32.mrf.mxu0
    %v894 = vpop.f32.mrf.mxu0
    %v895 = vpop.f32.mrf.mxu0
    %896 = vdwg.mxu0
    %v897 = vadd.f32 %v148, %v892
    %v898 = vxor.u32 %v897, 2147483648
    %v899 = vmul.f32 %v898, 1.442695
    %v900 = vpow.pop %v899
    %v901 = vadd.f32 %v900, 1.0
    %v902 = vrcp.pop %v901
    %v903 = vmul.f32 1.0, %v902
    %v904 = vtanh.pop %v897
    %v906 = vrot.slane %v752, 6
    %v908 = vmul.f32 %v903, %v906
    %910 = vrot.lane.b32.xlu0 %v904, 64
    %v911 = vpop.permute.xlu0 %910
    %v913 = vmul.f32 %v903, %v911
    %915 = vrot.lane.b32.xlu0 %v913, 32
    %v916 = vpop.permute.xlu0 %915
    %v918 = vadd.f32 %v908, %v916
    %v919 = vtanh.pop %v918
    %921 = vrot.lane.b32.xlu0 %v919, 64
    %v922 = vpop.permute.xlu0 %921
    %v924 = vmul.f32 %v903, %v922
    %v925 = vpack.c.bf16 %v924, %v924
    %v927 = vunpack.c.l.b16 %v925
    %v928 = vpack.c.b16 %v927, %v927
    %929 = vrot.lane.b32.xlu0 %v928, 32
    %v930 = vpop.permute.xlu0 %929
    %932 = vst.msk [vmem:[%s5 + $0x4] sm:$0x1] %vm248, %v930
    %933 = vrot.lane.b32.xlu0 %v842, 32
    %v934 = vpop.permute.xlu0 %933
    %v936 = vsel %vm172, %v934, 0
    %938 = vmatprep.subr.bf16.mxu0 0
    %939 = vmatpush1.bf16.msra.mxu0 0
    %940 = vmatprep.subr.bf16.mxu0 0
    %941 = vmatpush1.bf16.msra.mxu0 0
    %942 = vmatprep.subr.bf16.mxu0 0
    %943 = vmatpush1.bf16.msra.mxu0 0
    %944 = vmatprep.subr.bf16.mxu0 0
    %945 = vmatpush1.bf16.msra.mxu0 0
    %946 = vmatprep.subr.bf16.mxu0 0
    %947 = vmatpush1.bf16.msra.mxu0 0
    %948 = vmatprep.subr.bf16.mxu0 0
    %949 = vmatpush1.bf16.msra.mxu0 0
    %950 = vmatprep.subr.bf16.mxu0 0
    %951 = vmatpush1.bf16.msra.mxu0 %v259
    %952 = vmatprep.subr.bf16.mxu0 0
    %953 = vmatpush1.bf16.msra.mxu0 %v258
    %954 = vmatprep.subr.bf16.mxu0 0
    %955 = vmatpush2.bf16.msra.mxu0 0
    %956 = vmatprep.subr.bf16.mxu0 0
    %957 = vmatpush2.bf16.msra.mxu0 0
    %958 = vmatprep.subr.bf16.mxu0 0
    %959 = vmatpush2.bf16.msra.mxu0 0
    %960 = vmatprep.subr.bf16.mxu0 0
    %961 = vmatpush2.bf16.msra.mxu0 0
    %962 = vmatprep.subr.bf16.mxu0 0
    %963 = vmatpush2.bf16.msra.mxu0 0
    %964 = vmatprep.subr.bf16.mxu0 0
    %965 = vmatpush2.bf16.msra.mxu0 0
    %966 = vmatprep.subr.bf16.mxu0 0
    %967 = vmatpush2.bf16.msra.mxu0 0
    %968 = vmatprep.subr.bf16.mxu0 0
    %969 = vmatpush2.bf16.msra.mxu0 0
    %970 = vmatprep.mubr.bf16.mxu0 0
    %971 = vmatmul.mubr.bf16.gmra.mxu0 %v936
    %v972 = vpop.f32.mrf.mxu0
    %v973 = vadd.f32 0.0, %v972
    %v974 = vpop.f32.mrf.mxu0
    %v975 = vpop.f32.mrf.mxu0
    %v976 = vpop.f32.mrf.mxu0
    %977 = vdwg.mxu0
    %v979 = vrot.slane %v973, 2
    %v981 = vadd.f32 %v146, %v979
    %v982 = vxor.u32 %v981, 2147483648
    %v983 = vmul.f32 %v982, 1.442695
    %v984 = vpow.pop %v983
    %v985 = vadd.f32 %v984, 1.0
    %v986 = vrcp.pop %v985
    %v987 = vmul.f32 1.0, %v986
    %v988 = vtanh.pop %v981
    %v990 = vrot.slane %v835, 2
    %v992 = vmul.f32 %v987, %v990
    %994 = vrot.lane.b32.xlu0 %v988, 64
    %v995 = vpop.permute.xlu0 %994
    %v997 = vmul.f32 %v987, %v995
    %999 = vrot.lane.b32.xlu0 %v997, 32
    %v1000 = vpop.permute.xlu0 %999
    %v1002 = vadd.f32 %v992, %v1000
    %v1003 = vtanh.pop %v1002
    %1005 = vrot.lane.b32.xlu0 %v1003, 64
    %v1006 = vpop.permute.xlu0 %1005
    %v1008 = vmul.f32 %v987, %v1006
    %v1009 = vpack.c.bf16 %v1008, %v1008
    %v1011 = vunpack.c.l.b16 %v1009
    %v1012 = vpack.c.b16 %v1011, %v1011
    %1013 = vrot.lane.b32.xlu0 %v1012, 64
    %v1014 = vpop.permute.xlu0 %1013
    %1016 = vst.msk [vmem:[%s5] sm:$0x8] %vm337, %v1014
    %1017 = vrot.lane.b32.xlu0 %v925, 32
    %v1018 = vpop.permute.xlu0 %1017
    %v1020 = vsel %vm172, %v1018, 0
    %1022 = vmatprep.subr.bf16.mxu0 0
    %1023 = vmatpush1.bf16.msra.mxu0 0
    %1024 = vmatprep.subr.bf16.mxu0 0
    %1025 = vmatpush1.bf16.msra.mxu0 0
    %1026 = vmatprep.subr.bf16.mxu0 0
    %1027 = vmatpush1.bf16.msra.mxu0 0
    %1028 = vmatprep.subr.bf16.mxu0 0
    %1029 = vmatpush1.bf16.msra.mxu0 0
    %1030 = vmatprep.subr.bf16.mxu0 0
    %1031 = vmatpush1.bf16.msra.mxu0 0
    %1032 = vmatprep.subr.bf16.mxu0 0
    %1033 = vmatpush1.bf16.msra.mxu0 0
    %1034 = vmatprep.subr.bf16.mxu0 0
    %1035 = vmatpush1.bf16.msra.mxu0 %v169
    %1036 = vmatprep.subr.bf16.mxu0 0
    %1037 = vmatpush1.bf16.msra.mxu0 %v168
    %1038 = vmatprep.subr.bf16.mxu0 0
    %1039 = vmatpush2.bf16.msra.mxu0 0
    %1040 = vmatprep.subr.bf16.mxu0 0
    %1041 = vmatpush2.bf16.msra.mxu0 0
    %1042 = vmatprep.subr.bf16.mxu0 0
    %1043 = vmatpush2.bf16.msra.mxu0 0
    %1044 = vmatprep.subr.bf16.mxu0 0
    %1045 = vmatpush2.bf16.msra.mxu0 0
    %1046 = vmatprep.subr.bf16.mxu0 0
    %1047 = vmatpush2.bf16.msra.mxu0 0
    %1048 = vmatprep.subr.bf16.mxu0 0
    %1049 = vmatpush2.bf16.msra.mxu0 0
    %1050 = vmatprep.subr.bf16.mxu0 0
    %1051 = vmatpush2.bf16.msra.mxu0 0
    %1052 = vmatprep.subr.bf16.mxu0 0
    %1053 = vmatpush2.bf16.msra.mxu0 0
    %1054 = vmatprep.mubr.bf16.mxu0 0
    %1055 = vmatmul.mubr.bf16.gmra.mxu0 %v1020
    %v1056 = vpop.f32.mrf.mxu0
    %v1057 = vadd.f32 0.0, %v1056
    %v1058 = vpop.f32.mrf.mxu0
    %v1059 = vpop.f32.mrf.mxu0
    %v1060 = vpop.f32.mrf.mxu0
    %1061 = vdwg.mxu0
    %v1063 = vrot.slane %v1057, 6
    %v1065 = vadd.f32 %v148, %v1063
    %v1066 = vxor.u32 %v1065, 2147483648
    %v1067 = vmul.f32 %v1066, 1.442695
    %v1068 = vpow.pop %v1067
    %v1069 = vadd.f32 %v1068, 1.0
    %v1070 = vrcp.pop %v1069
    %v1071 = vmul.f32 1.0, %v1070
    %v1072 = vtanh.pop %v1065
    %v1074 = vrot.slane %v918, 6
    %v1076 = vmul.f32 %v1071, %v1074
    %1078 = vrot.lane.b32.xlu0 %v1072, 64
    %v1079 = vpop.permute.xlu0 %1078
    %v1081 = vmul.f32 %v1071, %v1079
    %1083 = vrot.lane.b32.xlu0 %v1081, 32
    %v1084 = vpop.permute.xlu0 %1083
    %v1086 = vadd.f32 %v1076, %v1084
    %v1087 = vtanh.pop %v1086
    %1089 = vrot.lane.b32.xlu0 %v1087, 64
    %v1090 = vpop.permute.xlu0 %1089
    %v1092 = vmul.f32 %v1071, %v1090
    %v1093 = vpack.c.bf16 %v1092, %v1092
    %v1095 = vunpack.c.l.b16 %v1093
    %v1096 = vpack.c.b16 %v1095, %v1095
    %1097 = vrot.lane.b32.xlu0 %v1096, 32
    %v1098 = vpop.permute.xlu0 %1097
    %1100 = vst.msk [vmem:[%s5 + $0x4] sm:$0x2] %vm422, %v1098
    %v1101 = vrot.slane %v1009, 3
    %1102 = vrot.lane.b32.xlu0 %v1101, 32
    %v1103 = vpop.permute.xlu0 %1102
    %v1105 = vsel %vm172, %v1103, 0
    %1107 = vmatprep.subr.bf16.mxu0 0
    %1108 = vmatpush1.bf16.msra.mxu0 0
    %1109 = vmatprep.subr.bf16.mxu0 0
    %1110 = vmatpush1.bf16.msra.mxu0 0
    %1111 = vmatprep.subr.bf16.mxu0 0
    %1112 = vmatpush1.bf16.msra.mxu0 0
    %1113 = vmatprep.subr.bf16.mxu0 0
    %1114 = vmatpush1.bf16.msra.mxu0 0
    %1115 = vmatprep.subr.bf16.mxu0 0
    %1116 = vmatpush1.bf16.msra.mxu0 0
    %1117 = vmatprep.subr.bf16.mxu0 0
    %1118 = vmatpush1.bf16.msra.mxu0 0
    %1119 = vmatprep.subr.bf16.mxu0 0
    %1120 = vmatpush1.bf16.msra.mxu0 %v259
    %1121 = vmatprep.subr.bf16.mxu0 0
    %1122 = vmatpush1.bf16.msra.mxu0 %v258
    %1123 = vmatprep.subr.bf16.mxu0 0
    %1124 = vmatpush2.bf16.msra.mxu0 0
    %1125 = vmatprep.subr.bf16.mxu0 0
    %1126 = vmatpush2.bf16.msra.mxu0 0
    %1127 = vmatprep.subr.bf16.mxu0 0
    %1128 = vmatpush2.bf16.msra.mxu0 0
    %1129 = vmatprep.subr.bf16.mxu0 0
    %1130 = vmatpush2.bf16.msra.mxu0 0
    %1131 = vmatprep.subr.bf16.mxu0 0
    %1132 = vmatpush2.bf16.msra.mxu0 0
    %1133 = vmatprep.subr.bf16.mxu0 0
    %1134 = vmatpush2.bf16.msra.mxu0 0
    %1135 = vmatprep.subr.bf16.mxu0 0
    %1136 = vmatpush2.bf16.msra.mxu0 0
    %1137 = vmatprep.subr.bf16.mxu0 0
    %1138 = vmatpush2.bf16.msra.mxu0 0
    %1139 = vmatprep.mubr.bf16.mxu0 0
    %1140 = vmatmul.mubr.bf16.gmra.mxu0 %v1105
    %v1141 = vpop.f32.mrf.mxu0
    %v1142 = vadd.f32 0.0, %v1141
    %v1143 = vpop.f32.mrf.mxu0
    %v1144 = vpop.f32.mrf.mxu0
    %v1145 = vpop.f32.mrf.mxu0
    %1146 = vdwg.mxu0
    %v1148 = vrot.slane %v1142, 4
    %v1150 = vadd.f32 %v146, %v1148
    %v1151 = vxor.u32 %v1150, 2147483648
    %v1152 = vmul.f32 %v1151, 1.442695
    %v1153 = vpow.pop %v1152
    %v1154 = vadd.f32 %v1153, 1.0
    %v1155 = vrcp.pop %v1154
    %v1156 = vmul.f32 1.0, %v1155
    %v1157 = vtanh.pop %v1150
    %v1159 = vrot.slane %v1002, 2
    %v1161 = vmul.f32 %v1156, %v1159
    %1163 = vrot.lane.b32.xlu0 %v1157, 64
    %v1164 = vpop.permute.xlu0 %1163
    %v1166 = vmul.f32 %v1156, %v1164
    %1168 = vrot.lane.b32.xlu0 %v1166, 32
    %v1169 = vpop.permute.xlu0 %1168
    %v1171 = vadd.f32 %v1161, %v1169
    %v1172 = vtanh.pop %v1171
    %1174 = vrot.lane.b32.xlu0 %v1172, 64
    %v1175 = vpop.permute.xlu0 %1174
    %v1177 = vmul.f32 %v1156, %v1175
    %v1178 = vpack.c.bf16 %v1177, %v1177
    %v1180 = vunpack.c.l.b16 %v1178
    %v1181 = vpack.c.b16 %v1180, %v1180
    %1182 = vrot.lane.b32.xlu0 %v1181, 64
    %v1183 = vpop.permute.xlu0 %1182
    %1185 = vst.msk [vmem:[%s5] sm:$0x4] %vm508, %v1183
    %v1186 = vrot.slane %v1093, 1
    %1187 = vrot.lane.b32.xlu0 %v1186, 32
    %v1188 = vpop.permute.xlu0 %1187
    %v1190 = vsel %vm172, %v1188, 0
    %1192 = vmatprep.subr.bf16.mxu0 0
    %1193 = vmatpush1.bf16.msra.mxu0 0
    %1194 = vmatprep.subr.bf16.mxu0 0
    %1195 = vmatpush1.bf16.msra.mxu0 0
    %1196 = vmatprep.subr.bf16.mxu0 0
    %1197 = vmatpush1.bf16.msra.mxu0 0
    %1198 = vmatprep.subr.bf16.mxu0 0
    %1199 = vmatpush1.bf16.msra.mxu0 0
    %1200 = vmatprep.subr.bf16.mxu0 0
    %1201 = vmatpush1.bf16.msra.mxu0 0
    %1202 = vmatprep.subr.bf16.mxu0 0
    %1203 = vmatpush1.bf16.msra.mxu0 0
    %1204 = vmatprep.subr.bf16.mxu0 0
    %1205 = vmatpush1.bf16.msra.mxu0 %v169
    %1206 = vmatprep.subr.bf16.mxu0 0
    %1207 = vmatpush1.bf16.msra.mxu0 %v168
    %1208 = vmatprep.subr.bf16.mxu0 0
    %1209 = vmatpush2.bf16.msra.mxu0 0
    %1210 = vmatprep.subr.bf16.mxu0 0
    %1211 = vmatpush2.bf16.msra.mxu0 0
    %1212 = vmatprep.subr.bf16.mxu0 0
    %1213 = vmatpush2.bf16.msra.mxu0 0
    %1214 = vmatprep.subr.bf16.mxu0 0
    %1215 = vmatpush2.bf16.msra.mxu0 0
    %1216 = vmatprep.subr.bf16.mxu0 0
    %1217 = vmatpush2.bf16.msra.mxu0 0
    %1218 = vmatprep.subr.bf16.mxu0 0
    %1219 = vmatpush2.bf16.msra.mxu0 0
    %1220 = vmatprep.subr.bf16.mxu0 0
    %1221 = vmatpush2.bf16.msra.mxu0 0
    %1222 = vmatprep.subr.bf16.mxu0 0
    %1223 = vmatpush2.bf16.msra.mxu0 0
    %1224 = vmatprep.mubr.bf16.mxu0 0
    %1225 = vmatmul.mubr.bf16.gmra.mxu0 %v1190
    %v1226 = vpop.f32.mrf.mxu0
    %v1227 = vadd.f32 0.0, %v1226
    %v1228 = vpop.f32.mrf.mxu0
    %v1229 = vpop.f32.mrf.mxu0
    %v1230 = vpop.f32.mrf.mxu0
    %1231 = vdwg.mxu0
    %v1233 = vrot.slane %v1227, 4
    %v1235 = vadd.f32 %v148, %v1233
    %v1236 = vxor.u32 %v1235, 2147483648
    %v1237 = vmul.f32 %v1236, 1.442695
    %v1238 = vpow.pop %v1237
    %v1239 = vadd.f32 %v1238, 1.0
    %v1240 = vrcp.pop %v1239
    %v1241 = vmul.f32 1.0, %v1240
    %v1242 = vtanh.pop %v1235
    %v1244 = vrot.slane %v1086, 6
    %v1246 = vmul.f32 %v1241, %v1244
    %1248 = vrot.lane.b32.xlu0 %v1242, 64
    %v1249 = vpop.permute.xlu0 %1248
    %v1251 = vmul.f32 %v1241, %v1249
    %1253 = vrot.lane.b32.xlu0 %v1251, 32
    %v1254 = vpop.permute.xlu0 %1253
    %v1256 = vadd.f32 %v1246, %v1254
    %v1257 = vtanh.pop %v1256
    %1259 = vrot.lane.b32.xlu0 %v1257, 64
    %v1260 = vpop.permute.xlu0 %1259
    %v1262 = vmul.f32 %v1241, %v1260
    %v1263 = vpack.c.bf16 %v1262, %v1262
    %v1265 = vunpack.c.l.b16 %v1263
    %v1266 = vpack.c.b16 %v1265, %v1265
    %1267 = vrot.lane.b32.xlu0 %v1266, 32
    %v1268 = vpop.permute.xlu0 %1267
    %1270 = vst.msk [vmem:[%s5 + $0x4] sm:$0x4] %vm594, %v1268
    %v1271 = vrot.slane %v1178, 2
    %1272 = vrot.lane.b32.xlu0 %v1271, 32
    %v1273 = vpop.permute.xlu0 %1272
    %v1275 = vsel %vm172, %v1273, 0
    %1277 = vmatprep.subr.bf16.mxu0 0
    %1278 = vmatpush1.bf16.msra.mxu0 0
    %1279 = vmatprep.subr.bf16.mxu0 0
    %1280 = vmatpush1.bf16.msra.mxu0 0
    %1281 = vmatprep.subr.bf16.mxu0 0
    %1282 = vmatpush1.bf16.msra.mxu0 0
    %1283 = vmatprep.subr.bf16.mxu0 0
    %1284 = vmatpush1.bf16.msra.mxu0 0
    %1285 = vmatprep.subr.bf16.mxu0 0
    %1286 = vmatpush1.bf16.msra.mxu0 0
    %1287 = vmatprep.subr.bf16.mxu0 0
    %1288 = vmatpush1.bf16.msra.mxu0 0
    %1289 = vmatprep.subr.bf16.mxu0 0
    %1290 = vmatpush1.bf16.msra.mxu0 %v259
    %1291 = vmatprep.subr.bf16.mxu0 0
    %1292 = vmatpush1.bf16.msra.mxu0 %v258
    %1293 = vmatprep.subr.bf16.mxu0 0
    %1294 = vmatpush2.bf16.msra.mxu0 0
    %1295 = vmatprep.subr.bf16.mxu0 0
    %1296 = vmatpush2.bf16.msra.mxu0 0
    %1297 = vmatprep.subr.bf16.mxu0 0
    %1298 = vmatpush2.bf16.msra.mxu0 0
    %1299 = vmatprep.subr.bf16.mxu0 0
    %1300 = vmatpush2.bf16.msra.mxu0 0
    %1301 = vmatprep.subr.bf16.mxu0 0
    %1302 = vmatpush2.bf16.msra.mxu0 0
    %1303 = vmatprep.subr.bf16.mxu0 0
    %1304 = vmatpush2.bf16.msra.mxu0 0
    %1305 = vmatprep.subr.bf16.mxu0 0
    %1306 = vmatpush2.bf16.msra.mxu0 0
    %1307 = vmatprep.subr.bf16.mxu0 0
    %1308 = vmatpush2.bf16.msra.mxu0 0
    %1309 = vmatprep.mubr.bf16.mxu0 0
    %1310 = vmatmul.mubr.bf16.gmra.mxu0 %v1275
    %v1311 = vpop.f32.mrf.mxu0
    %v1312 = vadd.f32 0.0, %v1311
    %v1313 = vpop.f32.mrf.mxu0
    %v1314 = vpop.f32.mrf.mxu0
    %v1315 = vpop.f32.mrf.mxu0
    %1316 = vdwg.mxu0
    %v1318 = vrot.slane %v1312, 6
    %v1320 = vadd.f32 %v146, %v1318
    %v1321 = vxor.u32 %v1320, 2147483648
    %v1322 = vmul.f32 %v1321, 1.442695
    %v1323 = vpow.pop %v1322
    %v1324 = vadd.f32 %v1323, 1.0
    %v1325 = vrcp.pop %v1324
    %v1326 = vmul.f32 1.0, %v1325
    %v1327 = vtanh.pop %v1320
    %v1329 = vrot.slane %v1171, 2
    %v1331 = vmul.f32 %v1326, %v1329
    %1333 = vrot.lane.b32.xlu0 %v1327, 64
    %v1334 = vpop.permute.xlu0 %1333
    %v1336 = vmul.f32 %v1326, %v1334
    %1338 = vrot.lane.b32.xlu0 %v1336, 32
    %v1339 = vpop.permute.xlu0 %1338
    %v1341 = vadd.f32 %v1331, %v1339
    %v1342 = vtanh.pop %v1341
    %1344 = vrot.lane.b32.xlu0 %v1342, 64
    %v1345 = vpop.permute.xlu0 %1344
    %v1347 = vmul.f32 %v1326, %v1345
    %v1348 = vpack.c.bf16 %v1347, %v1347
    %v1350 = vunpack.c.l.b16 %v1348
    %v1351 = vpack.c.b16 %v1350, %v1350
    %1352 = vrot.lane.b32.xlu0 %v1351, 64
    %v1353 = vpop.permute.xlu0 %1352
    %1355 = vst.msk [vmem:[%s5] sm:$0x2] %vm680, %v1353
    %v1356 = vrot.slane %v1263, 2
    %1357 = vrot.lane.b32.xlu0 %v1356, 32
    %v1358 = vpop.permute.xlu0 %1357
    %v1360 = vsel %vm172, %v1358, 0
    %1362 = vmatprep.subr.bf16.mxu0 0
    %1363 = vmatpush1.bf16.msra.mxu0 0
    %1364 = vmatprep.subr.bf16.mxu0 0
    %1365 = vmatpush1.bf16.msra.mxu0 0
    %1366 = vmatprep.subr.bf16.mxu0 0
    %1367 = vmatpush1.bf16.msra.mxu0 0
    %1368 = vmatprep.subr.bf16.mxu0 0
    %1369 = vmatpush1.bf16.msra.mxu0 0
    %1370 = vmatprep.subr.bf16.mxu0 0
    %1371 = vmatpush1.bf16.msra.mxu0 0
    %1372 = vmatprep.subr.bf16.mxu0 0
    %1373 = vmatpush1.bf16.msra.mxu0 0
    %1374 = vmatprep.subr.bf16.mxu0 0
    %1375 = vmatpush1.bf16.msra.mxu0 %v169
    %1376 = vmatprep.subr.bf16.mxu0 0
    %1377 = vmatpush1.bf16.msra.mxu0 %v168
    %1378 = vmatprep.subr.bf16.mxu0 0
    %1379 = vmatpush2.bf16.msra.mxu0 0
    %1380 = vmatprep.subr.bf16.mxu0 0
    %1381 = vmatpush2.bf16.msra.mxu0 0
    %1382 = vmatprep.subr.bf16.mxu0 0
    %1383 = vmatpush2.bf16.msra.mxu0 0
    %1384 = vmatprep.subr.bf16.mxu0 0
    %1385 = vmatpush2.bf16.msra.mxu0 0
    %1386 = vmatprep.subr.bf16.mxu0 0
    %1387 = vmatpush2.bf16.msra.mxu0 0
    %1388 = vmatprep.subr.bf16.mxu0 0
    %1389 = vmatpush2.bf16.msra.mxu0 0
    %1390 = vmatprep.subr.bf16.mxu0 0
    %1391 = vmatpush2.bf16.msra.mxu0 0
    %1392 = vmatprep.subr.bf16.mxu0 0
    %1393 = vmatpush2.bf16.msra.mxu0 0
    %1394 = vmatprep.mubr.bf16.mxu0 0
    %1395 = vmatmul.mubr.bf16.gmra.mxu0 %v1360
    %v1396 = vpop.f32.mrf.mxu0
    %v1397 = vadd.f32 0.0, %v1396
    %v1398 = vpop.f32.mrf.mxu0
    %v1399 = vpop.f32.mrf.mxu0
    %v1400 = vpop.f32.mrf.mxu0
    %1401 = vdwg.mxu0
    %v1403 = vrot.slane %v1397, 2
    %v1405 = vadd.f32 %v148, %v1403
    %v1406 = vxor.u32 %v1405, 2147483648
    %v1407 = vmul.f32 %v1406, 1.442695
    %v1408 = vpow.pop %v1407
    %v1409 = vadd.f32 %v1408, 1.0
    %v1410 = vrcp.pop %v1409
    %v1411 = vmul.f32 1.0, %v1410
    %v1412 = vtanh.pop %v1405
    %v1414 = vrot.slane %v1256, 6
    %v1416 = vmul.f32 %v1411, %v1414
    %1418 = vrot.lane.b32.xlu0 %v1412, 64
    %v1419 = vpop.permute.xlu0 %1418
    %v1421 = vmul.f32 %v1411, %v1419
    %1423 = vrot.lane.b32.xlu0 %v1421, 32
    %v1424 = vpop.permute.xlu0 %1423
    %v1426 = vadd.f32 %v1416, %v1424
    %v1427 = vtanh.pop %v1426
    %1429 = vrot.lane.b32.xlu0 %v1427, 64
    %v1430 = vpop.permute.xlu0 %1429
    %v1432 = vmul.f32 %v1411, %v1430
    %v1433 = vpack.c.bf16 %v1432, %v1432
    %v1435 = vunpack.c.l.b16 %v1433
    %v1436 = vpack.c.b16 %v1435, %v1435
    %1437 = vrot.lane.b32.xlu0 %v1436, 32
    %v1438 = vpop.permute.xlu0 %1437
    %1440 = vst.msk [vmem:[%s5 + $0x4] sm:$0x8] %vm766, %v1438
    %v1441 = vrot.slane %v1348, 1
    %1442 = vrot.lane.b32.xlu0 %v1441, 32
    %v1443 = vpop.permute.xlu0 %1442
    %v1445 = vsel %vm172, %v1443, 0
    %1447 = vmatprep.subr.bf16.mxu0 0
    %1448 = vmatpush1.bf16.msra.mxu0 0
    %1449 = vmatprep.subr.bf16.mxu0 0
    %1450 = vmatpush1.bf16.msra.mxu0 0
    %1451 = vmatprep.subr.bf16.mxu0 0
    %1452 = vmatpush1.bf16.msra.mxu0 0
    %1453 = vmatprep.subr.bf16.mxu0 0
    %1454 = vmatpush1.bf16.msra.mxu0 0
    %1455 = vmatprep.subr.bf16.mxu0 0
    %1456 = vmatpush1.bf16.msra.mxu0 0
    %1457 = vmatprep.subr.bf16.mxu0 0
    %1458 = vmatpush1.bf16.msra.mxu0 0
    %1459 = vmatprep.subr.bf16.mxu0 0
    %1460 = vmatpush1.bf16.msra.mxu0 %v259
    %1461 = vmatprep.subr.bf16.mxu0 0
    %1462 = vmatpush1.bf16.msra.mxu0 %v258
    %1463 = vmatprep.subr.bf16.mxu0 0
    %1464 = vmatpush2.bf16.msra.mxu0 0
    %1465 = vmatprep.subr.bf16.mxu0 0
    %1466 = vmatpush2.bf16.msra.mxu0 0
    %1467 = vmatprep.subr.bf16.mxu0 0
    %1468 = vmatpush2.bf16.msra.mxu0 0
    %1469 = vmatprep.subr.bf16.mxu0 0
    %1470 = vmatpush2.bf16.msra.mxu0 0
    %1471 = vmatprep.subr.bf16.mxu0 0
    %1472 = vmatpush2.bf16.msra.mxu0 0
    %1473 = vmatprep.subr.bf16.mxu0 0
    %1474 = vmatpush2.bf16.msra.mxu0 0
    %1475 = vmatprep.subr.bf16.mxu0 0
    %1476 = vmatpush2.bf16.msra.mxu0 0
    %1477 = vmatprep.subr.bf16.mxu0 0
    %1478 = vmatpush2.bf16.msra.mxu0 0
    %1479 = vmatprep.mubr.bf16.mxu0 0
    %1480 = vmatmul.mubr.bf16.gmra.mxu0 %v1445
    %v1481 = vpop.f32.mrf.mxu0
    %v1482 = vadd.f32 0.0, %v1481
    %v1483 = vpop.f32.mrf.mxu0
    %v1484 = vpop.f32.mrf.mxu0
    %v1485 = vpop.f32.mrf.mxu0
    %1486 = vdwg.mxu0
    %v1487 = vadd.f32 %v146, %v1482
    %v1488 = vxor.u32 %v1487, 2147483648
    %v1489 = vmul.f32 %v1488, 1.442695
    %v1490 = vpow.pop %v1489
    %v1491 = vadd.f32 %v1490, 1.0
    %v1492 = vrcp.pop %v1491
    %v1493 = vmul.f32 1.0, %v1492
    %v1494 = vtanh.pop %v1487
    %v1496 = vrot.slane %v1341, 2
    %v1498 = vmul.f32 %v1493, %v1496
    %1500 = vrot.lane.b32.xlu0 %v1494, 64
    %v1501 = vpop.permute.xlu0 %1500
    %v1503 = vmul.f32 %v1493, %v1501
    %1505 = vrot.lane.b32.xlu0 %v1503, 32
    %v1506 = vpop.permute.xlu0 %1505
    %v1508 = vadd.f32 %v1498, %v1506
    %v1509 = vtanh.pop %v1508
    %1511 = vrot.lane.b32.xlu0 %v1509, 64
    %v1512 = vpop.permute.xlu0 %1511
    %v1514 = vmul.f32 %v1493, %v1512
    %v1515 = vpack.c.bf16 %v1514, %v1514
    %v1517 = vunpack.c.l.b16 %v1515
    %v1518 = vpack.c.b16 %v1517, %v1517
    %1519 = vrot.lane.b32.xlu0 %v1518, 64
    %v1520 = vpop.permute.xlu0 %1519
    %1522 = vst.msk [vmem:[%s5] sm:$0x1] %vm849, %v1520
    // Predicated region
    $region38: #{sequence_classifier_forward.4} parent=1 // pred_check
      _
    $region39: #{sequence_classifier_forward.4} parent=1 // pred_check_branch
      %1524 = sbr.rel (0) target = $region41
    $region40: #{sequence_classifier_forward.4} parent=1 // pred_region
      _
    $region41: #{sequence_classifier_forward.4} parent=1 // pred_fallthru
      _
    // Predicated region
    $region42: #{sequence_classifier_forward.4} parent=1 // pred_check
      _
    $region43: #{sequence_classifier_forward.4} parent=1 // pred_check_branch
      %1526 = sbr.rel (0) target = $region45
    $region44: #{sequence_classifier_forward.4} parent=1 // pred_region
      _
    $region45: #{sequence_classifier_forward.4} parent=1 // pred_fallthru
      _
    %1527 = vsyncpa [#allocation3], 1
    %1528 = vsyncpa [#allocation5], 1
    %1529 = vsyncpa [#allocation8], 1

// kernel: sequence_classifier_forward.5
$region0: #{sequence_classifier_forward.5}
  #allocation0 [shape = 'u32[]', space=smem, size = 0x4, offset = 0x4, fixed_abs, tag = 'smem constant byte address 0x4 - core index']
  #allocation1 [shape = 'u32[144,128]{1,0:T(1,128)}', space=vmem, size = 0x12000, scoped, tag = 'internal scratch']
  %s0 = inlined_call_operand.vmem [shape: bf16[16,64], index: 0, kind: input, shape index: {}]
  %s1 = inlined_call_operand.vmem [shape: bf16[64,256], index: 1, kind: input, shape index: {}]
  %s2 = inlined_call_operand.vmem [shape: bf16[32,128], index: 2, kind: input, shape index: {}]
  %s3 = inlined_call_operand.vmem [shape: bf16[32,128], index: 3, kind: input, shape index: {}]
  %s4 = inlined_call_operand.vmem [shape: f32[1,256], index: 4, kind: input, shape index: {}]
  %s5 = inlined_call_operand.vmem [shape: bf16[16,64], index: 5, kind: output, shape index: {}]
  %s6 = sld [smem:[#allocation0]]
  $region30: #{sequence_classifier_forward.5} parent=0
    _
  %s8 = ssub.s32 1, %s6
  %s9 = scalar_select 0, %s8, %s6
  // Predicated region
  $region2: #{sequence_classifier_forward.5} parent=0 // pred_check
    _
  $region3: #{sequence_classifier_forward.5} parent=0 // pred_check_branch
    %11 = sbr.rel (0) target = $region5
  $region4: #{sequence_classifier_forward.5} parent=0 // pred_region
    _
  $region5: #{sequence_classifier_forward.5} parent=0 // pred_fallthru
    _
  // Predicated region
  $region6: #{sequence_classifier_forward.5} parent=0 // pred_check
    _
  $region7: #{sequence_classifier_forward.5} parent=0 // pred_check_branch
    %13 = sbr.rel (0) target = $region9
  $region8: #{sequence_classifier_forward.5} parent=0 // pred_region
    _
  $region9: #{sequence_classifier_forward.5} parent=0 // pred_fallthru
    _
  // Predicated region
  $region10: #{sequence_classifier_forward.5} parent=0 // pred_check
    _
  $region11: #{sequence_classifier_forward.5} parent=0 // pred_check_branch
    %15 = sbr.rel (0) target = $region13
  $region12: #{sequence_classifier_forward.5} parent=0 // pred_region
    _
  $region13: #{sequence_classifier_forward.5} parent=0 // pred_fallthru
    _
  // Predicated region
  $region14: #{sequence_classifier_forward.5} parent=0 // pred_check
    _
  $region15: #{sequence_classifier_forward.5} parent=0 // pred_check_branch
    %17 = sbr.rel (0) target = $region17
  $region16: #{sequence_classifier_forward.5} parent=0 // pred_region
    _
  $region17: #{sequence_classifier_forward.5} parent=0 // pred_fallthru
    _
  // Predicated region
  $region18: #{sequence_classifier_forward.5} parent=0 // pred_check
    _
  $region19: #{sequence_classifier_forward.5} parent=0 // pred_check_branch
    %19 = sbr.rel (0) target = $region21
  $region20: #{sequence_classifier_forward.5} parent=0 // pred_region
    _
  $region21: #{sequence_classifier_forward.5} parent=0 // pred_fallthru
    _
  %v21 = vld [vmem:[%s0] sm:$0xf]
  %v22 = vld [vmem:[%s0 + $0x4] sm:$0xf]
  %v23 = vld [vmem:[%s1] sm:$0xff]
  %v24 = vld [vmem:[%s1 + $0x8] sm:$0xff]
  %v25 = vld [vmem:[%s1 + $0x10] sm:$0xff]
  %v26 = vld [vmem:[%s1 + $0x18] sm:$0xff]
  %v27 = vld [vmem:[%s1 + $0x20] sm:$0xff]
  %v28 = vld [vmem:[%s1 + $0x28] sm:$0xff]
  %v29 = vld [vmem:[%s1 + $0x30] sm:$0xff]
  %v30 = vld [vmem:[%s1 + $0x38] sm:$0xff]
  %v31 = vld [vmem:[%s4] sm:$0x3]
  %v33 = vlaneseq
  %v34 = vshrl.u32 %v33, 7
  %v35 = vsub.s32 0, %v34
  %v36 = vrot.slane %v31, %v35
  %v37 = vlaneseq
  %v38 = vshrl.u32 %v37, 7
  %v39 = vsub.s32 1, %v38
  %v40 = vrot.slane %v31, %v39
  %v45 = vunpack.c.l.b16 %v21
  %v46 = vunpack.c.l.b16 %v22
  %v47 = vpack.c.b16 %v46, %v45
  %v56 = vunpack.c.l.b16 %v23
  %v57 = vunpack.c.h.b16 %v23
  %v58 = vunpack.c.l.b16 %v24
  %v59 = vunpack.c.h.b16 %v24
  %v60 = vunpack.c.l.b16 %v25
  %v61 = vunpack.c.h.b16 %v25
  %v62 = vunpack.c.l.b16 %v26
  %v63 = vunpack.c.h.b16 %v26
  %v64 = vunpack.c.l.b16 %v27
  %v65 = vunpack.c.h.b16 %v27
  %v66 = vunpack.c.l.b16 %v28
  %v67 = vunpack.c.h.b16 %v28
  %v68 = vunpack.c.l.b16 %v29
  %v69 = vunpack.c.h.b16 %v29
  %v70 = vunpack.c.l.b16 %v30
  %v71 = vunpack.c.h.b16 %v30
  %v72 = vpack.c.b16 %v58, %v56
  %v73 = vpack.c.b16 %v59, %v57
  %v74 = vpack.c.b16 %v62, %v60
  %v75 = vpack.c.b16 %v63, %v61
  %v76 = vpack.c.b16 %v66, %v64
  %v77 = vpack.c.b16 %v67, %v65
  %v78 = vpack.c.b16 %v70, %v68
  %v79 = vpack.c.b16 %v71, %v69
  %vm88 = vcmask 523264
  %v90 = vsel %vm88, %v47, 0
  %92 = vmatprep.subr.bf16.mxu0 0
  %93 = vmatpush1.bf16.msra.mxu0 0
  %94 = vmatprep.subr.bf16.mxu0 0
  %95 = vmatpush1.bf16.msra.mxu0 0
  %96 = vmatprep.subr.bf16.mxu0 0
  %97 = vmatpush1.bf16.msra.mxu0 0
  %98 = vmatprep.subr.bf16.mxu0 0
  %99 = vmatpush1.bf16.msra.mxu0 0
  %100 = vmatprep.subr.bf16.mxu0 %v79
  %101 = vmatpush1.bf16.msra.mxu0 %v78
  %102 = vmatprep.subr.bf16.mxu0 %v77
  %103 = vmatpush1.bf16.msra.mxu0 %v76
  %104 = vmatprep.subr.bf16.mxu0 %v75
  %105 = vmatpush1.bf16.msra.mxu0 %v74
  %106 = vmatprep.subr.bf16.mxu0 %v73
  %107 = vmatpush1.bf16.msra.mxu0 %v72
  %108 = vmatprep.subr.bf16.mxu0 0
  %109 = vmatpush2.bf16.msra.mxu0 0
  %110 = vmatprep.subr.bf16.mxu0 0
  %111 = vmatpush2.bf16.msra.mxu0 0
  %112 = vmatprep.subr.bf16.mxu0 0
  %113 = vmatpush2.bf16.msra.mxu0 0
  %114 = vmatprep.subr.bf16.mxu0 0
  %115 = vmatpush2.bf16.msra.mxu0 0
  %116 = vmatprep.subr.bf16.mxu0 0
  %117 = vmatpush2.bf16.msra.mxu0 0
  %118 = vmatprep.subr.bf16.mxu0 0
  %119 = vmatpush2.bf16.msra.mxu0 0
  %120 = vmatprep.subr.bf16.mxu0 0
  %121 = vmatpush2.bf16.msra.mxu0 0
  %122 = vmatprep.subr.bf16.mxu0 0
  %123 = vmatpush2.bf16.msra.mxu0 0
  %124 = vmatprep.mubr.bf16.mxu0 0
  %125 = vmatmul.mubr.bf16.gmra.mxu0 %v90
  %v126 = vpop.f32.mrf.mxu0
  %v127 = vadd.f32 %v36, %v126
  %v128 = vpop.f32.mrf.mxu0
  %v129 = vadd.f32 %v40, %v128
  %v130 = vpop.f32.mrf.mxu0
  %v131 = vadd.f32 %v36, %v130
  %v132 = vpop.f32.mrf.mxu0
  %v133 = vadd.f32 %v40, %v132
  %134 = vdwg.mxu0
  %v135 = vld [vmem:[%s2] sm:$0xf]
  %v136 = vld [vmem:[%s2 + $0x4] sm:$0xf]
  %v137 = vld [vmem:[%s2 + $0x8] sm:$0xf]
  %v138 = vld [vmem:[%s2 + $0xc] sm:$0xf]
  %v139 = vld [vmem:[%s3] sm:$0xf]
  %v140 = vld [vmem:[%s3 + $0x4] sm:$0xf]
  %v141 = vld [vmem:[%s3 + $0x8] sm:$0xf]
  %v142 = vld [vmem:[%s3 + $0xc] sm:$0xf]
  %v147 = vunpack.c.l.b16 %v135
  %v148 = vunpack.c.l.b16 %v136
  %v149 = vunpack.c.l.b16 %v137
  %v150 = vunpack.c.l.b16 %v138
  %v151 = vpack.c.b16 %v148, %v147
  %v152 = vpack.c.b16 %v150, %v149
  %vm155 = vcmask 261120
  %v157 = vsel %vm155, 0, 0
  %159 = vmatprep.subr.bf16.mxu0 0
  %160 = vmatpush1.bf16.msra.mxu0 0
  %161 = vmatprep.subr.bf16.mxu0 0
  %162 = vmatpush1.bf16.msra.mxu0 0
  %163 = vmatprep.subr.bf16.mxu0 0
  %164 = vmatpush1.bf16.msra.mxu0 0
  %165 = vmatprep.subr.bf16.mxu0 0
  %166 = vmatpush1.bf16.msra.mxu0 0
  %167 = vmatprep.subr.bf16.mxu0 0
  %168 = vmatpush1.bf16.msra.mxu0 0
  %169 = vmatprep.subr.bf16.mxu0 0
  %170 = vmatpush1.bf16.msra.mxu0 0
  %171 = vmatprep.subr.bf16.mxu0 0
  %172 = vmatpush1.bf16.msra.mxu0 %v152
  %173 = vmatprep.subr.bf16.mxu0 0
  %174 = vmatpush1.bf16.msra.mxu0 %v151
  %175 = vmatprep.subr.bf16.mxu0 0
  %176 = vmatpush2.bf16.msra.mxu0 0
  %177 = vmatprep.subr.bf16.mxu0 0
  %178 = vmatpush2.bf16.msra.mxu0 0
  %179 = vmatprep.subr.bf16.mxu0 0
  %180 = vmatpush2.bf16.msra.mxu0 0
  %181 = vmatprep.subr.bf16.mxu0 0
  %182 = vmatpush2.bf16.msra.mxu0 0
  %183 = vmatprep.subr.bf16.mxu0 0
  %184 = vmatpush2.bf16.msra.mxu0 0
  %185 = vmatprep.subr.bf16.mxu0 0
  %186 = vmatpush2.bf16.msra.mxu0 0
  %187 = vmatprep.subr.bf16.mxu0 0
  %188 = vmatpush2.bf16.msra.mxu0 0
  %189 = vmatprep.subr.bf16.mxu0 0
  %190 = vmatpush2.bf16.msra.mxu0 0
  %191 = vmatprep.mubr.bf16.mxu0 0
  %192 = vmatmul.mubr.bf16.gmra.mxu0 %v157
  %v193 = vpop.f32.mrf.mxu0
  %v194 = vadd.f32 0.0, %v193
  %v195 = vpop.f32.mrf.mxu0
  %v196 = vpop.f32.mrf.mxu0
  %v197 = vpop.f32.mrf.mxu0
  %198 = vdwg.mxu0
  %v199 = vadd.f32 %v127, %v194
  %v200 = vxor.u32 %v199, 2147483648
  %v201 = vmul.f32 %v200, 1.442695
  %v202 = vpow.pop %v201
  %v203 = vadd.f32 %v202, 1.0
  %v204 = vrcp.pop %v203
  %v205 = vmul.f32 1.0, %v204
  %v206 = vtanh.pop %v199
  %v207 = vmul.f32 %v205, 0.0
  %209 = vrot.lane.b32.xlu0 %v206, 64
  %v210 = vpop.permute.xlu0 %209
  %v212 = vmul.f32 %v205, %v210
  %214 = vrot.lane.b32.xlu0 %v212, 32
  %v215 = vpop.permute.xlu0 %214
  %v217 = vadd.f32 %v207, %v215
  %v218 = vtanh.pop %v217
  %220 = vrot.lane.b32.xlu0 %v218, 64
  %v221 = vpop.permute.xlu0 %220
  %v223 = vmul.f32 %v205, %v221
  %v224 = vpack.c.bf16 %v223, %v223
  %v226 = vunpack.c.l.b16 %v224
  %v227 = vpack.c.b16 %v226, %v226
  %228 = vrot.lane.b32.xlu0 %v227, 32
  %v229 = vpop.permute.xlu0 %228
  %vm231 = vcmask 253952
  %232 = vst.msk [vmem:[%s5] sm:$0x1] %vm231, %v229
  %v237 = vunpack.c.l.b16 %v139
  %v238 = vunpack.c.l.b16 %v140
  %v239 = vunpack.c.l.b16 %v141
  %v240 = vunpack.c.l.b16 %v142
  %v241 = vpack.c.b16 %v238, %v237
  %v242 = vpack.c.b16 %v240, %v239
  %245 = vmatprep.subr.bf16.mxu0 0
  %246 = vmatpush1.bf16.msra.mxu0 0
  %247 = vmatprep.subr.bf16.mxu0 0
  %248 = vmatpush1.bf16.msra.mxu0 0
  %249 = vmatprep.subr.bf16.mxu0 0
  %250 = vmatpush1.bf16.msra.mxu0 0
  %251 = vmatprep.subr.bf16.mxu0 0
  %252 = vmatpush1.bf16.msra.mxu0 0
  %253 = vmatprep.subr.bf16.mxu0 0
  %254 = vmatpush1.bf16.msra.mxu0 0
  %255 = vmatprep.subr.bf16.mxu0 0
  %256 = vmatpush1.bf16.msra.mxu0 0
  %257 = vmatprep.subr.bf16.mxu0 0
  %258 = vmatpush1.bf16.msra.mxu0 %v242
  %259 = vmatprep.subr.bf16.mxu0 0
  %260 = vmatpush1.bf16.msra.mxu0 %v241
  %261 = vmatprep.subr.bf16.mxu0 0
  %262 = vmatpush2.bf16.msra.mxu0 0
  %263 = vmatprep.subr.bf16.mxu0 0
  %264 = vmatpush2.bf16.msra.mxu0 0
  %265 = vmatprep.subr.bf16.mxu0 0
  %266 = vmatpush2.bf16.msra.mxu0 0
  %267 = vmatprep.subr.bf16.mxu0 0
  %268 = vmatpush2.bf16.msra.mxu0 0
  %269 = vmatprep.subr.bf16.mxu0 0
  %270 = vmatpush2.bf16.msra.mxu0 0
  %271 = vmatprep.subr.bf16.mxu0 0
  %272 = vmatpush2.bf16.msra.mxu0 0
  %273 = vmatprep.subr.bf16.mxu0 0
  %274 = vmatpush2.bf16.msra.mxu0 0
  %275 = vmatprep.subr.bf16.mxu0 0
  %276 = vmatpush2.bf16.msra.mxu0 0
  %277 = vmatprep.mubr.bf16.mxu0 0
  %278 = vmatmul.mubr.bf16.gmra.mxu0 %v157
  %v279 = vpop.f32.mrf.mxu0
  %v280 = vadd.f32 0.0, %v279
  %v281 = vpop.f32.mrf.mxu0
  %v282 = vpop.f32.mrf.mxu0
  %v283 = vpop.f32.mrf.mxu0
  %284 = vdwg.mxu0
  %v286 = vrot.slane %v280, 2
  %v288 = vadd.f32 %v133, %v286
  %v289 = vxor.u32 %v288, 2147483648
  %v290 = vmul.f32 %v289, 1.442695
  %v291 = vpow.pop %v290
  %v292 = vadd.f32 %v291, 1.0
  %v293 = vrcp.pop %v292
  %v294 = vmul.f32 1.0, %v293
  %v295 = vtanh.pop %v288
  %v296 = vmul.f32 %v294, 0.0
  %298 = vrot.lane.b32.xlu0 %v295, 64
  %v299 = vpop.permute.xlu0 %298
  %v301 = vmul.f32 %v294, %v299
  %303 = vrot.lane.b32.xlu0 %v301, 32
  %v304 = vpop.permute.xlu0 %303
  %v306 = vadd.f32 %v296, %v304
  %v307 = vtanh.pop %v306
  %309 = vrot.lane.b32.xlu0 %v307, 64
  %v310 = vpop.permute.xlu0 %309
  %v312 = vmul.f32 %v294, %v310
  %v313 = vpack.c.bf16 %v312, %v312
  %v315 = vunpack.c.l.b16 %v313
  %v316 = vpack.c.b16 %v315, %v315
  %317 = vrot.lane.b32.xlu0 %v316, 64
  %v318 = vpop.permute.xlu0 %317
  %vm320 = vcmask 519427
  %321 = vst.msk [vmem:[%s5 + $0x4] sm:$0x8] %vm320, %v318
  %322 = vrot.lane.b32.xlu0 %v224, 32
  %v323 = vpop.permute.xlu0 %322
  %v325 = vsel %vm155, %v323, 0
  %327 = vmatprep.subr.bf16.mxu0 0
  %328 = vmatpush1.bf16.msra.mxu0 0
  %329 = vmatprep.subr.bf16.mxu0 0
  %330 = vmatpush1.bf16.msra.mxu0 0
  %331 = vmatprep.subr.bf16.mxu0 0
  %332 = vmatpush1.bf16.msra.mxu0 0
  %333 = vmatprep.subr.bf16.mxu0 0
  %334 = vmatpush1.bf16.msra.mxu0 0
  %335 = vmatprep.subr.bf16.mxu0 0
  %336 = vmatpush1.bf16.msra.mxu0 0
  %337 = vmatprep.subr.bf16.mxu0 0
  %338 = vmatpush1.bf16.msra.mxu0 0
  %339 = vmatprep.subr.bf16.mxu0 0
  %340 = vmatpush1.bf16.msra.mxu0 %v152
  %341 = vmatprep.subr.bf16.mxu0 0
  %342 = vmatpush1.bf16.msra.mxu0 %v151
  %343 = vmatprep.subr.bf16.mxu0 0
  %344 = vmatpush2.bf16.msra.mxu0 0
  %345 = vmatprep.subr.bf16.mxu0 0
  %346 = vmatpush2.bf16.msra.mxu0 0
  %347 = vmatprep.subr.bf16.mxu0 0
  %348 = vmatpush2.bf16.msra.mxu0 0
  %349 = vmatprep.subr.bf16.mxu0 0
  %350 = vmatpush2.bf16.msra.mxu0 0
  %351 = vmatprep.subr.bf16.mxu0 0
  %352 = vmatpush2.bf16.msra.mxu0 0
  %353 = vmatprep.subr.bf16.mxu0 0
  %354 = vmatpush2.bf16.msra.mxu0 0
  %355 = vmatprep.subr.bf16.mxu0 0
  %356 = vmatpush2.bf16.msra.mxu0 0
  %357 = vmatprep.subr.bf16.mxu0 0
  %358 = vmatpush2.bf16.msra.mxu0 0
  %359 = vmatprep.mubr.bf16.mxu0 0
  %360 = vmatmul.mubr.bf16.gmra.mxu0 %v325
  %v361 = vpop.f32.mrf.mxu0
  %v362 = vadd.f32 0.0, %v361
  %v363 = vpop.f32.mrf.mxu0
  %v364 = vpop.f32.mrf.mxu0
  %v365 = vpop.f32.mrf.mxu0
  %366 = vdwg.mxu0
  %v368 = vrot.slane %v362, 6
  %v370 = vadd.f32 %v127, %v368
  %v371 = vxor.u32 %v370, 2147483648
  %v372 = vmul.f32 %v371, 1.442695
  %v373 = vpow.pop %v372
  %v374 = vadd.f32 %v373, 1.0
  %v375 = vrcp.pop %v374
  %v376 = vmul.f32 1.0, %v375
  %v377 = vtanh.pop %v370
  %v379 = vrot.slane %v217, 6
  %v381 = vmul.f32 %v376, %v379
  %383 = vrot.lane.b32.xlu0 %v377, 64
  %v384 = vpop.permute.xlu0 %383
  %v386 = vmul.f32 %v376, %v384
  %388 = vrot.lane.b32.xlu0 %v386, 32
  %v389 = vpop.permute.xlu0 %388
  %v391 = vadd.f32 %v381, %v389
  %v392 = vtanh.pop %v391
  %394 = vrot.lane.b32.xlu0 %v392, 64
  %v395 = vpop.permute.xlu0 %394
  %v397 = vmul.f32 %v376, %v395
  %v398 = vpack.c.bf16 %v397, %v397
  %v400 = vunpack.c.l.b16 %v398
  %v401 = vpack.c.b16 %v400, %v400
  %402 = vrot.lane.b32.xlu0 %v401, 32
  %v403 = vpop.permute.xlu0 %402
  %vm405 = vcmask 254977
  %406 = vst.msk [vmem:[%s5] sm:$0x2] %vm405, %v403
  %v407 = vrot.slane %v313, 3
  %408 = vrot.lane.b32.xlu0 %v407, 32
  %v409 = vpop.permute.xlu0 %408
  %v411 = vsel %vm155, %v409, 0
  %413 = vmatprep.subr.bf16.mxu0 0
  %414 = vmatpush1.bf16.msra.mxu0 0
  %415 = vmatprep.subr.bf16.mxu0 0
  %416 = vmatpush1.bf16.msra.mxu0 0
  %417 = vmatprep.subr.bf16.mxu0 0
  %418 = vmatpush1.bf16.msra.mxu0 0
  %419 = vmatprep.subr.bf16.mxu0 0
  %420 = vmatpush1.bf16.msra.mxu0 0
  %421 = vmatprep.subr.bf16.mxu0 0
  %422 = vmatpush1.bf16.msra.mxu0 0
  %423 = vmatprep.subr.bf16.mxu0 0
  %424 = vmatpush1.bf16.msra.mxu0 0
  %425 = vmatprep.subr.bf16.mxu0 0
  %426 = vmatpush1.bf16.msra.mxu0 %v242
  %427 = vmatprep.subr.bf16.mxu0 0
  %428 = vmatpush1.bf16.msra.mxu0 %v241
  %429 = vmatprep.subr.bf16.mxu0 0
  %430 = vmatpush2.bf16.msra.mxu0 0
  %431 = vmatprep.subr.bf16.mxu0 0
  %432 = vmatpush2.bf16.msra.mxu0 0
  %433 = vmatprep.subr.bf16.mxu0 0
  %434 = vmatpush2.bf16.msra.mxu0 0
  %435 = vmatprep.subr.bf16.mxu0 0
  %436 = vmatpush2.bf16.msra.mxu0 0
  %437 = vmatprep.subr.bf16.mxu0 0
  %438 = vmatpush2.bf16.msra.mxu0 0
  %439 = vmatprep.subr.bf16.mxu0 0
  %440 = vmatpush2.bf16.msra.mxu0 0
  %441 = vmatprep.subr.bf16.mxu0 0
  %442 = vmatpush2.bf16.msra.mxu0 0
  %443 = vmatprep.subr.bf16.mxu0 0
  %444 = vmatpush2.bf16.msra.mxu0 0
  %445 = vmatprep.mubr.bf16.mxu0 0
  %446 = vmatmul.mubr.bf16.gmra.mxu0 %v411
  %v447 = vpop.f32.mrf.mxu0
  %v448 = vadd.f32 0.0, %v447
  %v449 = vpop.f32.mrf.mxu0
  %v450 = vpop.f32.mrf.mxu0
  %v451 = vpop.f32.mrf.mxu0
  %452 = vdwg.mxu0
  %v454 = vrot.slane %v448, 4
  %v456 = vadd.f32 %v133, %v454
  %v457 = vxor.u32 %v456, 2147483648
  %v458 = vmul.f32 %v457, 1.442695
  %v459 = vpow.pop %v458
  %v460 = vadd.f32 %v459, 1.0
  %v461 = vrcp.pop %v460
  %v462 = vmul.f32 1.0, %v461
  %v463 = vtanh.pop %v456
  %v465 = vrot.slane %v306, 2
  %v467 = vmul.f32 %v462, %v465
  %469 = vrot.lane.b32.xlu0 %v463, 64
  %v470 = vpop.permute.xlu0 %469
  %v472 = vmul.f32 %v462, %v470
  %474 = vrot.lane.b32.xlu0 %v472, 32
  %v475 = vpop.permute.xlu0 %474
  %v477 = vadd.f32 %v467, %v475
  %v478 = vtanh.pop %v477
  %480 = vrot.lane.b32.xlu0 %v478, 64
  %v481 = vpop.permute.xlu0 %480
  %v483 = vmul.f32 %v462, %v481
  %v484 = vpack.c.bf16 %v483, %v483
  %v486 = vunpack.c.l.b16 %v484
  %v487 = vpack.c.b16 %v486, %v486
  %488 = vrot.lane.b32.xlu0 %v487, 64
  %v489 = vpop.permute.xlu0 %488
  %vm491 = vcmask 518402
  %492 = vst.msk [vmem:[%s5 + $0x4] sm:$0x4] %vm491, %v489
  %v493 = vrot.slane %v398, 1
  %494 = vrot.lane.b32.xlu0 %v493, 32
  %v495 = vpop.permute.xlu0 %494
  %v497 = vsel %vm155, %v495, 0
  %499 = vmatprep.subr.bf16.mxu0 0
  %500 = vmatpush1.bf16.msra.mxu0 0
  %501 = vmatprep.subr.bf16.mxu0 0
  %502 = vmatpush1.bf16.msra.mxu0 0
  %503 = vmatprep.subr.bf16.mxu0 0
  %504 = vmatpush1.bf16.msra.mxu0 0
  %505 = vmatprep.subr.bf16.mxu0 0
  %506 = vmatpush1.bf16.msra.mxu0 0
  %507 = vmatprep.subr.bf16.mxu0 0
  %508 = vmatpush1.bf16.msra.mxu0 0
  %509 = vmatprep.subr.bf16.mxu0 0
  %510 = vmatpush1.bf16.msra.mxu0 0
  %511 = vmatprep.subr.bf16.mxu0 0
  %512 = vmatpush1.bf16.msra.mxu0 %v152
  %513 = vmatprep.subr.bf16.mxu0 0
  %514 = vmatpush1.bf16.msra.mxu0 %v151
  %515 = vmatprep.subr.bf16.mxu0 0
  %516 = vmatpush2.bf16.msra.mxu0 0
  %517 = vmatprep.subr.bf16.mxu0 0
  %518 = vmatpush2.bf16.msra.mxu0 0
  %519 = vmatprep.subr.bf16.mxu0 0
  %520 = vmatpush2.bf16.msra.mxu0 0
  %521 = vmatprep.subr.bf16.mxu0 0
  %522 = vmatpush2.bf16.msra.mxu0 0
  %523 = vmatprep.subr.bf16.mxu0 0
  %524 = vmatpush2.bf16.msra.mxu0 0
  %525 = vmatprep.subr.bf16.mxu0 0
  %526 = vmatpush2.bf16.msra.mxu0 0
  %527 = vmatprep.subr.bf16.mxu0 0
  %528 = vmatpush2.bf16.msra.mxu0 0
  %529 = vmatprep.subr.bf16.mxu0 0
  %530 = vmatpush2.bf16.msra.mxu0 0
  %531 = vmatprep.mubr.bf16.mxu0 0
  %532 = vmatmul.mubr.bf16.gmra.mxu0 %v497
  %v533 = vpop.f32.mrf.mxu0
  %v534 = vadd.f32 0.0, %v533
  %v535 = vpop.f32.mrf.mxu0
  %v536 = vpop.f32.mrf.mxu0
  %v537 = vpop.f32.mrf.mxu0
  %538 = vdwg.mxu0
  %v540 = vrot.slane %v534, 4
  %v542 = vadd.f32 %v127, %v540
  %v543 = vxor.u32 %v542, 2147483648
  %v544 = vmul.f32 %v543, 1.442695
  %v545 = vpow.pop %v544
  %v546 = vadd.f32 %v545, 1.0
  %v547 = vrcp.pop %v546
  %v548 = vmul.f32 1.0, %v547
  %v549 = vtanh.pop %v542
  %v551 = vrot.slane %v391, 6
  %v553 = vmul.f32 %v548, %v551
  %555 = vrot.lane.b32.xlu0 %v549, 64
  %v556 = vpop.permute.xlu0 %555
  %v558 = vmul.f32 %v548, %v556
  %560 = vrot.lane.b32.xlu0 %v558, 32
  %v561 = vpop.permute.xlu0 %560
  %v563 = vadd.f32 %v553, %v561
  %v564 = vtanh.pop %v563
  %566 = vrot.lane.b32.xlu0 %v564, 64
  %v567 = vpop.permute.xlu0 %566
  %v569 = vmul.f32 %v548, %v567
  %v570 = vpack.c.bf16 %v569, %v569
  %v572 = vunpack.c.l.b16 %v570
  %v573 = vpack.c.b16 %v572, %v572
  %574 = vrot.lane.b32.xlu0 %v573, 32
  %v575 = vpop.permute.xlu0 %574
  %vm577 = vcmask 256002
  %578 = vst.msk [vmem:[%s5] sm:$0x4] %vm577, %v575
  %v579 = vrot.slane %v484, 2
  %580 = vrot.lane.b32.xlu0 %v579, 32
  %v581 = vpop.permute.xlu0 %580
  %v583 = vsel %vm155, %v581, 0
  %585 = vmatprep.subr.bf16.mxu0 0
  %586 = vmatpush1.bf16.msra.mxu0 0
  %587 = vmatprep.subr.bf16.mxu0 0
  %588 = vmatpush1.bf16.msra.mxu0 0
  %589 = vmatprep.subr.bf16.mxu0 0
  %590 = vmatpush1.bf16.msra.mxu0 0
  %591 = vmatprep.subr.bf16.mxu0 0
  %592 = vmatpush1.bf16.msra.mxu0 0
  %593 = vmatprep.subr.bf16.mxu0 0
  %594 = vmatpush1.bf16.msra.mxu0 0
  %595 = vmatprep.subr.bf16.mxu0 0
  %596 = vmatpush1.bf16.msra.mxu0 0
  %597 = vmatprep.subr.bf16.mxu0 0
  %598 = vmatpush1.bf16.msra.mxu0 %v242
  %599 = vmatprep.subr.bf16.mxu0 0
  %600 = vmatpush1.bf16.msra.mxu0 %v241
  %601 = vmatprep.subr.bf16.mxu0 0
  %602 = vmatpush2.bf16.msra.mxu0 0
  %603 = vmatprep.subr.bf16.mxu0 0
  %604 = vmatpush2.bf16.msra.mxu0 0
  %605 = vmatprep.subr.bf16.mxu0 0
  %606 = vmatpush2.bf16.msra.mxu0 0
  %607 = vmatprep.subr.bf16.mxu0 0
  %608 = vmatpush2.bf16.msra.mxu0 0
  %609 = vmatprep.subr.bf16.mxu0 0
  %610 = vmatpush2.bf16.msra.mxu0 0
  %611 = vmatprep.subr.bf16.mxu0 0
  %612 = vmatpush2.bf16.msra.mxu0 0
  %613 = vmatprep.subr.bf16.mxu0 0
  %614 = vmatpush2.bf16.msra.mxu0 0
  %615 = vmatprep.subr.bf16.mxu0 0
  %616 = vmatpush2.bf16.msra.mxu0 0
  %617 = vmatprep.mubr.bf16.mxu0 0
  %618 = vmatmul.mubr.bf16.gmra.mxu0 %v583
  %v619 = vpop.f32.mrf.mxu0
  %v620 = vadd.f32 0.0, %v619
  %v621 = vpop.f32.mrf.mxu0
  %v622 = vpop.f32.mrf.mxu0
  %v623 = vpop.f32.mrf.mxu0
  %624 = vdwg.mxu0
  %v626 = vrot.slane %v620, 6
  %v628 = vadd.f32 %v133, %v626
  %v629 = vxor.u32 %v628, 2147483648
  %v630 = vmul.f32 %v629, 1.442695
  %v631 = vpow.pop %v630
  %v632 = vadd.f32 %v631, 1.0
  %v633 = vrcp.pop %v632
  %v634 = vmul.f32 1.0, %v633
  %v635 = vtanh.pop %v628
  %v637 = vrot.slane %v477, 2
  %v639 = vmul.f32 %v634, %v637
  %641 = vrot.lane.b32.xlu0 %v635, 64
  %v642 = vpop.permute.xlu0 %641
  %v644 = vmul.f32 %v634, %v642
  %646 = vrot.lane.b32.xlu0 %v644, 32
  %v647 = vpop.permute.xlu0 %646
  %v649 = vadd.f32 %v639, %v647
  %v650 = vtanh.pop %v649
  %652 = vrot.lane.b32.xlu0 %v650, 64
  %v653 = vpop.permute.xlu0 %652
  %v655 = vmul.f32 %v634, %v653
  %v656 = vpack.c.bf16 %v655, %v655
  %v658 = vunpack.c.l.b16 %v656
  %v659 = vpack.c.b16 %v658, %v658
  %660 = vrot.lane.b32.xlu0 %v659, 64
  %v661 = vpop.permute.xlu0 %660
  %vm663 = vcmask 517377
  %664 = vst.msk [vmem:[%s5 + $0x4] sm:$0x2] %vm663, %v661
  %v665 = vrot.slane %v570, 2
  %666 = vrot.lane.b32.xlu0 %v665, 32
  %v667 = vpop.permute.xlu0 %666
  %v669 = vsel %vm155, %v667, 0
  %671 = vmatprep.subr.bf16.mxu0 0
  %672 = vmatpush1.bf16.msra.mxu0 0
  %673 = vmatprep.subr.bf16.mxu0 0
  %674 = vmatpush1.bf16.msra.mxu0 0
  %675 = vmatprep.subr.bf16.mxu0 0
  %676 = vmatpush1.bf16.msra.mxu0 0
  %677 = vmatprep.subr.bf16.mxu0 0
  %678 = vmatpush1.bf16.msra.mxu0 0
  %679 = vmatprep.subr.bf16.mxu0 0
  %680 = vmatpush1.bf16.msra.mxu0 0
  %681 = vmatprep.subr.bf16.mxu0 0
  %682 = vmatpush1.bf16.msra.mxu0 0
  %683 = vmatprep.subr.bf16.mxu0 0
  %684 = vmatpush1.bf16.msra.mxu0 %v152
  %685 = vmatprep.subr.bf16.mxu0 0
  %686 = vmatpush1.bf16.msra.mxu0 %v151
  %687 = vmatprep.subr.bf16.mxu0 0
  %688 = vmatpush2.bf16.msra.mxu0 0
  %689 = vmatprep.subr.bf16.mxu0 0
  %690 = vmatpush2.bf16.msra.mxu0 0
  %691 = vmatprep.subr.bf16.mxu0 0
  %692 = vmatpush2.bf16.msra.mxu0 0
  %693 = vmatprep.subr.bf16.mxu0 0
  %694 = vmatpush2.bf16.msra.mxu0 0
  %695 = vmatprep.subr.bf16.mxu0 0
  %696 = vmatpush2.bf16.msra.mxu0 0
  %697 = vmatprep.subr.bf16.mxu0 0
  %698 = vmatpush2.bf16.msra.mxu0 0
  %699 = vmatprep.subr.bf16.mxu0 0
  %700 = vmatpush2.bf16.msra.mxu0 0
  %701 = vmatprep.subr.bf16.mxu0 0
  %702 = vmatpush2.bf16.msra.mxu0 0
  %703 = vmatprep.mubr.bf16.mxu0 0
  %704 = vmatmul.mubr.bf16.gmra.mxu0 %v669
  %v705 = vpop.f32.mrf.mxu0
  %v706 = vadd.f32 0.0, %v705
  %v707 = vpop.f32.mrf.mxu0
  %v708 = vpop.f32.mrf.mxu0
  %v709 = vpop.f32.mrf.mxu0
  %710 = vdwg.mxu0
  %v712 = vrot.slane %v706, 2
  %v714 = vadd.f32 %v127, %v712
  %v715 = vxor.u32 %v714, 2147483648
  %v716 = vmul.f32 %v715, 1.442695
  %v717 = vpow.pop %v716
  %v718 = vadd.f32 %v717, 1.0
  %v719 = vrcp.pop %v718
  %v720 = vmul.f32 1.0, %v719
  %v721 = vtanh.pop %v714
  %v723 = vrot.slane %v563, 6
  %v725 = vmul.f32 %v720, %v723
  %727 = vrot.lane.b32.xlu0 %v721, 64
  %v728 = vpop.permute.xlu0 %727
  %v730 = vmul.f32 %v720, %v728
  %732 = vrot.lane.b32.xlu0 %v730, 32
  %v733 = vpop.permute.xlu0 %732
  %v735 = vadd.f32 %v725, %v733
  %v736 = vtanh.pop %v735
  %738 = vrot.lane.b32.xlu0 %v736, 64
  %v739 = vpop.permute.xlu0 %738
  %v741 = vmul.f32 %v720, %v739
  %v742 = vpack.c.bf16 %v741, %v741
  %v744 = vunpack.c.l.b16 %v742
  %v745 = vpack.c.b16 %v744, %v744
  %746 = vrot.lane.b32.xlu0 %v745, 32
  %v747 = vpop.permute.xlu0 %746
  %vm749 = vcmask 257027
  %750 = vst.msk [vmem:[%s5] sm:$0x8] %vm749, %v747
  %v751 = vrot.slane %v656, 1
  %752 = vrot.lane.b32.xlu0 %v751, 32
  %v753 = vpop.permute.xlu0 %752
  %v755 = vsel %vm155, %v753, 0
  %757 = vmatprep.subr.bf16.mxu0 0
  %758 = vmatpush1.bf16.msra.mxu0 0
  %759 = vmatprep.subr.bf16.mxu0 0
  %760 = vmatpush1.bf16.msra.mxu0 0
  %761 = vmatprep.subr.bf16.mxu0 0
  %762 = vmatpush1.bf16.msra.mxu0 0
  %763 = vmatprep.subr.bf16.mxu0 0
  %764 = vmatpush1.bf16.msra.mxu0 0
  %765 = vmatprep.subr.bf16.mxu0 0
  %766 = vmatpush1.bf16.msra.mxu0 0
  %767 = vmatprep.subr.bf16.mxu0 0
  %768 = vmatpush1.bf16.msra.mxu0 0
  %769 = vmatprep.subr.bf16.mxu0 0
  %770 = vmatpush1.bf16.msra.mxu0 %v242
  %771 = vmatprep.subr.bf16.mxu0 0
  %772 = vmatpush1.bf16.msra.mxu0 %v241
  %773 = vmatprep.subr.bf16.mxu0 0
  %774 = vmatpush2.bf16.msra.mxu0 0
  %775 = vmatprep.subr.bf16.mxu0 0
  %776 = vmatpush2.bf16.msra.mxu0 0
  %777 = vmatprep.subr.bf16.mxu0 0
  %778 = vmatpush2.bf16.msra.mxu0 0
  %779 = vmatprep.subr.bf16.mxu0 0
  %780 = vmatpush2.bf16.msra.mxu0 0
  %781 = vmatprep.subr.bf16.mxu0 0
  %782 = vmatpush2.bf16.msra.mxu0 0
  %783 = vmatprep.subr.bf16.mxu0 0
  %784 = vmatpush2.bf16.msra.mxu0 0
  %785 = vmatprep.subr.bf16.mxu0 0
  %786 = vmatpush2.bf16.msra.mxu0 0
  %787 = vmatprep.subr.bf16.mxu0 0
  %788 = vmatpush2.bf16.msra.mxu0 0
  %789 = vmatprep.mubr.bf16.mxu0 0
  %790 = vmatmul.mubr.bf16.gmra.mxu0 %v755
  %v791 = vpop.f32.mrf.mxu0
  %v792 = vadd.f32 0.0, %v791
  %v793 = vpop.f32.mrf.mxu0
  %v794 = vpop.f32.mrf.mxu0
  %v795 = vpop.f32.mrf.mxu0
  %796 = vdwg.mxu0
  %v797 = vadd.f32 %v133, %v792
  %v798 = vxor.u32 %v797, 2147483648
  %v799 = vmul.f32 %v798, 1.442695
  %v800 = vpow.pop %v799
  %v801 = vadd.f32 %v800, 1.0
  %v802 = vrcp.pop %v801
  %v803 = vmul.f32 1.0, %v802
  %v804 = vtanh.pop %v797
  %v806 = vrot.slane %v649, 2
  %v808 = vmul.f32 %v803, %v806
  %810 = vrot.lane.b32.xlu0 %v804, 64
  %v811 = vpop.permute.xlu0 %810
  %v813 = vmul.f32 %v803, %v811
  %815 = vrot.lane.b32.xlu0 %v813, 32
  %v816 = vpop.permute.xlu0 %815
  %v818 = vadd.f32 %v808, %v816
  %v819 = vtanh.pop %v818
  %821 = vrot.lane.b32.xlu0 %v819, 64
  %v822 = vpop.permute.xlu0 %821
  %v824 = vmul.f32 %v803, %v822
  %v825 = vpack.c.bf16 %v824, %v824
  %v827 = vunpack.c.l.b16 %v825
  %v828 = vpack.c.b16 %v827, %v827
  %829 = vrot.lane.b32.xlu0 %v828, 64
  %v830 = vpop.permute.xlu0 %829
  %vm832 = vcmask 516352
  %833 = vst.msk [vmem:[%s5 + $0x4] sm:$0x1] %vm832, %v830
  %v834 = vrot.slane %v742, 3
  %835 = vrot.lane.b32.xlu0 %v834, 32
  %v836 = vpop.permute.xlu0 %835
  %v838 = vsel %vm155, %v836, 0
  %840 = vmatprep.subr.bf16.mxu0 0
  %841 = vmatpush1.bf16.msra.mxu0 0
  %842 = vmatprep.subr.bf16.mxu0 0
  %843 = vmatpush1.bf16.msra.mxu0 0
  %844 = vmatprep.subr.bf16.mxu0 0
  %845 = vmatpush1.bf16.msra.mxu0 0
  %846 = vmatprep.subr.bf16.mxu0 0
  %847 = vmatpush1.bf16.msra.mxu0 0
  %848 = vmatprep.subr.bf16.mxu0 0
  %849 = vmatpush1.bf16.msra.mxu0 0
  %850 = vmatprep.subr.bf16.mxu0 0
  %851 = vmatpush1.bf16.msra.mxu0 0
  %852 = vmatprep.subr.bf16.mxu0 0
  %853 = vmatpush1.bf16.msra.mxu0 %v152
  %854 = vmatprep.subr.bf16.mxu0 0
  %855 = vmatpush1.bf16.msra.mxu0 %v151
  %856 = vmatprep.subr.bf16.mxu0 0
  %857 = vmatpush2.bf16.msra.mxu0 0
  %858 = vmatprep.subr.bf16.mxu0 0
  %859 = vmatpush2.bf16.msra.mxu0 0
  %860 = vmatprep.subr.bf16.mxu0 0
  %861 = vmatpush2.bf16.msra.mxu0 0
  %862 = vmatprep.subr.bf16.mxu0 0
  %863 = vmatpush2.bf16.msra.mxu0 0
  %864 = vmatprep.subr.bf16.mxu0 0
  %865 = vmatpush2.bf16.msra.mxu0 0
  %866 = vmatprep.subr.bf16.mxu0 0
  %867 = vmatpush2.bf16.msra.mxu0 0
  %868 = vmatprep.subr.bf16.mxu0 0
  %869 = vmatpush2.bf16.msra.mxu0 0
  %870 = vmatprep.subr.bf16.mxu0 0
  %871 = vmatpush2.bf16.msra.mxu0 0
  %872 = vmatprep.mubr.bf16.mxu0 0
  %873 = vmatmul.mubr.bf16.gmra.mxu0 %v838
  %v874 = vpop.f32.mrf.mxu0
  %v875 = vadd.f32 0.0, %v874
  %v876 = vpop.f32.mrf.mxu0
  %v877 = vpop.f32.mrf.mxu0
  %v878 = vpop.f32.mrf.mxu0
  %879 = vdwg.mxu0
  %v880 = vadd.f32 %v131, %v875
  %v881 = vxor.u32 %v880, 2147483648
  %v882 = vmul.f32 %v881, 1.442695
  %v883 = vpow.pop %v882
  %v884 = vadd.f32 %v883, 1.0
  %v885 = vrcp.pop %v884
  %v886 = vmul.f32 1.0, %v885
  %v887 = vtanh.pop %v880
  %v889 = vrot.slane %v735, 6
  %v891 = vmul.f32 %v886, %v889
  %893 = vrot.lane.b32.xlu0 %v887, 64
  %v894 = vpop.permute.xlu0 %893
  %v896 = vmul.f32 %v886, %v894
  %898 = vrot.lane.b32.xlu0 %v896, 32
  %v899 = vpop.permute.xlu0 %898
  %v901 = vadd.f32 %v891, %v899
  %v902 = vtanh.pop %v901
  %904 = vrot.lane.b32.xlu0 %v902, 64
  %v905 = vpop.permute.xlu0 %904
  %v907 = vmul.f32 %v886, %v905
  %v908 = vpack.c.bf16 %v907, %v907
  %v910 = vunpack.c.l.b16 %v908
  %v911 = vpack.c.b16 %v910, %v910
  %912 = vrot.lane.b32.xlu0 %v911, 32
  %v913 = vpop.permute.xlu0 %912
  %915 = vst.msk [vmem:[%s5 + $0x4] sm:$0x1] %vm231, %v913
  %916 = vrot.lane.b32.xlu0 %v825, 32
  %v917 = vpop.permute.xlu0 %916
  %v919 = vsel %vm155, %v917, 0
  %921 = vmatprep.subr.bf16.mxu0 0
  %922 = vmatpush1.bf16.msra.mxu0 0
  %923 = vmatprep.subr.bf16.mxu0 0
  %924 = vmatpush1.bf16.msra.mxu0 0
  %925 = vmatprep.subr.bf16.mxu0 0
  %926 = vmatpush1.bf16.msra.mxu0 0
  %927 = vmatprep.subr.bf16.mxu0 0
  %928 = vmatpush1.bf16.msra.mxu0 0
  %929 = vmatprep.subr.bf16.mxu0 0
  %930 = vmatpush1.bf16.msra.mxu0 0
  %931 = vmatprep.subr.bf16.mxu0 0
  %932 = vmatpush1.bf16.msra.mxu0 0
  %933 = vmatprep.subr.bf16.mxu0 0
  %934 = vmatpush1.bf16.msra.mxu0 %v242
  %935 = vmatprep.subr.bf16.mxu0 0
  %936 = vmatpush1.bf16.msra.mxu0 %v241
  %937 = vmatprep.subr.bf16.mxu0 0
  %938 = vmatpush2.bf16.msra.mxu0 0
  %939 = vmatprep.subr.bf16.mxu0 0
  %940 = vmatpush2.bf16.msra.mxu0 0
  %941 = vmatprep.subr.bf16.mxu0 0
  %942 = vmatpush2.bf16.msra.mxu0 0
  %943 = vmatprep.subr.bf16.mxu0 0
  %944 = vmatpush2.bf16.msra.mxu0 0
  %945 = vmatprep.subr.bf16.mxu0 0
  %946 = vmatpush2.bf16.msra.mxu0 0
  %947 = vmatprep.subr.bf16.mxu0 0
  %948 = vmatpush2.bf16.msra.mxu0 0
  %949 = vmatprep.subr.bf16.mxu0 0
  %950 = vmatpush2.bf16.msra.mxu0 0
  %951 = vmatprep.subr.bf16.mxu0 0
  %952 = vmatpush2.bf16.msra.mxu0 0
  %953 = vmatprep.mubr.bf16.mxu0 0
  %954 = vmatmul.mubr.bf16.gmra.mxu0 %v919
  %v955 = vpop.f32.mrf.mxu0
  %v956 = vadd.f32 0.0, %v955
  %v957 = vpop.f32.mrf.mxu0
  %v958 = vpop.f32.mrf.mxu0
  %v959 = vpop.f32.mrf.mxu0
  %960 = vdwg.mxu0
  %v962 = vrot.slane %v956, 2
  %v964 = vadd.f32 %v129, %v962
  %v965 = vxor.u32 %v964, 2147483648
  %v966 = vmul.f32 %v965, 1.442695
  %v967 = vpow.pop %v966
  %v968 = vadd.f32 %v967, 1.0
  %v969 = vrcp.pop %v968
  %v970 = vmul.f32 1.0, %v969
  %v971 = vtanh.pop %v964
  %v973 = vrot.slane %v818, 2
  %v975 = vmul.f32 %v970, %v973
  %977 = vrot.lane.b32.xlu0 %v971, 64
  %v978 = vpop.permute.xlu0 %977
  %v980 = vmul.f32 %v970, %v978
  %982 = vrot.lane.b32.xlu0 %v980, 32
  %v983 = vpop.permute.xlu0 %982
  %v985 = vadd.f32 %v975, %v983
  %v986 = vtanh.pop %v985
  %988 = vrot.lane.b32.xlu0 %v986, 64
  %v989 = vpop.permute.xlu0 %988
  %v991 = vmul.f32 %v970, %v989
  %v992 = vpack.c.bf16 %v991, %v991
  %v994 = vunpack.c.l.b16 %v992
  %v995 = vpack.c.b16 %v994, %v994
  %996 = vrot.lane.b32.xlu0 %v995, 64
  %v997 = vpop.permute.xlu0 %996
  %999 = vst.msk [vmem:[%s5] sm:$0x8] %vm320, %v997
  %1000 = vrot.lane.b32.xlu0 %v908, 32
  %v1001 = vpop.permute.xlu0 %1000
  %v1003 = vsel %vm155, %v1001, 0
  %1005 = vmatprep.subr.bf16.mxu0 0
  %1006 = vmatpush1.bf16.msra.mxu0 0
  %1007 = vmatprep.subr.bf16.mxu0 0
  %1008 = vmatpush1.bf16.msra.mxu0 0
  %1009 = vmatprep.subr.bf16.mxu0 0
  %1010 = vmatpush1.bf16.msra.mxu0 0
  %1011 = vmatprep.subr.bf16.mxu0 0
  %1012 = vmatpush1.bf16.msra.mxu0 0
  %1013 = vmatprep.subr.bf16.mxu0 0
  %1014 = vmatpush1.bf16.msra.mxu0 0
  %1015 = vmatprep.subr.bf16.mxu0 0
  %1016 = vmatpush1.bf16.msra.mxu0 0
  %1017 = vmatprep.subr.bf16.mxu0 0
  %1018 = vmatpush1.bf16.msra.mxu0 %v152
  %1019 = vmatprep.subr.bf16.mxu0 0
  %1020 = vmatpush1.bf16.msra.mxu0 %v151
  %1021 = vmatprep.subr.bf16.mxu0 0
  %1022 = vmatpush2.bf16.msra.mxu0 0
  %1023 = vmatprep.subr.bf16.mxu0 0
  %1024 = vmatpush2.bf16.msra.mxu0 0
  %1025 = vmatprep.subr.bf16.mxu0 0
  %1026 = vmatpush2.bf16.msra.mxu0 0
  %1027 = vmatprep.subr.bf16.mxu0 0
  %1028 = vmatpush2.bf16.msra.mxu0 0
  %1029 = vmatprep.subr.bf16.mxu0 0
  %1030 = vmatpush2.bf16.msra.mxu0 0
  %1031 = vmatprep.subr.bf16.mxu0 0
  %1032 = vmatpush2.bf16.msra.mxu0 0
  %1033 = vmatprep.subr.bf16.mxu0 0
  %1034 = vmatpush2.bf16.msra.mxu0 0
  %1035 = vmatprep.subr.bf16.mxu0 0
  %1036 = vmatpush2.bf16.msra.mxu0 0
  %1037 = vmatprep.mubr.bf16.mxu0 0
  %1038 = vmatmul.mubr.bf16.gmra.mxu0 %v1003
  %v1039 = vpop.f32.mrf.mxu0
  %v1040 = vadd.f32 0.0, %v1039
  %v1041 = vpop.f32.mrf.mxu0
  %v1042 = vpop.f32.mrf.mxu0
  %v1043 = vpop.f32.mrf.mxu0
  %1044 = vdwg.mxu0
  %v1046 = vrot.slane %v1040, 6
  %v1048 = vadd.f32 %v131, %v1046
  %v1049 = vxor.u32 %v1048, 2147483648
  %v1050 = vmul.f32 %v1049, 1.442695
  %v1051 = vpow.pop %v1050
  %v1052 = vadd.f32 %v1051, 1.0
  %v1053 = vrcp.pop %v1052
  %v1054 = vmul.f32 1.0, %v1053
  %v1055 = vtanh.pop %v1048
  %v1057 = vrot.slane %v901, 6
  %v1059 = vmul.f32 %v1054, %v1057
  %1061 = vrot.lane.b32.xlu0 %v1055, 64
  %v1062 = vpop.permute.xlu0 %1061
  %v1064 = vmul.f32 %v1054, %v1062
  %1066 = vrot.lane.b32.xlu0 %v1064, 32
  %v1067 = vpop.permute.xlu0 %1066
  %v1069 = vadd.f32 %v1059, %v1067
  %v1070 = vtanh.pop %v1069
  %1072 = vrot.lane.b32.xlu0 %v1070, 64
  %v1073 = vpop.permute.xlu0 %1072
  %v1075 = vmul.f32 %v1054, %v1073
  %v1076 = vpack.c.bf16 %v1075, %v1075
  %v1078 = vunpack.c.l.b16 %v1076
  %v1079 = vpack.c.b16 %v1078, %v1078
  %1080 = vrot.lane.b32.xlu0 %v1079, 32
  %v1081 = vpop.permute.xlu0 %1080
  %1083 = vst.msk [vmem:[%s5 + $0x4] sm:$0x2] %vm405, %v1081
  %v1084 = vrot.slane %v992, 3
  %1085 = vrot.lane.b32.xlu0 %v1084, 32
  %v1086 = vpop.permute.xlu0 %1085
  %v1088 = vsel %vm155, %v1086, 0
  %1090 = vmatprep.subr.bf16.mxu0 0
  %1091 = vmatpush1.bf16.msra.mxu0 0
  %1092 = vmatprep.subr.bf16.mxu0 0
  %1093 = vmatpush1.bf16.msra.mxu0 0
  %1094 = vmatprep.subr.bf16.mxu0 0
  %1095 = vmatpush1.bf16.msra.mxu0 0
  %1096 = vmatprep.subr.bf16.mxu0 0
  %1097 = vmatpush1.bf16.msra.mxu0 0
  %1098 = vmatprep.subr.bf16.mxu0 0
  %1099 = vmatpush1.bf16.msra.mxu0 0
  %1100 = vmatprep.subr.bf16.mxu0 0
  %1101 = vmatpush1.bf16.msra.mxu0 0
  %1102 = vmatprep.subr.bf16.mxu0 0
  %1103 = vmatpush1.bf16.msra.mxu0 %v242
  %1104 = vmatprep.subr.bf16.mxu0 0
  %1105 = vmatpush1.bf16.msra.mxu0 %v241
  %1106 = vmatprep.subr.bf16.mxu0 0
  %1107 = vmatpush2.bf16.msra.mxu0 0
  %1108 = vmatprep.subr.bf16.mxu0 0
  %1109 = vmatpush2.bf16.msra.mxu0 0
  %1110 = vmatprep.subr.bf16.mxu0 0
  %1111 = vmatpush2.bf16.msra.mxu0 0
  %1112 = vmatprep.subr.bf16.mxu0 0
  %1113 = vmatpush2.bf16.msra.mxu0 0
  %1114 = vmatprep.subr.bf16.mxu0 0
  %1115 = vmatpush2.bf16.msra.mxu0 0
  %1116 = vmatprep.subr.bf16.mxu0 0
  %1117 = vmatpush2.bf16.msra.mxu0 0
  %1118 = vmatprep.subr.bf16.mxu0 0
  %1119 = vmatpush2.bf16.msra.mxu0 0
  %1120 = vmatprep.subr.bf16.mxu0 0
  %1121 = vmatpush2.bf16.msra.mxu0 0
  %1122 = vmatprep.mubr.bf16.mxu0 0
  %1123 = vmatmul.mubr.bf16.gmra.mxu0 %v1088
  %v1124 = vpop.f32.mrf.mxu0
  %v1125 = vadd.f32 0.0, %v1124
  %v1126 = vpop.f32.mrf.mxu0
  %v1127 = vpop.f32.mrf.mxu0
  %v1128 = vpop.f32.mrf.mxu0
  %1129 = vdwg.mxu0
  %v1131 = vrot.slane %v1125, 4
  %v1133 = vadd.f32 %v129, %v1131
  %v1134 = vxor.u32 %v1133, 2147483648
  %v1135 = vmul.f32 %v1134, 1.442695
  %v1136 = vpow.pop %v1135
  %v1137 = vadd.f32 %v1136, 1.0
  %v1138 = vrcp.pop %v1137
  %v1139 = vmul.f32 1.0, %v1138
  %v1140 = vtanh.pop %v1133
  %v1142 = vrot.slane %v985, 2
  %v1144 = vmul.f32 %v1139, %v1142
  %1146 = vrot.lane.b32.xlu0 %v1140, 64
  %v1147 = vpop.permute.xlu0 %1146
  %v1149 = vmul.f32 %v1139, %v1147
  %1151 = vrot.lane.b32.xlu0 %v1149, 32
  %v1152 = vpop.permute.xlu0 %1151
  %v1154 = vadd.f32 %v1144, %v1152
  %v1155 = vtanh.pop %v1154
  %1157 = vrot.lane.b32.xlu0 %v1155, 64
  %v1158 = vpop.permute.xlu0 %1157
  %v1160 = vmul.f32 %v1139, %v1158
  %v1161 = vpack.c.bf16 %v1160, %v1160
  %v1163 = vunpack.c.l.b16 %v1161
  %v1164 = vpack.c.b16 %v1163, %v1163
  %1165 = vrot.lane.b32.xlu0 %v1164, 64
  %v1166 = vpop.permute.xlu0 %1165
  %1168 = vst.msk [vmem:[%s5] sm:$0x4] %vm491, %v1166
  %v1169 = vrot.slane %v1076, 1
  %1170 = vrot.lane.b32.xlu0 %v1169, 32
  %v1171 = vpop.permute.xlu0 %1170
  %v1173 = vsel %vm155, %v1171, 0
  %1175 = vmatprep.subr.bf16.mxu0 0
  %1176 = vmatpush1.bf16.msra.mxu0 0
  %1177 = vmatprep.subr.bf16.mxu0 0
  %1178 = vmatpush1.bf16.msra.mxu0 0
  %1179 = vmatprep.subr.bf16.mxu0 0
  %1180 = vmatpush1.bf16.msra.mxu0 0
  %1181 = vmatprep.subr.bf16.mxu0 0
  %1182 = vmatpush1.bf16.msra.mxu0 0
  %1183 = vmatprep.subr.bf16.mxu0 0
  %1184 = vmatpush1.bf16.msra.mxu0 0
  %1185 = vmatprep.subr.bf16.mxu0 0
  %1186 = vmatpush1.bf16.msra.mxu0 0
  %1187 = vmatprep.subr.bf16.mxu0 0
  %1188 = vmatpush1.bf16.msra.mxu0 %v152
  %1189 = vmatprep.subr.bf16.mxu0 0
  %1190 = vmatpush1.bf16.msra.mxu0 %v151
  %1191 = vmatprep.subr.bf16.mxu0 0
  %1192 = vmatpush2.bf16.msra.mxu0 0
  %1193 = vmatprep.subr.bf16.mxu0 0
  %1194 = vmatpush2.bf16.msra.mxu0 0
  %1195 = vmatprep.subr.bf16.mxu0 0
  %1196 = vmatpush2.bf16.msra.mxu0 0
  %1197 = vmatprep.subr.bf16.mxu0 0
  %1198 = vmatpush2.bf16.msra.mxu0 0
  %1199 = vmatprep.subr.bf16.mxu0 0
  %1200 = vmatpush2.bf16.msra.mxu0 0
  %1201 = vmatprep.subr.bf16.mxu0 0
  %1202 = vmatpush2.bf16.msra.mxu0 0
  %1203 = vmatprep.subr.bf16.mxu0 0
  %1204 = vmatpush2.bf16.msra.mxu0 0
  %1205 = vmatprep.subr.bf16.mxu0 0
  %1206 = vmatpush2.bf16.msra.mxu0 0
  %1207 = vmatprep.mubr.bf16.mxu0 0
  %1208 = vmatmul.mubr.bf16.gmra.mxu0 %v1173
  %v1209 = vpop.f32.mrf.mxu0
  %v1210 = vadd.f32 0.0, %v1209
  %v1211 = vpop.f32.mrf.mxu0
  %v1212 = vpop.f32.mrf.mxu0
  %v1213 = vpop.f32.mrf.mxu0
  %1214 = vdwg.mxu0
  %v1216 = vrot.slane %v1210, 4
  %v1218 = vadd.f32 %v131, %v1216
  %v1219 = vxor.u32 %v1218, 2147483648
  %v1220 = vmul.f32 %v1219, 1.442695
  %v1221 = vpow.pop %v1220
  %v1222 = vadd.f32 %v1221, 1.0
  %v1223 = vrcp.pop %v1222
  %v1224 = vmul.f32 1.0, %v1223
  %v1225 = vtanh.pop %v1218
  %v1227 = vrot.slane %v1069, 6
  %v1229 = vmul.f32 %v1224, %v1227
  %1231 = vrot.lane.b32.xlu0 %v1225, 64
  %v1232 = vpop.permute.xlu0 %1231
  %v1234 = vmul.f32 %v1224, %v1232
  %1236 = vrot.lane.b32.xlu0 %v1234, 32
  %v1237 = vpop.permute.xlu0 %1236
  %v1239 = vadd.f32 %v1229, %v1237
  %v1240 = vtanh.pop %v1239
  %1242 = vrot.lane.b32.xlu0 %v1240, 64
  %v1243 = vpop.permute.xlu0 %1242
  %v1245 = vmul.f32 %v1224, %v1243
  %v1246 = vpack.c.bf16 %v1245, %v1245
  %v1248 = vunpack.c.l.b16 %v1246
  %v1249 = vpack.c.b16 %v1248, %v1248
  %1250 = vrot.lane.b32.xlu0 %v1249, 32
  %v1251 = vpop.permute.xlu0 %1250
  %1253 = vst.msk [vmem:[%s5 + $0x4] sm:$0x4] %vm577, %v1251
  %v1254 = vrot.slane %v1161, 2
  %1255 = vrot.lane.b32.xlu0 %v1254, 32
  %v1256 = vpop.permute.xlu0 %1255
  %v1258 = vsel %vm155, %v1256, 0
  %1260 = vmatprep.subr.bf16.mxu0 0
  %1261 = vmatpush1.bf16.msra.mxu0 0
  %1262 = vmatprep.subr.bf16.mxu0 0
  %1263 = vmatpush1.bf16.msra.mxu0 0
  %1264 = vmatprep.subr.bf16.mxu0 0
  %1265 = vmatpush1.bf16.msra.mxu0 0
  %1266 = vmatprep.subr.bf16.mxu0 0
  %1267 = vmatpush1.bf16.msra.mxu0 0
  %1268 = vmatprep.subr.bf16.mxu0 0
  %1269 = vmatpush1.bf16.msra.mxu0 0
  %1270 = vmatprep.subr.bf16.mxu0 0
  %1271 = vmatpush1.bf16.msra.mxu0 0
  %1272 = vmatprep.subr.bf16.mxu0 0
  %1273 = vmatpush1.bf16.msra.mxu0 %v242
  %1274 = vmatprep.subr.bf16.mxu0 0
  %1275 = vmatpush1.bf16.msra.mxu0 %v241
  %1276 = vmatprep.subr.bf16.mxu0 0
  %1277 = vmatpush2.bf16.msra.mxu0 0
  %1278 = vmatprep.subr.bf16.mxu0 0
  %1279 = vmatpush2.bf16.msra.mxu0 0
  %1280 = vmatprep.subr.bf16.mxu0 0
  %1281 = vmatpush2.bf16.msra.mxu0 0
  %1282 = vmatprep.subr.bf16.mxu0 0
  %1283 = vmatpush2.bf16.msra.mxu0 0
  %1284 = vmatprep.subr.bf16.mxu0 0
  %1285 = vmatpush2.bf16.msra.mxu0 0
  %1286 = vmatprep.subr.bf16.mxu0 0
  %1287 = vmatpush2.bf16.msra.mxu0 0
  %1288 = vmatprep.subr.bf16.mxu0 0
  %1289 = vmatpush2.bf16.msra.mxu0 0
  %1290 = vmatprep.subr.bf16.mxu0 0
  %1291 = vmatpush2.bf16.msra.mxu0 0
  %1292 = vmatprep.mubr.bf16.mxu0 0
  %1293 = vmatmul.mubr.bf16.gmra.mxu0 %v1258
  %v1294 = vpop.f32.mrf.mxu0
  %v1295 = vadd.f32 0.0, %v1294
  %v1296 = vpop.f32.mrf.mxu0
  %v1297 = vpop.f32.mrf.mxu0
  %v1298 = vpop.f32.mrf.mxu0
  %1299 = vdwg.mxu0
  %v1301 = vrot.slane %v1295, 6
  %v1303 = vadd.f32 %v129, %v1301
  %v1304 = vxor.u32 %v1303, 2147483648
  %v1305 = vmul.f32 %v1304, 1.442695
  %v1306 = vpow.pop %v1305
  %v1307 = vadd.f32 %v1306, 1.0
  %v1308 = vrcp.pop %v1307
  %v1309 = vmul.f32 1.0, %v1308
  %v1310 = vtanh.pop %v1303
  %v1312 = vrot.slane %v1154, 2
  %v1314 = vmul.f32 %v1309, %v1312
  %1316 = vrot.lane.b32.xlu0 %v1310, 64
  %v1317 = vpop.permute.xlu0 %1316
  %v1319 = vmul.f32 %v1309, %v1317
  %1321 = vrot.lane.b32.xlu0 %v1319, 32
  %v1322 = vpop.permute.xlu0 %1321
  %v1324 = vadd.f32 %v1314, %v1322
  %v1325 = vtanh.pop %v1324
  %1327 = vrot.lane.b32.xlu0 %v1325, 64
  %v1328 = vpop.permute.xlu0 %1327
  %v1330 = vmul.f32 %v1309, %v1328
  %v1331 = vpack.c.bf16 %v1330, %v1330
  %v1333 = vunpack.c.l.b16 %v1331
  %v1334 = vpack.c.b16 %v1333, %v1333
  %1335 = vrot.lane.b32.xlu0 %v1334, 64
  %v1336 = vpop.permute.xlu0 %1335
  %1338 = vst.msk [vmem:[%s5] sm:$0x2] %vm663, %v1336
  %v1339 = vrot.slane %v1246, 2
  %1340 = vrot.lane.b32.xlu0 %v1339, 32
  %v1341 = vpop.permute.xlu0 %1340
  %v1343 = vsel %vm155, %v1341, 0
  %1345 = vmatprep.subr.bf16.mxu0 0
  %1346 = vmatpush1.bf16.msra.mxu0 0
  %1347 = vmatprep.subr.bf16.mxu0 0
  %1348 = vmatpush1.bf16.msra.mxu0 0
  %1349 = vmatprep.subr.bf16.mxu0 0
  %1350 = vmatpush1.bf16.msra.mxu0 0
  %1351 = vmatprep.subr.bf16.mxu0 0
  %1352 = vmatpush1.bf16.msra.mxu0 0
  %1353 = vmatprep.subr.bf16.mxu0 0
  %1354 = vmatpush1.bf16.msra.mxu0 0
  %1355 = vmatprep.subr.bf16.mxu0 0
  %1356 = vmatpush1.bf16.msra.mxu0 0
  %1357 = vmatprep.subr.bf16.mxu0 0
  %1358 = vmatpush1.bf16.msra.mxu0 %v152
  %1359 = vmatprep.subr.bf16.mxu0 0
  %1360 = vmatpush1.bf16.msra.mxu0 %v151
  %1361 = vmatprep.subr.bf16.mxu0 0
  %1362 = vmatpush2.bf16.msra.mxu0 0
  %1363 = vmatprep.subr.bf16.mxu0 0
  %1364 = vmatpush2.bf16.msra.mxu0 0
  %1365 = vmatprep.subr.bf16.mxu0 0
  %1366 = vmatpush2.bf16.msra.mxu0 0
  %1367 = vmatprep.subr.bf16.mxu0 0
  %1368 = vmatpush2.bf16.msra.mxu0 0
  %1369 = vmatprep.subr.bf16.mxu0 0
  %1370 = vmatpush2.bf16.msra.mxu0 0
  %1371 = vmatprep.subr.bf16.mxu0 0
  %1372 = vmatpush2.bf16.msra.mxu0 0
  %1373 = vmatprep.subr.bf16.mxu0 0
  %1374 = vmatpush2.bf16.msra.mxu0 0
  %1375 = vmatprep.subr.bf16.mxu0 0
  %1376 = vmatpush2.bf16.msra.mxu0 0
  %1377 = vmatprep.mubr.bf16.mxu0 0
  %1378 = vmatmul.mubr.bf16.gmra.mxu0 %v1343
  %v1379 = vpop.f32.mrf.mxu0
  %v1380 = vadd.f32 0.0, %v1379
  %v1381 = vpop.f32.mrf.mxu0
  %v1382 = vpop.f32.mrf.mxu0
  %v1383 = vpop.f32.mrf.mxu0
  %1384 = vdwg.mxu0
  %v1386 = vrot.slane %v1380, 2
  %v1388 = vadd.f32 %v131, %v1386
  %v1389 = vxor.u32 %v1388, 2147483648
  %v1390 = vmul.f32 %v1389, 1.442695
  %v1391 = vpow.pop %v1390
  %v1392 = vadd.f32 %v1391, 1.0
  %v1393 = vrcp.pop %v1392
  %v1394 = vmul.f32 1.0, %v1393
  %v1395 = vtanh.pop %v1388
  %v1397 = vrot.slane %v1239, 6
  %v1399 = vmul.f32 %v1394, %v1397
  %1401 = vrot.lane.b32.xlu0 %v1395, 64
  %v1402 = vpop.permute.xlu0 %1401
  %v1404 = vmul.f32 %v1394, %v1402
  %1406 = vrot.lane.b32.xlu0 %v1404, 32
  %v1407 = vpop.permute.xlu0 %1406
  %v1409 = vadd.f32 %v1399, %v1407
  %v1410 = vtanh.pop %v1409
  %1412 = vrot.lane.b32.xlu0 %v1410, 64
  %v1413 = vpop.permute.xlu0 %1412
  %v1415 = vmul.f32 %v1394, %v1413
  %v1416 = vpack.c.bf16 %v1415, %v1415
  %v1418 = vunpack.c.l.b16 %v1416
  %v1419 = vpack.c.b16 %v1418, %v1418
  %1420 = vrot.lane.b32.xlu0 %v1419, 32
  %v1421 = vpop.permute.xlu0 %1420
  %1423 = vst.msk [vmem:[%s5 + $0x4] sm:$0x8] %vm749, %v1421
  %v1424 = vrot.slane %v1331, 1
  %1425 = vrot.lane.b32.xlu0 %v1424, 32
  %v1426 = vpop.permute.xlu0 %1425
  %v1428 = vsel %vm155, %v1426, 0
  %1430 = vmatprep.subr.bf16.mxu0 0
  %1431 = vmatpush1.bf16.msra.mxu0 0
  %1432 = vmatprep.subr.bf16.mxu0 0
  %1433 = vmatpush1.bf16.msra.mxu0 0
  %1434 = vmatprep.subr.bf16.mxu0 0
  %1435 = vmatpush1.bf16.msra.mxu0 0
  %1436 = vmatprep.subr.bf16.mxu0 0
  %1437 = vmatpush1.bf16.msra.mxu0 0
  %1438 = vmatprep.subr.bf16.mxu0 0
  %1439 = vmatpush1.bf16.msra.mxu0 0
  %1440 = vmatprep.subr.bf16.mxu0 0
  %1441 = vmatpush1.bf16.msra.mxu0 0
  %1442 = vmatprep.subr.bf16.mxu0 0
  %1443 = vmatpush1.bf16.msra.mxu0 %v242
  %1444 = vmatprep.subr.bf16.mxu0 0
  %1445 = vmatpush1.bf16.msra.mxu0 %v241
  %1446 = vmatprep.subr.bf16.mxu0 0
  %1447 = vmatpush2.bf16.msra.mxu0 0
  %1448 = vmatprep.subr.bf16.mxu0 0
  %1449 = vmatpush2.bf16.msra.mxu0 0
  %1450 = vmatprep.subr.bf16.mxu0 0
  %1451 = vmatpush2.bf16.msra.mxu0 0
  %1452 = vmatprep.subr.bf16.mxu0 0
  %1453 = vmatpush2.bf16.msra.mxu0 0
  %1454 = vmatprep.subr.bf16.mxu0 0
  %1455 = vmatpush2.bf16.msra.mxu0 0
  %1456 = vmatprep.subr.bf16.mxu0 0
  %1457 = vmatpush2.bf16.msra.mxu0 0
  %1458 = vmatprep.subr.bf16.mxu0 0
  %1459 = vmatpush2.bf16.msra.mxu0 0
  %1460 = vmatprep.subr.bf16.mxu0 0
  %1461 = vmatpush2.bf16.msra.mxu0 0
  %1462 = vmatprep.mubr.bf16.mxu0 0
  %1463 = vmatmul.mubr.bf16.gmra.mxu0 %v1428
  %v1464 = vpop.f32.mrf.mxu0
  %v1465 = vadd.f32 0.0, %v1464
  %v1466 = vpop.f32.mrf.mxu0
  %v1467 = vpop.f32.mrf.mxu0
  %v1468 = vpop.f32.mrf.mxu0
  %1469 = vdwg.mxu0
  %v1470 = vadd.f32 %v129, %v1465
  %v1471 = vxor.u32 %v1470, 2147483648
  %v1472 = vmul.f32 %v1471, 1.442695
  %v1473 = vpow.pop %v1472
  %v1474 = vadd.f32 %v1473, 1.0
  %v1475 = vrcp.pop %v1474
  %v1476 = vmul.f32 1.0, %v1475
  %v1477 = vtanh.pop %v1470
  %v1479 = vrot.slane %v1324, 2
  %v1481 = vmul.f32 %v1476, %v1479
  %1483 = vrot.lane.b32.xlu0 %v1477, 64
  %v1484 = vpop.permute.xlu0 %1483
  %v1486 = vmul.f32 %v1476, %v1484
  %1488 = vrot.lane.b32.xlu0 %v1486, 32
  %v1489 = vpop.permute.xlu0 %1488
  %v1491 = vadd.f32 %v1481, %v1489
  %v1492 = vtanh.pop %v1491
  %1494 = vrot.lane.b32.xlu0 %v1492, 64
  %v1495 = vpop.permute.xlu0 %1494
  %v1497 = vmul.f32 %v1476, %v1495
  %v1498 = vpack.c.bf16 %v1497, %v1497
  %v1500 = vunpack.c.l.b16 %v1498
  %v1501 = vpack.c.b16 %v1500, %v1500
  %1502 = vrot.lane.b32.xlu0 %v1501, 64
  %v1503 = vpop.permute.xlu0 %1502
  %1505 = vst.msk [vmem:[%s5] sm:$0x1] %vm832, %v1503
  // Predicated region
  $region22: #{sequence_classifier_forward.5} parent=0 // pred_check
    _
  $region23: #{sequence_classifier_forward.5} parent=0 // pred_check_branch
    %1507 = sbr.rel (0) target = $region25
  $region24: #{sequence_classifier_forward.5} parent=0 // pred_region
    _
  $region25: #{sequence_classifier_forward.5} parent=0 // pred_fallthru
    _
  // Predicated region
  $region26: #{sequence_classifier_forward.5} parent=0 // pred_check
    _
  $region27: #{sequence_classifier_forward.5} parent=0 // pred_check_branch
    %1509 = sbr.rel (0) target = $region29
  $region28: #{sequence_classifier_forward.5} parent=0 // pred_region
    _
  $region29: #{sequence_classifier_forward.5} parent=0 // pred_fallthru
    _

</llo_original>
